<compile_context>
chip_gen: v6e
topology: v6e:2x2x1
jax: 0.10.0
libtpu: 0.0.40
codegen_flags: <defaults>
</compile_context>

<pallas_src>
import functools

import jax
import jax.numpy as jnp
from jax.experimental import pallas as pl
from jax.experimental.pallas import tpu as pltpu


_SELU_ALPHA = 1.6732632423543772848170429916717
_SELU_SCALE = 1.0507009873554804934193349852946
_BIG = 1.0e6


def _selu(x):
    return _SELU_SCALE * jnp.where(x > 0, x, _SELU_ALPHA * (jnp.exp(x) - 1.0))


def _ffn(x_bf16, layers):
    """bf16 matmuls with f32 accumulation; SELU between layers, none after last."""
    y = x_bf16
    n_layers = len(layers)
    for li, (w_ref, b_ref) in enumerate(layers):
        z = jnp.dot(y, w_ref[...], preferred_element_type=jnp.float32) + b_ref[...]
        y = _selu(z).astype(jnp.bfloat16) if li < n_layers - 1 else z
    return y


# ----------------------------------------------------------------------------
# The single fused forward kernel (grid = (num_shards,), 1 on v5e/v6e).
# ----------------------------------------------------------------------------
def _mdam_forward_kernel(*refs, n_edge, n_gat_rest, n_gemb, n_out,
                         passes, e, s, fn):
    h0_ref, adjt_ref, edk_ref, seg_ref = refs[0], refs[1], refs[2], refs[3]
    idx = 4
    edge_layers = [(refs[idx + 2 * i], refs[idx + 2 * i + 1]) for i in range(n_edge)]
    idx += 2 * n_edge
    wih_ref, whh_ref, bih_ref, bhh_ref = refs[idx:idx + 4]
    idx += 4
    gat_wh0, gat_wx0, gat_b0 = refs[idx:idx + 3]
    idx += 3
    gat_rest = [(refs[idx + 2 * i], refs[idx + 2 * i + 1]) for i in range(n_gat_rest)]
    idx += 2 * n_gat_rest
    gemb_layers = [(refs[idx + 2 * i], refs[idx + 2 * i + 1]) for i in range(n_gemb)]
    idx += 2 * n_gemb
    out_layers = [(refs[idx + 2 * i], refs[idx + 2 * i + 1]) for i in range(n_out)]
    out_ref = refs[-1]

    x0 = h0_ref[0]                          # (BN, Fn) f32   node features
    adjt = adjt_ref[0]                      # (BN_j, BN_i)   block-diag, sender-major
    edk = edk_ref[0]                        # (E, BN_j, BN_i)
    seg = seg_ref[0].astype(jnp.bfloat16)   # (Bs, BN)       mask-folded one-hot

    wih = wih_ref[...]                      # (S, 3*Fn) bf16
    whh = whh_ref[...]                      # (Fn, 3*Fn) bf16
    bih = bih_ref[...]                      # (1, 3*Fn) f32
    bhh = bhh_ref[...]                      # (1, 3*Fn) f32

    # Hoisted once (constant across passes): adjacency penalty for the softmax.
    neg_pen = _BIG * (1.0 - adjt)[:, :, None]          # (BN_j, BN_i, 1)

    h = x0
    # `passes` is small and static; switch to lax.fori_loop if ever raised.
    for _ in range(passes):
        hb = h.astype(jnp.bfloat16)

        # Fused msg+att, edge-channel-folded FFN: one lane-dense matmul chain
        # (BN,Fn)@(Fn,2EH) -> block-diagonal hidden layers -> (BN, 2*E*S).
        y = _ffn(hb, edge_layers)

        # Edge-channel contraction (E tiny): short static VPU accumulation.
        emb = None
        ener = None
        for c in range(e):
            w_ji = edk[c][:, :, None]                       # (BN_j, BN_i, 1)
            mc = y[:, c * s:(c + 1) * s][:, None, :]        # msg, channel c
            ac = y[:, (e + c) * s:(e + c + 1) * s][:, None, :]  # att, channel c
            emb = w_ji * mc if emb is None else emb + w_ji * mc
            ener = w_ji * ac if ener is None else ener + w_ji * ac

        # Masked softmax over senders j (axis 0); reciprocal on the EUP slot.
        ener = ener - neg_pen
        ener = ener - jnp.max(ener, axis=0, keepdims=True)
        p = jnp.exp(ener)
        attn = p * pl.reciprocal(jnp.sum(p, axis=0, keepdims=True), approx=True)
        messages = jnp.sum(attn * emb, axis=0)              # (BN_i, S) f32

        # GRU update, gates concatenated [r|z|n] along the lane axis.
        mb = messages.astype(jnp.bfloat16)
        gi = jnp.dot(mb, wih, preferred_element_type=jnp.float32) + bih
        gh = jnp.dot(hb, whh, preferred_element_type=jnp.float32) + bhh
        r = jax.nn.sigmoid(gi[:, :fn] + gh[:, :fn])
        zg = jax.nn.sigmoid(gi[:, fn:2 * fn] + gh[:, fn:2 * fn])
        ng = jnp.tanh(gi[:, 2 * fn:] + r * gh[:, 2 * fn:])
        h = (1.0 - zg) * ng + zg * h

    # ---------------- fused GraphGather readout + output MLP ----------------
    hb = h.astype(jnp.bfloat16)
    xb = x0.astype(jnp.bfloat16)

    # Gather attention FFN on cat(hidden, nd): layer-0 weight pre-split into
    # hidden/input halves so no lane-axis concatenation is needed.
    y = (jnp.dot(hb, gat_wh0[...], preferred_element_type=jnp.float32)
         + jnp.dot(xb, gat_wx0[...], preferred_element_type=jnp.float32)
         + gat_b0[...])
    if n_gat_rest > 0:
        y = _ffn(_selu(y).astype(jnp.bfloat16), gat_rest)
    ener_g = y                                              # (BN, G)

    emb_g = _ffn(hb, gemb_layers)                           # (BN, G)
    gated = (jax.nn.sigmoid(ener_g) * emb_g).astype(jnp.bfloat16)

    # Per-graph segment sum as one MXU matmul (node mask folded into seg).
    graph_emb = jnp.dot(seg, gated, preferred_element_type=jnp.float32)  # (Bs, G)

    out = _ffn(graph_emb.astype(jnp.bfloat16), out_layers)  # (Bs, out_features)
    out_ref[0] = out


# ----------------------------------------------------------------------------
# Helpers
# ----------------------------------------------------------------------------
def _block_diag(blocks):
    rows = sum(b.shape[0] for b in blocks)
    cols = sum(b.shape[1] for b in blocks)
    out = jnp.zeros((rows, cols), blocks[0].dtype)
    r = c = 0
    for b in blocks:
        out = out.at[r:r + b.shape[0], c:c + b.shape[1]].set(b)
        r += b.shape[0]
        c += b.shape[1]
    return out


def _const_spec(arr):
    nd_ = arr.ndim
    return pl.BlockSpec(arr.shape, lambda i, _n=nd_: (0,) * _n)


def _uniform(key, shape, bound):
    return jax.random.uniform(key, shape, jnp.float32, -bound, bound)


def _make_layer(key, din, dout):
    kw, kb, key = jax.random.split(key, 3)
    bound = 1.0 / float(din) ** 0.5
    return key, (_uniform(kw, (din, dout), bound), _uniform(kb, (1, dout), bound))


def _make_ffn(key, dims):
    layers = []
    for i in range(len(dims) - 1):
        key, (w, b) = _make_layer(key, dims[i], dims[i + 1])
        layers.append((w.astype(jnp.bfloat16), b))
    return key, layers


# ----------------------------------------------------------------------------
# Parameters (bf16 weights / f32 biases; PyTorch-default-style bounds)
# ----------------------------------------------------------------------------
def init_mdam_params(key, cfg):
    e = cfg["edge_features"]
    fn = cfg["node_features"]
    s = cfg["message_size"]
    g = cfg["gather_width"]
    p = {}

    # Fused per-edge-channel message+attention FFN: the 2*E per-channel branch
    # FFNs are folded onto the lane axis (layer 0 concatenated along outputs;
    # deeper layers block-diagonal) so each layer is ONE lane-dense MXU matmul.
    # TODO(synk): unequal msg/att depth or width would need two separate
    #             lane-folded FFNs; not needed for this configuration.
    assert (cfg["msg_depth"] == cfg["att_depth"]
            and cfg["msg_hidden_dim"] == cfg["att_hidden_dim"]), \
        "fused msg/att edge FFN requires matching depth/width"
    dims = [fn] + [cfg["msg_hidden_dim"]] * cfg["msg_depth"] + [s]
    nb = 2 * e   # block order: [msg_c0..msg_c{E-1}, att_c0..att_c{E-1}]
    edge_layers = []
    for li in range(len(dims) - 1):
        din, dout = dims[li], dims[li + 1]
        ws, bs_ = [], []
        for _ in range(nb):
            key, (w, bvec) = _make_layer(key, din, dout)
            ws.append(w)
            bs_.append(bvec)
        w_cat = jnp.concatenate(ws, axis=1) if li == 0 else _block_diag(ws)
        b_cat = jnp.concatenate(bs_, axis=1)
        edge_layers.append((w_cat.astype(jnp.bfloat16), b_cat))
    p["edge_layers"] = edge_layers

    # GRUCell (input = message_size, hidden = node_features), transposed for
    # right-multiplication, gates concatenated along lanes as [r|z|n].
    gb = 1.0 / float(fn) ** 0.5
    key, k1, k2, k3, k4 = jax.random.split(key, 5)
    p["gru_wih"] = _uniform(k1, (s, 3 * fn), gb).astype(jnp.bfloat16)
    p["gru_whh"] = _uniform(k2, (fn, 3 * fn), gb).astype(jnp.bfloat16)
    p["gru_bih"] = _uniform(k3, (1, 3 * fn), gb)
    p["gru_bhh"] = _uniform(k4, (1, 3 * fn), gb)

    # GraphGather attention FFN on cat(hidden, nd): layer-0 weight split in two
    # halves so the kernel never concatenates along the lane axis.
    gah = cfg["gather_att_hidden_dim"]
    first_out = gah if cfg["gather_att_depth"] > 0 else g
    b0 = 1.0 / float(2 * fn) ** 0.5
    key, k1, k2, k3 = jax.random.split(key, 4)
    p["gat_wh0"] = _uniform(k1, (fn, first_out), b0).astype(jnp.bfloat16)
    p["gat_wx0"] = _uniform(k2, (fn, first_out), b0).astype(jnp.bfloat16)
    p["gat_b0"] = _uniform(k3, (1, first_out), b0)
    key, p["gat_rest"] = _make_ffn(key, [gah] * cfg["gather_att_depth"] + [g])

    key, p["gemb_layers"] = _make_ffn(
        key, [fn] + [cfg["gather_emb_hidden_dim"]] * cfg["gather_emb_depth"] + [g])

    out_sizes = [
        round(cfg["out_hidden_dim"] * cfg["out_layer_shrinkage"] **
              (i / (cfg["out_depth"] - 1 + 1e-9)))
        for i in range(cfg["out_depth"])
    ]
    key, p["out_layers"] = _make_ffn(key, [g] + out_sizes + [cfg["out_features"]])
    return p


# ----------------------------------------------------------------------------
# Forward pass: one-time layout plumbing in JAX, one fused Pallas kernel.
# ----------------------------------------------------------------------------
def mdam_forward(params, adj, nd, ed, d, mask, cfg, *, num_shards=1):
    """num_shards=1 for v5e/v6e (single TC: single grid step); use 2 on v7x so
    the "parallel" grid axis gives each TensorCore half the batch."""
    del d  # TODO(synk): distances unused in the reconstructed Graph_encoder.
    b, n, fn = nd.shape
    e = ed.shape[-1]
    assert b % num_shards == 0
    bs = b // num_shards
    bn = bs * n

    # Layout plumbing (outside the kernel): block-diagonal sender-major
    # adjacency / edge tensors per shard, flattened node features, and a
    # mask-folded per-graph segment matrix for the readout reduction.
    adjt = jnp.swapaxes(adj, 1, 2)                       # (B, N_j, N_i)
    ed_cji = jnp.transpose(ed, (0, 3, 2, 1))             # (B, E, N_j, N_i)
    adjt_bd = jnp.stack([
        _block_diag([adjt[sh * bs + k] for k in range(bs)])
        for sh in range(num_shards)])                    # (S, BN, BN)
    ed_bd = jnp.stack([
        jnp.stack([_block_diag([ed_cji[sh * bs + k, c] for k in range(bs)])
                   for c in range(e)])
        for sh in range(num_shards)])                    # (S, E, BN, BN)
    nd_flat = nd.reshape(num_shards, bn, fn)             # (S, BN, Fn)
    graph_one_hot = jnp.repeat(jnp.eye(bs, dtype=jnp.float32), n, axis=1)
    seg = graph_one_hot[None] * mask.reshape(num_shards, 1, bn)   # (S, Bs, BN)

    inputs = [nd_flat, adjt_bd, ed_bd, seg]
    in_specs = [
        pl.BlockSpec((1, bn, fn), lambda i: (i, 0, 0)),
        pl.BlockSpec((1, bn, bn), lambda i: (i, 0, 0)),
        pl.BlockSpec((1, e, bn, bn), lambda i: (i, 0, 0, 0)),
        pl.BlockSpec((1, bs, bn), lambda i: (i, 0, 0)),
    ]

    def add_layers(layers):
        for w, bb in layers:
            inputs.extend([w, bb])
            in_specs.extend([_const_spec(w), _const_spec(bb)])

    add_layers(params["edge_layers"])
    for name in ("gru_wih", "gru_whh", "gru_bih", "gru_bhh"):
        inputs.append(params[name])
        in_specs.append(_const_spec(params[name]))
    for name in ("gat_wh0", "gat_wx0", "gat_b0"):
        inputs.append(params[name])
        in_specs.append(_const_spec(params[name]))
    add_layers(params["gat_rest"])
    add_layers(params["gemb_layers"])
    add_layers(params["out_layers"])

    kernel = functools.partial(
        _mdam_forward_kernel,
        n_edge=len(params["edge_layers"]),
        n_gat_rest=len(params["gat_rest"]),
        n_gemb=len(params["gemb_layers"]),
        n_out=len(params["out_layers"]),
        passes=cfg["message_passes"],
        e=e, s=cfg["message_size"], fn=fn,
    )
    out = pl.pallas_call(
        kernel,
        out_shape=jax.ShapeDtypeStruct(
            (num_shards, bs, cfg["out_features"]), jnp.float32),
        grid=(num_shards,),
        in_specs=in_specs,
        out_specs=pl.BlockSpec((1, bs, cfg["out_features"]), lambda i: (i, 0, 0)),
        compiler_params=pltpu.CompilerParams(
            dimension_semantics=("parallel",),
            vmem_limit_bytes=32 * 1024 * 1024,
        ),
    )(*inputs)
    return out.reshape(b, cfg["out_features"])


# ----------------------------------------------------------------------------
# Demo
# ----------------------------------------------------------------------------
if __name__ == "__main__":
    cfg = dict(
        node_features=16, edge_features=4, message_size=8, message_passes=2,
        out_features=1, msg_depth=2, msg_hidden_dim=32, att_depth=2,
        att_hidden_dim=32, gather_width=16, gather_att_depth=2,
        gather_att_hidden_dim=32, gather_emb_depth=2, gather_emb_hidden_dim=32,
        out_depth=2, out_hidden_dim=32, out_layer_shrinkage=1.0,
    )
    B, N = 2, 8
    E, FN = cfg["edge_features"], cfg["node_features"]

    key = jax.random.PRNGKey(0)
    key, ka, kt, kn, kd = jax.random.split(key, 5)

    # node mask: graph 0 has 8 real nodes, graph 1 has 6
    mask = jnp.stack([jnp.ones((N,)), (jnp.arange(N) < 6).astype(jnp.float32)])
    mask = mask.astype(jnp.float32)                               # (B, N)

    # symmetric adjacency, no self-loops, restricted to real nodes
    a = jax.random.bernoulli(ka, 0.4, (B, N, N)).astype(jnp.float32)
    a = jnp.triu(a, k=1)
    adj = (a + jnp.swapaxes(a, 1, 2)) * mask[:, :, None] * mask[:, None, :]

    # one-hot edge features on existing edges
    etype = jax.random.randint(kt, (B, N, N), 0, E)
    ed = jax.nn.one_hot(etype, E, dtype=jnp.float32) * adj[..., None]

    # distances (unused) and node features (zero for padded nodes)
    d = jax.random.uniform(kd, (B, N, N), jnp.float32) * adj
    nd = jax.random.normal(kn, (B, N, FN), jnp.float32) * mask[..., None]

    params = init_mdam_params(jax.random.PRNGKey(42), cfg)

    fwd = jax.jit(functools.partial(mdam_forward, cfg=cfg))
    out = fwd(params, adj, nd, ed, d, mask)
    out = jax.block_until_ready(out)

    assert out.shape == (B, cfg["out_features"])
    assert bool(jnp.all(jnp.isfinite(out)))
    print("KERNEL_OK")
</pallas_src>

<mosaic_0001>
module attributes {stable_mosaic.version = 11 : i64} {
  func.func @_mdam_forward_kernel(%arg0: i32, %arg1: memref<1x16x16xf32, #tpu.memory_space<vmem>>, %arg2: memref<1x16x16xf32, #tpu.memory_space<vmem>>, %arg3: memref<1x4x16x16xf32, #tpu.memory_space<vmem>>, %arg4: memref<1x2x16xf32, #tpu.memory_space<vmem>>, %arg5: memref<16x256xbf16, #tpu.memory_space<vmem>>, %arg6: memref<1x256xf32, #tpu.memory_space<vmem>>, %arg7: memref<256x256xbf16, #tpu.memory_space<vmem>>, %arg8: memref<1x256xf32, #tpu.memory_space<vmem>>, %arg9: memref<256x64xbf16, #tpu.memory_space<vmem>>, %arg10: memref<1x64xf32, #tpu.memory_space<vmem>>, %arg11: memref<8x48xbf16, #tpu.memory_space<vmem>>, %arg12: memref<16x48xbf16, #tpu.memory_space<vmem>>, %arg13: memref<1x48xf32, #tpu.memory_space<vmem>>, %arg14: memref<1x48xf32, #tpu.memory_space<vmem>>, %arg15: memref<16x32xbf16, #tpu.memory_space<vmem>>, %arg16: memref<16x32xbf16, #tpu.memory_space<vmem>>, %arg17: memref<1x32xf32, #tpu.memory_space<vmem>>, %arg18: memref<32x32xbf16, #tpu.memory_space<vmem>>, %arg19: memref<1x32xf32, #tpu.memory_space<vmem>>, %arg20: memref<32x16xbf16, #tpu.memory_space<vmem>>, %arg21: memref<1x16xf32, #tpu.memory_space<vmem>>, %arg22: memref<16x32xbf16, #tpu.memory_space<vmem>>, %arg23: memref<1x32xf32, #tpu.memory_space<vmem>>, %arg24: memref<32x32xbf16, #tpu.memory_space<vmem>>, %arg25: memref<1x32xf32, #tpu.memory_space<vmem>>, %arg26: memref<32x16xbf16, #tpu.memory_space<vmem>>, %arg27: memref<1x16xf32, #tpu.memory_space<vmem>>, %arg28: memref<16x32xbf16, #tpu.memory_space<vmem>>, %arg29: memref<1x32xf32, #tpu.memory_space<vmem>>, %arg30: memref<32x32xbf16, #tpu.memory_space<vmem>>, %arg31: memref<1x32xf32, #tpu.memory_space<vmem>>, %arg32: memref<32x1xbf16, #tpu.memory_space<vmem>>, %arg33: memref<1x1xf32, #tpu.memory_space<vmem>>, %arg34: memref<1x2x1xf32, #tpu.memory_space<vmem>>) attributes {dimension_semantics = [#tpu.dimension_semantics<parallel>], iteration_bounds = array<i64: 1>, scalar_prefetch = 0 : i64, scratch_operands = 0 : i64, tpu.core_type = #tpu.core_type<tc>, window_params = [{transform_indices = @transform_0, window_bounds = array<i64: 1, 16, 16>}, {transform_indices = @transform_1, window_bounds = array<i64: 1, 16, 16>}, {transform_indices = @transform_2, window_bounds = array<i64: 1, 4, 16, 16>}, {transform_indices = @transform_3, window_bounds = array<i64: 1, 2, 16>}, {pipeline_mode = #tpu.pipeline_mode<synchronous>, transform_indices = @transform_4, window_bounds = array<i64: 16, 256>}, {pipeline_mode = #tpu.pipeline_mode<synchronous>, transform_indices = @transform_5, window_bounds = array<i64: 1, 256>}, {pipeline_mode = #tpu.pipeline_mode<synchronous>, transform_indices = @transform_6, window_bounds = array<i64: 256, 256>}, {pipeline_mode = #tpu.pipeline_mode<synchronous>, transform_indices = @transform_7, window_bounds = array<i64: 1, 256>}, {pipeline_mode = #tpu.pipeline_mode<synchronous>, transform_indices = @transform_8, window_bounds = array<i64: 256, 64>}, {pipeline_mode = #tpu.pipeline_mode<synchronous>, transform_indices = @transform_9, window_bounds = array<i64: 1, 64>}, {pipeline_mode = #tpu.pipeline_mode<synchronous>, transform_indices = @transform_10, window_bounds = array<i64: 8, 48>}, {pipeline_mode = #tpu.pipeline_mode<synchronous>, transform_indices = @transform_11, window_bounds = array<i64: 16, 48>}, {pipeline_mode = #tpu.pipeline_mode<synchronous>, transform_indices = @transform_12, window_bounds = array<i64: 1, 48>}, {pipeline_mode = #tpu.pipeline_mode<synchronous>, transform_indices = @transform_13, window_bounds = array<i64: 1, 48>}, {pipeline_mode = #tpu.pipeline_mode<synchronous>, transform_indices = @transform_14, window_bounds = array<i64: 16, 32>}, {pipeline_mode = #tpu.pipeline_mode<synchronous>, transform_indices = @transform_15, window_bounds = array<i64: 16, 32>}, {pipeline_mode = #tpu.pipeline_mode<synchronous>, transform_indices = @transform_16, window_bounds = array<i64: 1, 32>}, {pipeline_mode = #tpu.pipeline_mode<synchronous>, transform_indices = @transform_17, window_bounds = array<i64: 32, 32>}, {pipeline_mode = #tpu.pipeline_mode<synchronous>, transform_indices = @transform_18, window_bounds = array<i64: 1, 32>}, {pipeline_mode = #tpu.pipeline_mode<synchronous>, transform_indices = @transform_19, window_bounds = array<i64: 32, 16>}, {pipeline_mode = #tpu.pipeline_mode<synchronous>, transform_indices = @transform_20, window_bounds = array<i64: 1, 16>}, {pipeline_mode = #tpu.pipeline_mode<synchronous>, transform_indices = @transform_21, window_bounds = array<i64: 16, 32>}, {pipeline_mode = #tpu.pipeline_mode<synchronous>, transform_indices = @transform_22, window_bounds = array<i64: 1, 32>}, {pipeline_mode = #tpu.pipeline_mode<synchronous>, transform_indices = @transform_23, window_bounds = array<i64: 32, 32>}, {pipeline_mode = #tpu.pipeline_mode<synchronous>, transform_indices = @transform_24, window_bounds = array<i64: 1, 32>}, {pipeline_mode = #tpu.pipeline_mode<synchronous>, transform_indices = @transform_25, window_bounds = array<i64: 32, 16>}, {pipeline_mode = #tpu.pipeline_mode<synchronous>, transform_indices = @transform_26, window_bounds = array<i64: 1, 16>}, {pipeline_mode = #tpu.pipeline_mode<synchronous>, transform_indices = @transform_27, window_bounds = array<i64: 16, 32>}, {pipeline_mode = #tpu.pipeline_mode<synchronous>, transform_indices = @transform_28, window_bounds = array<i64: 1, 32>}, {pipeline_mode = #tpu.pipeline_mode<synchronous>, transform_indices = @transform_29, window_bounds = array<i64: 32, 32>}, {pipeline_mode = #tpu.pipeline_mode<synchronous>, transform_indices = @transform_30, window_bounds = array<i64: 1, 32>}, {pipeline_mode = #tpu.pipeline_mode<synchronous>, transform_indices = @transform_31, window_bounds = array<i64: 32, 1>}, {pipeline_mode = #tpu.pipeline_mode<synchronous>, transform_indices = @transform_32, window_bounds = array<i64: 1, 1>}, {transform_indices = @transform_33, window_bounds = array<i64: 1, 2, 1>}]} {
    %c0 = arith.constant 0 : index
    %c0_0 = arith.constant 0 : index
    %c0_1 = arith.constant 0 : index
    %0 = vector.load %arg1[%c0, %c0_0, %c0_1] : memref<1x16x16xf32, #tpu.memory_space<vmem>>, vector<1x16x16xf32>
    %1 = vector.shape_cast %0 : vector<1x16x16xf32> to vector<16x16xf32>
    %c0_2 = arith.constant 0 : index
    %c0_3 = arith.constant 0 : index
    %c0_4 = arith.constant 0 : index
    %2 = vector.load %arg2[%c0_2, %c0_3, %c0_4] : memref<1x16x16xf32, #tpu.memory_space<vmem>>, vector<1x16x16xf32>
    %3 = vector.shape_cast %2 : vector<1x16x16xf32> to vector<16x16xf32>
    %c0_5 = arith.constant 0 : index
    %c0_6 = arith.constant 0 : index
    %c0_7 = arith.constant 0 : index
    %c0_8 = arith.constant 0 : index
    %4 = vector.load %arg3[%c0_5, %c0_6, %c0_7, %c0_8] : memref<1x4x16x16xf32, #tpu.memory_space<vmem>>, vector<1x4x16x16xf32>
    %5 = vector.shape_cast %4 : vector<1x4x16x16xf32> to vector<4x16x16xf32>
    %c0_9 = arith.constant 0 : index
    %c0_10 = arith.constant 0 : index
    %c0_11 = arith.constant 0 : index
    %6 = vector.load %arg4[%c0_9, %c0_10, %c0_11] : memref<1x2x16xf32, #tpu.memory_space<vmem>>, vector<1x2x16xf32>
    %7 = vector.shape_cast %6 : vector<1x2x16xf32> to vector<2x16xf32>
    %8 = arith.truncf %7 : vector<2x16xf32> to vector<2x16xbf16>
    %c0_12 = arith.constant 0 : index
    %c0_13 = arith.constant 0 : index
    %9 = vector.load %arg11[%c0_12, %c0_13] : memref<8x48xbf16, #tpu.memory_space<vmem>>, vector<8x48xbf16>
    %c0_14 = arith.constant 0 : index
    %c0_15 = arith.constant 0 : index
    %10 = vector.load %arg12[%c0_14, %c0_15] : memref<16x48xbf16, #tpu.memory_space<vmem>>, vector<16x48xbf16>
    %c0_16 = arith.constant 0 : index
    %c0_17 = arith.constant 0 : index
    %11 = vector.load %arg13[%c0_16, %c0_17] : memref<1x48xf32, #tpu.memory_space<vmem>>, vector<1x48xf32>
    %c0_18 = arith.constant 0 : index
    %c0_19 = arith.constant 0 : index
    %12 = vector.load %arg14[%c0_18, %c0_19] : memref<1x48xf32, #tpu.memory_space<vmem>>, vector<1x48xf32>
    %cst = arith.constant 1.000000e+00 : f32
    %13 = vector.broadcast %cst : f32 to vector<16x16xf32>
    %14 = arith.subf %13, %3 : vector<16x16xf32>
    %15 = vector.shape_cast %14 : vector<16x16xf32> to vector<16x16x1xf32>
    %cst_20 = arith.constant 1.000000e+06 : f32
    %16 = vector.broadcast %cst_20 : f32 to vector<16x16x1xf32>
    %17 = arith.mulf %16, %15 : vector<16x16x1xf32>
    %18 = arith.truncf %1 : vector<16x16xf32> to vector<16x16xbf16>
    %c0_21 = arith.constant 0 : index
    %c0_22 = arith.constant 0 : index
    %19 = vector.load %arg5[%c0_21, %c0_22] : memref<16x256xbf16, #tpu.memory_space<vmem>>, vector<16x256xbf16>
    %cst_23 = arith.constant dense<0.000000e+00> : vector<16x256xf32>
    %20 = tpu.matmul %18, %19, %cst_23 {dimension_numbers = #tpu.dot_dimension_numbers<[1], [0], [0], [1], [0, 0, 1, 1], [], []>} : vector<16x16xbf16>, vector<16x256xbf16>, vector<16x256xf32> -> vector<16x256xf32>
    %c0_24 = arith.constant 0 : index
    %c0_25 = arith.constant 0 : index
    %21 = vector.load %arg6[%c0_24, %c0_25] : memref<1x256xf32, #tpu.memory_space<vmem>>, vector<1x256xf32>
    %22 = vector.broadcast %21 : vector<1x256xf32> to vector<16x256xf32>
    %23 = arith.addf %20, %22 : vector<16x256xf32>
    %cst_26 = arith.constant 0.000000e+00 : f32
    %24 = vector.broadcast %cst_26 : f32 to vector<16x256xf32>
    %25 = arith.cmpf ogt, %23, %24 : vector<16x256xf32>
    %26 = math.exp %23 : vector<16x256xf32>
    %cst_27 = arith.constant 1.000000e+00 : f32
    %27 = vector.broadcast %cst_27 : f32 to vector<16x256xf32>
    %28 = arith.subf %26, %27 : vector<16x256xf32>
    %cst_28 = arith.constant 1.67326319 : f32
    %29 = vector.broadcast %cst_28 : f32 to vector<16x256xf32>
    %30 = arith.mulf %29, %28 : vector<16x256xf32>
    %31 = arith.select %25, %23, %30 : vector<16x256xi1>, vector<16x256xf32>
    %cst_29 = arith.constant 1.05070102 : f32
    %32 = vector.broadcast %cst_29 : f32 to vector<16x256xf32>
    %33 = arith.mulf %32, %31 : vector<16x256xf32>
    %34 = arith.truncf %33 : vector<16x256xf32> to vector<16x256xbf16>
    %c0_30 = arith.constant 0 : index
    %c0_31 = arith.constant 0 : index
    %35 = vector.load %arg7[%c0_30, %c0_31] : memref<256x256xbf16, #tpu.memory_space<vmem>>, vector<256x256xbf16>
    %cst_32 = arith.constant dense<0.000000e+00> : vector<16x256xf32>
    %36 = tpu.matmul %34, %35, %cst_32 {dimension_numbers = #tpu.dot_dimension_numbers<[1], [0], [0], [1], [0, 0, 1, 1], [], []>} : vector<16x256xbf16>, vector<256x256xbf16>, vector<16x256xf32> -> vector<16x256xf32>
    %c0_33 = arith.constant 0 : index
    %c0_34 = arith.constant 0 : index
    %37 = vector.load %arg8[%c0_33, %c0_34] : memref<1x256xf32, #tpu.memory_space<vmem>>, vector<1x256xf32>
    %38 = vector.broadcast %37 : vector<1x256xf32> to vector<16x256xf32>
    %39 = arith.addf %36, %38 : vector<16x256xf32>
    %cst_35 = arith.constant 0.000000e+00 : f32
    %40 = vector.broadcast %cst_35 : f32 to vector<16x256xf32>
    %41 = arith.cmpf ogt, %39, %40 : vector<16x256xf32>
    %42 = math.exp %39 : vector<16x256xf32>
    %cst_36 = arith.constant 1.000000e+00 : f32
    %43 = vector.broadcast %cst_36 : f32 to vector<16x256xf32>
    %44 = arith.subf %42, %43 : vector<16x256xf32>
    %cst_37 = arith.constant 1.67326319 : f32
    %45 = vector.broadcast %cst_37 : f32 to vector<16x256xf32>
    %46 = arith.mulf %45, %44 : vector<16x256xf32>
    %47 = arith.select %41, %39, %46 : vector<16x256xi1>, vector<16x256xf32>
    %cst_38 = arith.constant 1.05070102 : f32
    %48 = vector.broadcast %cst_38 : f32 to vector<16x256xf32>
    %49 = arith.mulf %48, %47 : vector<16x256xf32>
    %50 = arith.truncf %49 : vector<16x256xf32> to vector<16x256xbf16>
    %c0_39 = arith.constant 0 : index
    %c0_40 = arith.constant 0 : index
    %51 = vector.load %arg9[%c0_39, %c0_40] : memref<256x64xbf16, #tpu.memory_space<vmem>>, vector<256x64xbf16>
    %cst_41 = arith.constant dense<0.000000e+00> : vector<16x64xf32>
    %52 = tpu.matmul %50, %51, %cst_41 {dimension_numbers = #tpu.dot_dimension_numbers<[1], [0], [0], [1], [0, 0, 1, 1], [], []>} : vector<16x256xbf16>, vector<256x64xbf16>, vector<16x64xf32> -> vector<16x64xf32>
    %c0_42 = arith.constant 0 : index
    %c0_43 = arith.constant 0 : index
    %53 = vector.load %arg10[%c0_42, %c0_43] : memref<1x64xf32, #tpu.memory_space<vmem>>, vector<1x64xf32>
    %54 = vector.broadcast %53 : vector<1x64xf32> to vector<16x64xf32>
    %55 = arith.addf %52, %54 : vector<16x64xf32>
    %56 = vector.extract_strided_slice %5 {offsets = [0, 0, 0], sizes = [1, 16, 16], strides = [1, 1, 1]} : vector<4x16x16xf32> to vector<1x16x16xf32>
    %57 = vector.shape_cast %56 : vector<1x16x16xf32> to vector<16x16xf32>
    %58 = vector.shape_cast %57 : vector<16x16xf32> to vector<16x16x1xf32>
    %59 = vector.extract_strided_slice %55 {offsets = [0, 0], sizes = [16, 8], strides = [1, 1]} : vector<16x64xf32> to vector<16x8xf32>
    %60 = vector.shape_cast %59 : vector<16x8xf32> to vector<16x1x8xf32>
    %61 = vector.extract_strided_slice %55 {offsets = [0, 32], sizes = [16, 8], strides = [1, 1]} : vector<16x64xf32> to vector<16x8xf32>
    %62 = vector.shape_cast %61 : vector<16x8xf32> to vector<16x1x8xf32>
    %63 = vector.broadcast %58 : vector<16x16x1xf32> to vector<16x16x8xf32>
    %64 = vector.broadcast %60 : vector<16x1x8xf32> to vector<16x16x8xf32>
    %65 = arith.mulf %63, %64 : vector<16x16x8xf32>
    %66 = vector.broadcast %58 : vector<16x16x1xf32> to vector<16x16x8xf32>
    %67 = vector.broadcast %62 : vector<16x1x8xf32> to vector<16x16x8xf32>
    %68 = arith.mulf %66, %67 : vector<16x16x8xf32>
    %69 = vector.extract_strided_slice %5 {offsets = [1, 0, 0], sizes = [1, 16, 16], strides = [1, 1, 1]} : vector<4x16x16xf32> to vector<1x16x16xf32>
    %70 = vector.shape_cast %69 : vector<1x16x16xf32> to vector<16x16xf32>
    %71 = vector.shape_cast %70 : vector<16x16xf32> to vector<16x16x1xf32>
    %72 = vector.extract_strided_slice %55 {offsets = [0, 8], sizes = [16, 8], strides = [1, 1]} : vector<16x64xf32> to vector<16x8xf32>
    %73 = vector.shape_cast %72 : vector<16x8xf32> to vector<16x1x8xf32>
    %74 = vector.extract_strided_slice %55 {offsets = [0, 40], sizes = [16, 8], strides = [1, 1]} : vector<16x64xf32> to vector<16x8xf32>
    %75 = vector.shape_cast %74 : vector<16x8xf32> to vector<16x1x8xf32>
    %76 = vector.broadcast %71 : vector<16x16x1xf32> to vector<16x16x8xf32>
    %77 = vector.broadcast %73 : vector<16x1x8xf32> to vector<16x16x8xf32>
    %78 = arith.mulf %76, %77 : vector<16x16x8xf32>
    %79 = arith.addf %65, %78 : vector<16x16x8xf32>
    %80 = vector.broadcast %71 : vector<16x16x1xf32> to vector<16x16x8xf32>
    %81 = vector.broadcast %75 : vector<16x1x8xf32> to vector<16x16x8xf32>
    %82 = arith.mulf %80, %81 : vector<16x16x8xf32>
    %83 = arith.addf %68, %82 : vector<16x16x8xf32>
    %84 = vector.extract_strided_slice %5 {offsets = [2, 0, 0], sizes = [1, 16, 16], strides = [1, 1, 1]} : vector<4x16x16xf32> to vector<1x16x16xf32>
    %85 = vector.shape_cast %84 : vector<1x16x16xf32> to vector<16x16xf32>
    %86 = vector.shape_cast %85 : vector<16x16xf32> to vector<16x16x1xf32>
    %87 = vector.extract_strided_slice %55 {offsets = [0, 16], sizes = [16, 8], strides = [1, 1]} : vector<16x64xf32> to vector<16x8xf32>
    %88 = vector.shape_cast %87 : vector<16x8xf32> to vector<16x1x8xf32>
    %89 = vector.extract_strided_slice %55 {offsets = [0, 48], sizes = [16, 8], strides = [1, 1]} : vector<16x64xf32> to vector<16x8xf32>
    %90 = vector.shape_cast %89 : vector<16x8xf32> to vector<16x1x8xf32>
    %91 = vector.broadcast %86 : vector<16x16x1xf32> to vector<16x16x8xf32>
    %92 = vector.broadcast %88 : vector<16x1x8xf32> to vector<16x16x8xf32>
    %93 = arith.mulf %91, %92 : vector<16x16x8xf32>
    %94 = arith.addf %79, %93 : vector<16x16x8xf32>
    %95 = vector.broadcast %86 : vector<16x16x1xf32> to vector<16x16x8xf32>
    %96 = vector.broadcast %90 : vector<16x1x8xf32> to vector<16x16x8xf32>
    %97 = arith.mulf %95, %96 : vector<16x16x8xf32>
    %98 = arith.addf %83, %97 : vector<16x16x8xf32>
    %99 = vector.extract_strided_slice %5 {offsets = [3, 0, 0], sizes = [1, 16, 16], strides = [1, 1, 1]} : vector<4x16x16xf32> to vector<1x16x16xf32>
    %100 = vector.shape_cast %99 : vector<1x16x16xf32> to vector<16x16xf32>
    %101 = vector.shape_cast %100 : vector<16x16xf32> to vector<16x16x1xf32>
    %102 = vector.extract_strided_slice %55 {offsets = [0, 24], sizes = [16, 8], strides = [1, 1]} : vector<16x64xf32> to vector<16x8xf32>
    %103 = vector.shape_cast %102 : vector<16x8xf32> to vector<16x1x8xf32>
    %104 = vector.extract_strided_slice %55 {offsets = [0, 56], sizes = [16, 8], strides = [1, 1]} : vector<16x64xf32> to vector<16x8xf32>
    %105 = vector.shape_cast %104 : vector<16x8xf32> to vector<16x1x8xf32>
    %106 = vector.broadcast %101 : vector<16x16x1xf32> to vector<16x16x8xf32>
    %107 = vector.broadcast %103 : vector<16x1x8xf32> to vector<16x16x8xf32>
    %108 = arith.mulf %106, %107 : vector<16x16x8xf32>
    %109 = arith.addf %94, %108 : vector<16x16x8xf32>
    %110 = vector.broadcast %101 : vector<16x16x1xf32> to vector<16x16x8xf32>
    %111 = vector.broadcast %105 : vector<16x1x8xf32> to vector<16x16x8xf32>
    %112 = arith.mulf %110, %111 : vector<16x16x8xf32>
    %113 = arith.addf %98, %112 : vector<16x16x8xf32>
    %114 = vector.broadcast %17 : vector<16x16x1xf32> to vector<16x16x8xf32>
    %115 = arith.subf %113, %114 : vector<16x16x8xf32>
    %cst_44 = arith.constant dense<0xFF800000> : vector<16x8xf32>
    %116 = vector.multi_reduction <maximumf>, %115, %cst_44 [0] : vector<16x16x8xf32> to vector<16x8xf32>
    %117 = vector.shape_cast %116 : vector<16x8xf32> to vector<1x16x8xf32>
    %118 = vector.broadcast %117 : vector<1x16x8xf32> to vector<16x16x8xf32>
    %119 = arith.subf %115, %118 : vector<16x16x8xf32>
    %120 = math.exp %119 : vector<16x16x8xf32>
    %cst_45 = arith.constant dense<0.000000e+00> : vector<16x8xf32>
    %121 = vector.multi_reduction <add>, %120, %cst_45 [0] : vector<16x16x8xf32> to vector<16x8xf32>
    %122 = vector.shape_cast %121 : vector<16x8xf32> to vector<1x16x8xf32>
    %123 = tpu.reciprocal %122 {approx = true} : vector<1x16x8xf32> -> vector<1x16x8xf32>
    %124 = vector.broadcast %123 : vector<1x16x8xf32> to vector<16x16x8xf32>
    %125 = arith.mulf %120, %124 : vector<16x16x8xf32>
    %126 = arith.mulf %125, %109 : vector<16x16x8xf32>
    %cst_46 = arith.constant dense<0.000000e+00> : vector<16x8xf32>
    %127 = vector.multi_reduction <add>, %126, %cst_46 [0] : vector<16x16x8xf32> to vector<16x8xf32>
    %128 = arith.truncf %127 : vector<16x8xf32> to vector<16x8xbf16>
    %cst_47 = arith.constant dense<0.000000e+00> : vector<16x48xf32>
    %129 = tpu.matmul %128, %9, %cst_47 {dimension_numbers = #tpu.dot_dimension_numbers<[1], [0], [0], [1], [0, 0, 1, 1], [], []>} : vector<16x8xbf16>, vector<8x48xbf16>, vector<16x48xf32> -> vector<16x48xf32>
    %130 = vector.broadcast %11 : vector<1x48xf32> to vector<16x48xf32>
    %131 = arith.addf %129, %130 : vector<16x48xf32>
    %cst_48 = arith.constant dense<0.000000e+00> : vector<16x48xf32>
    %132 = tpu.matmul %18, %10, %cst_48 {dimension_numbers = #tpu.dot_dimension_numbers<[1], [0], [0], [1], [0, 0, 1, 1], [], []>} : vector<16x16xbf16>, vector<16x48xbf16>, vector<16x48xf32> -> vector<16x48xf32>
    %133 = vector.broadcast %12 : vector<1x48xf32> to vector<16x48xf32>
    %134 = arith.addf %132, %133 : vector<16x48xf32>
    %135 = vector.extract_strided_slice %131 {offsets = [0, 0], sizes = [16, 16], strides = [1, 1]} : vector<16x48xf32> to vector<16x16xf32>
    %136 = vector.extract_strided_slice %134 {offsets = [0, 0], sizes = [16, 16], strides = [1, 1]} : vector<16x48xf32> to vector<16x16xf32>
    %137 = arith.addf %135, %136 : vector<16x16xf32>
    %138 = arith.negf %137 : vector<16x16xf32>
    %139 = math.exp %138 : vector<16x16xf32>
    %cst_49 = arith.constant 1.000000e+00 : f32
    %140 = vector.broadcast %cst_49 : f32 to vector<16x16xf32>
    %141 = arith.addf %140, %139 : vector<16x16xf32>
    %142 = arith.divf %140, %141 : vector<16x16xf32>
    %143 = vector.extract_strided_slice %131 {offsets = [0, 16], sizes = [16, 16], strides = [1, 1]} : vector<16x48xf32> to vector<16x16xf32>
    %144 = vector.extract_strided_slice %134 {offsets = [0, 16], sizes = [16, 16], strides = [1, 1]} : vector<16x48xf32> to vector<16x16xf32>
    %145 = arith.addf %143, %144 : vector<16x16xf32>
    %146 = arith.negf %145 : vector<16x16xf32>
    %147 = math.exp %146 : vector<16x16xf32>
    %cst_50 = arith.constant 1.000000e+00 : f32
    %148 = vector.broadcast %cst_50 : f32 to vector<16x16xf32>
    %149 = arith.addf %148, %147 : vector<16x16xf32>
    %150 = arith.divf %148, %149 : vector<16x16xf32>
    %151 = vector.extract_strided_slice %131 {offsets = [0, 32], sizes = [16, 16], strides = [1, 1]} : vector<16x48xf32> to vector<16x16xf32>
    %152 = vector.extract_strided_slice %134 {offsets = [0, 32], sizes = [16, 16], strides = [1, 1]} : vector<16x48xf32> to vector<16x16xf32>
    %153 = arith.mulf %142, %152 : vector<16x16xf32>
    %154 = arith.addf %151, %153 : vector<16x16xf32>
    %155 = math.tanh %154 : vector<16x16xf32>
    %cst_51 = arith.constant 1.000000e+00 : f32
    %156 = vector.broadcast %cst_51 : f32 to vector<16x16xf32>
    %157 = arith.subf %156, %150 : vector<16x16xf32>
    %158 = arith.mulf %157, %155 : vector<16x16xf32>
    %159 = arith.mulf %150, %1 : vector<16x16xf32>
    %160 = arith.addf %158, %159 : vector<16x16xf32>
    %161 = arith.truncf %160 : vector<16x16xf32> to vector<16x16xbf16>
    %c0_52 = arith.constant 0 : index
    %c0_53 = arith.constant 0 : index
    %162 = vector.load %arg5[%c0_52, %c0_53] : memref<16x256xbf16, #tpu.memory_space<vmem>>, vector<16x256xbf16>
    %cst_54 = arith.constant dense<0.000000e+00> : vector<16x256xf32>
    %163 = tpu.matmul %161, %162, %cst_54 {dimension_numbers = #tpu.dot_dimension_numbers<[1], [0], [0], [1], [0, 0, 1, 1], [], []>} : vector<16x16xbf16>, vector<16x256xbf16>, vector<16x256xf32> -> vector<16x256xf32>
    %c0_55 = arith.constant 0 : index
    %c0_56 = arith.constant 0 : index
    %164 = vector.load %arg6[%c0_55, %c0_56] : memref<1x256xf32, #tpu.memory_space<vmem>>, vector<1x256xf32>
    %165 = vector.broadcast %164 : vector<1x256xf32> to vector<16x256xf32>
    %166 = arith.addf %163, %165 : vector<16x256xf32>
    %cst_57 = arith.constant 0.000000e+00 : f32
    %167 = vector.broadcast %cst_57 : f32 to vector<16x256xf32>
    %168 = arith.cmpf ogt, %166, %167 : vector<16x256xf32>
    %169 = math.exp %166 : vector<16x256xf32>
    %cst_58 = arith.constant 1.000000e+00 : f32
    %170 = vector.broadcast %cst_58 : f32 to vector<16x256xf32>
    %171 = arith.subf %169, %170 : vector<16x256xf32>
    %cst_59 = arith.constant 1.67326319 : f32
    %172 = vector.broadcast %cst_59 : f32 to vector<16x256xf32>
    %173 = arith.mulf %172, %171 : vector<16x256xf32>
    %174 = arith.select %168, %166, %173 : vector<16x256xi1>, vector<16x256xf32>
    %cst_60 = arith.constant 1.05070102 : f32
    %175 = vector.broadcast %cst_60 : f32 to vector<16x256xf32>
    %176 = arith.mulf %175, %174 : vector<16x256xf32>
    %177 = arith.truncf %176 : vector<16x256xf32> to vector<16x256xbf16>
    %c0_61 = arith.constant 0 : index
    %c0_62 = arith.constant 0 : index
    %178 = vector.load %arg7[%c0_61, %c0_62] : memref<256x256xbf16, #tpu.memory_space<vmem>>, vector<256x256xbf16>
    %cst_63 = arith.constant dense<0.000000e+00> : vector<16x256xf32>
    %179 = tpu.matmul %177, %178, %cst_63 {dimension_numbers = #tpu.dot_dimension_numbers<[1], [0], [0], [1], [0, 0, 1, 1], [], []>} : vector<16x256xbf16>, vector<256x256xbf16>, vector<16x256xf32> -> vector<16x256xf32>
    %c0_64 = arith.constant 0 : index
    %c0_65 = arith.constant 0 : index
    %180 = vector.load %arg8[%c0_64, %c0_65] : memref<1x256xf32, #tpu.memory_space<vmem>>, vector<1x256xf32>
    %181 = vector.broadcast %180 : vector<1x256xf32> to vector<16x256xf32>
    %182 = arith.addf %179, %181 : vector<16x256xf32>
    %cst_66 = arith.constant 0.000000e+00 : f32
    %183 = vector.broadcast %cst_66 : f32 to vector<16x256xf32>
    %184 = arith.cmpf ogt, %182, %183 : vector<16x256xf32>
    %185 = math.exp %182 : vector<16x256xf32>
    %cst_67 = arith.constant 1.000000e+00 : f32
    %186 = vector.broadcast %cst_67 : f32 to vector<16x256xf32>
    %187 = arith.subf %185, %186 : vector<16x256xf32>
    %cst_68 = arith.constant 1.67326319 : f32
    %188 = vector.broadcast %cst_68 : f32 to vector<16x256xf32>
    %189 = arith.mulf %188, %187 : vector<16x256xf32>
    %190 = arith.select %184, %182, %189 : vector<16x256xi1>, vector<16x256xf32>
    %cst_69 = arith.constant 1.05070102 : f32
    %191 = vector.broadcast %cst_69 : f32 to vector<16x256xf32>
    %192 = arith.mulf %191, %190 : vector<16x256xf32>
    %193 = arith.truncf %192 : vector<16x256xf32> to vector<16x256xbf16>
    %c0_70 = arith.constant 0 : index
    %c0_71 = arith.constant 0 : index
    %194 = vector.load %arg9[%c0_70, %c0_71] : memref<256x64xbf16, #tpu.memory_space<vmem>>, vector<256x64xbf16>
    %cst_72 = arith.constant dense<0.000000e+00> : vector<16x64xf32>
    %195 = tpu.matmul %193, %194, %cst_72 {dimension_numbers = #tpu.dot_dimension_numbers<[1], [0], [0], [1], [0, 0, 1, 1], [], []>} : vector<16x256xbf16>, vector<256x64xbf16>, vector<16x64xf32> -> vector<16x64xf32>
    %c0_73 = arith.constant 0 : index
    %c0_74 = arith.constant 0 : index
    %196 = vector.load %arg10[%c0_73, %c0_74] : memref<1x64xf32, #tpu.memory_space<vmem>>, vector<1x64xf32>
    %197 = vector.broadcast %196 : vector<1x64xf32> to vector<16x64xf32>
    %198 = arith.addf %195, %197 : vector<16x64xf32>
    %199 = vector.extract_strided_slice %5 {offsets = [0, 0, 0], sizes = [1, 16, 16], strides = [1, 1, 1]} : vector<4x16x16xf32> to vector<1x16x16xf32>
    %200 = vector.shape_cast %199 : vector<1x16x16xf32> to vector<16x16xf32>
    %201 = vector.shape_cast %200 : vector<16x16xf32> to vector<16x16x1xf32>
    %202 = vector.extract_strided_slice %198 {offsets = [0, 0], sizes = [16, 8], strides = [1, 1]} : vector<16x64xf32> to vector<16x8xf32>
    %203 = vector.shape_cast %202 : vector<16x8xf32> to vector<16x1x8xf32>
    %204 = vector.extract_strided_slice %198 {offsets = [0, 32], sizes = [16, 8], strides = [1, 1]} : vector<16x64xf32> to vector<16x8xf32>
    %205 = vector.shape_cast %204 : vector<16x8xf32> to vector<16x1x8xf32>
    %206 = vector.broadcast %201 : vector<16x16x1xf32> to vector<16x16x8xf32>
    %207 = vector.broadcast %203 : vector<16x1x8xf32> to vector<16x16x8xf32>
    %208 = arith.mulf %206, %207 : vector<16x16x8xf32>
    %209 = vector.broadcast %201 : vector<16x16x1xf32> to vector<16x16x8xf32>
    %210 = vector.broadcast %205 : vector<16x1x8xf32> to vector<16x16x8xf32>
    %211 = arith.mulf %209, %210 : vector<16x16x8xf32>
    %212 = vector.extract_strided_slice %5 {offsets = [1, 0, 0], sizes = [1, 16, 16], strides = [1, 1, 1]} : vector<4x16x16xf32> to vector<1x16x16xf32>
    %213 = vector.shape_cast %212 : vector<1x16x16xf32> to vector<16x16xf32>
    %214 = vector.shape_cast %213 : vector<16x16xf32> to vector<16x16x1xf32>
    %215 = vector.extract_strided_slice %198 {offsets = [0, 8], sizes = [16, 8], strides = [1, 1]} : vector<16x64xf32> to vector<16x8xf32>
    %216 = vector.shape_cast %215 : vector<16x8xf32> to vector<16x1x8xf32>
    %217 = vector.extract_strided_slice %198 {offsets = [0, 40], sizes = [16, 8], strides = [1, 1]} : vector<16x64xf32> to vector<16x8xf32>
    %218 = vector.shape_cast %217 : vector<16x8xf32> to vector<16x1x8xf32>
    %219 = vector.broadcast %214 : vector<16x16x1xf32> to vector<16x16x8xf32>
    %220 = vector.broadcast %216 : vector<16x1x8xf32> to vector<16x16x8xf32>
    %221 = arith.mulf %219, %220 : vector<16x16x8xf32>
    %222 = arith.addf %208, %221 : vector<16x16x8xf32>
    %223 = vector.broadcast %214 : vector<16x16x1xf32> to vector<16x16x8xf32>
    %224 = vector.broadcast %218 : vector<16x1x8xf32> to vector<16x16x8xf32>
    %225 = arith.mulf %223, %224 : vector<16x16x8xf32>
    %226 = arith.addf %211, %225 : vector<16x16x8xf32>
    %227 = vector.extract_strided_slice %5 {offsets = [2, 0, 0], sizes = [1, 16, 16], strides = [1, 1, 1]} : vector<4x16x16xf32> to vector<1x16x16xf32>
    %228 = vector.shape_cast %227 : vector<1x16x16xf32> to vector<16x16xf32>
    %229 = vector.shape_cast %228 : vector<16x16xf32> to vector<16x16x1xf32>
    %230 = vector.extract_strided_slice %198 {offsets = [0, 16], sizes = [16, 8], strides = [1, 1]} : vector<16x64xf32> to vector<16x8xf32>
    %231 = vector.shape_cast %230 : vector<16x8xf32> to vector<16x1x8xf32>
    %232 = vector.extract_strided_slice %198 {offsets = [0, 48], sizes = [16, 8], strides = [1, 1]} : vector<16x64xf32> to vector<16x8xf32>
    %233 = vector.shape_cast %232 : vector<16x8xf32> to vector<16x1x8xf32>
    %234 = vector.broadcast %229 : vector<16x16x1xf32> to vector<16x16x8xf32>
    %235 = vector.broadcast %231 : vector<16x1x8xf32> to vector<16x16x8xf32>
    %236 = arith.mulf %234, %235 : vector<16x16x8xf32>
    %237 = arith.addf %222, %236 : vector<16x16x8xf32>
    %238 = vector.broadcast %229 : vector<16x16x1xf32> to vector<16x16x8xf32>
    %239 = vector.broadcast %233 : vector<16x1x8xf32> to vector<16x16x8xf32>
    %240 = arith.mulf %238, %239 : vector<16x16x8xf32>
    %241 = arith.addf %226, %240 : vector<16x16x8xf32>
    %242 = vector.extract_strided_slice %5 {offsets = [3, 0, 0], sizes = [1, 16, 16], strides = [1, 1, 1]} : vector<4x16x16xf32> to vector<1x16x16xf32>
    %243 = vector.shape_cast %242 : vector<1x16x16xf32> to vector<16x16xf32>
    %244 = vector.shape_cast %243 : vector<16x16xf32> to vector<16x16x1xf32>
    %245 = vector.extract_strided_slice %198 {offsets = [0, 24], sizes = [16, 8], strides = [1, 1]} : vector<16x64xf32> to vector<16x8xf32>
    %246 = vector.shape_cast %245 : vector<16x8xf32> to vector<16x1x8xf32>
    %247 = vector.extract_strided_slice %198 {offsets = [0, 56], sizes = [16, 8], strides = [1, 1]} : vector<16x64xf32> to vector<16x8xf32>
    %248 = vector.shape_cast %247 : vector<16x8xf32> to vector<16x1x8xf32>
    %249 = vector.broadcast %244 : vector<16x16x1xf32> to vector<16x16x8xf32>
    %250 = vector.broadcast %246 : vector<16x1x8xf32> to vector<16x16x8xf32>
    %251 = arith.mulf %249, %250 : vector<16x16x8xf32>
    %252 = arith.addf %237, %251 : vector<16x16x8xf32>
    %253 = vector.broadcast %244 : vector<16x16x1xf32> to vector<16x16x8xf32>
    %254 = vector.broadcast %248 : vector<16x1x8xf32> to vector<16x16x8xf32>
    %255 = arith.mulf %253, %254 : vector<16x16x8xf32>
    %256 = arith.addf %241, %255 : vector<16x16x8xf32>
    %257 = vector.broadcast %17 : vector<16x16x1xf32> to vector<16x16x8xf32>
    %258 = arith.subf %256, %257 : vector<16x16x8xf32>
    %cst_75 = arith.constant dense<0xFF800000> : vector<16x8xf32>
    %259 = vector.multi_reduction <maximumf>, %258, %cst_75 [0] : vector<16x16x8xf32> to vector<16x8xf32>
    %260 = vector.shape_cast %259 : vector<16x8xf32> to vector<1x16x8xf32>
    %261 = vector.broadcast %260 : vector<1x16x8xf32> to vector<16x16x8xf32>
    %262 = arith.subf %258, %261 : vector<16x16x8xf32>
    %263 = math.exp %262 : vector<16x16x8xf32>
    %cst_76 = arith.constant dense<0.000000e+00> : vector<16x8xf32>
    %264 = vector.multi_reduction <add>, %263, %cst_76 [0] : vector<16x16x8xf32> to vector<16x8xf32>
    %265 = vector.shape_cast %264 : vector<16x8xf32> to vector<1x16x8xf32>
    %266 = tpu.reciprocal %265 {approx = true} : vector<1x16x8xf32> -> vector<1x16x8xf32>
    %267 = vector.broadcast %266 : vector<1x16x8xf32> to vector<16x16x8xf32>
    %268 = arith.mulf %263, %267 : vector<16x16x8xf32>
    %269 = arith.mulf %268, %252 : vector<16x16x8xf32>
    %cst_77 = arith.constant dense<0.000000e+00> : vector<16x8xf32>
    %270 = vector.multi_reduction <add>, %269, %cst_77 [0] : vector<16x16x8xf32> to vector<16x8xf32>
    %271 = arith.truncf %270 : vector<16x8xf32> to vector<16x8xbf16>
    %cst_78 = arith.constant dense<0.000000e+00> : vector<16x48xf32>
    %272 = tpu.matmul %271, %9, %cst_78 {dimension_numbers = #tpu.dot_dimension_numbers<[1], [0], [0], [1], [0, 0, 1, 1], [], []>} : vector<16x8xbf16>, vector<8x48xbf16>, vector<16x48xf32> -> vector<16x48xf32>
    %273 = vector.broadcast %11 : vector<1x48xf32> to vector<16x48xf32>
    %274 = arith.addf %272, %273 : vector<16x48xf32>
    %cst_79 = arith.constant dense<0.000000e+00> : vector<16x48xf32>
    %275 = tpu.matmul %161, %10, %cst_79 {dimension_numbers = #tpu.dot_dimension_numbers<[1], [0], [0], [1], [0, 0, 1, 1], [], []>} : vector<16x16xbf16>, vector<16x48xbf16>, vector<16x48xf32> -> vector<16x48xf32>
    %276 = vector.broadcast %12 : vector<1x48xf32> to vector<16x48xf32>
    %277 = arith.addf %275, %276 : vector<16x48xf32>
    %278 = vector.extract_strided_slice %274 {offsets = [0, 0], sizes = [16, 16], strides = [1, 1]} : vector<16x48xf32> to vector<16x16xf32>
    %279 = vector.extract_strided_slice %277 {offsets = [0, 0], sizes = [16, 16], strides = [1, 1]} : vector<16x48xf32> to vector<16x16xf32>
    %280 = arith.addf %278, %279 : vector<16x16xf32>
    %281 = arith.negf %280 : vector<16x16xf32>
    %282 = math.exp %281 : vector<16x16xf32>
    %cst_80 = arith.constant 1.000000e+00 : f32
    %283 = vector.broadcast %cst_80 : f32 to vector<16x16xf32>
    %284 = arith.addf %283, %282 : vector<16x16xf32>
    %285 = arith.divf %283, %284 : vector<16x16xf32>
    %286 = vector.extract_strided_slice %274 {offsets = [0, 16], sizes = [16, 16], strides = [1, 1]} : vector<16x48xf32> to vector<16x16xf32>
    %287 = vector.extract_strided_slice %277 {offsets = [0, 16], sizes = [16, 16], strides = [1, 1]} : vector<16x48xf32> to vector<16x16xf32>
    %288 = arith.addf %286, %287 : vector<16x16xf32>
    %289 = arith.negf %288 : vector<16x16xf32>
    %290 = math.exp %289 : vector<16x16xf32>
    %cst_81 = arith.constant 1.000000e+00 : f32
    %291 = vector.broadcast %cst_81 : f32 to vector<16x16xf32>
    %292 = arith.addf %291, %290 : vector<16x16xf32>
    %293 = arith.divf %291, %292 : vector<16x16xf32>
    %294 = vector.extract_strided_slice %274 {offsets = [0, 32], sizes = [16, 16], strides = [1, 1]} : vector<16x48xf32> to vector<16x16xf32>
    %295 = vector.extract_strided_slice %277 {offsets = [0, 32], sizes = [16, 16], strides = [1, 1]} : vector<16x48xf32> to vector<16x16xf32>
    %296 = arith.mulf %285, %295 : vector<16x16xf32>
    %297 = arith.addf %294, %296 : vector<16x16xf32>
    %298 = math.tanh %297 : vector<16x16xf32>
    %cst_82 = arith.constant 1.000000e+00 : f32
    %299 = vector.broadcast %cst_82 : f32 to vector<16x16xf32>
    %300 = arith.subf %299, %293 : vector<16x16xf32>
    %301 = arith.mulf %300, %298 : vector<16x16xf32>
    %302 = arith.mulf %293, %160 : vector<16x16xf32>
    %303 = arith.addf %301, %302 : vector<16x16xf32>
    %304 = arith.truncf %303 : vector<16x16xf32> to vector<16x16xbf16>
    %305 = arith.truncf %1 : vector<16x16xf32> to vector<16x16xbf16>
    %c0_83 = arith.constant 0 : index
    %c0_84 = arith.constant 0 : index
    %306 = vector.load %arg15[%c0_83, %c0_84] : memref<16x32xbf16, #tpu.memory_space<vmem>>, vector<16x32xbf16>
    %cst_85 = arith.constant dense<0.000000e+00> : vector<16x32xf32>
    %307 = tpu.matmul %304, %306, %cst_85 {dimension_numbers = #tpu.dot_dimension_numbers<[1], [0], [0], [1], [0, 0, 1, 1], [], []>} : vector<16x16xbf16>, vector<16x32xbf16>, vector<16x32xf32> -> vector<16x32xf32>
    %c0_86 = arith.constant 0 : index
    %c0_87 = arith.constant 0 : index
    %308 = vector.load %arg16[%c0_86, %c0_87] : memref<16x32xbf16, #tpu.memory_space<vmem>>, vector<16x32xbf16>
    %cst_88 = arith.constant dense<0.000000e+00> : vector<16x32xf32>
    %309 = tpu.matmul %305, %308, %cst_88 {dimension_numbers = #tpu.dot_dimension_numbers<[1], [0], [0], [1], [0, 0, 1, 1], [], []>} : vector<16x16xbf16>, vector<16x32xbf16>, vector<16x32xf32> -> vector<16x32xf32>
    %310 = arith.addf %307, %309 : vector<16x32xf32>
    %c0_89 = arith.constant 0 : index
    %c0_90 = arith.constant 0 : index
    %311 = vector.load %arg17[%c0_89, %c0_90] : memref<1x32xf32, #tpu.memory_space<vmem>>, vector<1x32xf32>
    %312 = vector.broadcast %311 : vector<1x32xf32> to vector<16x32xf32>
    %313 = arith.addf %310, %312 : vector<16x32xf32>
    %cst_91 = arith.constant 0.000000e+00 : f32
    %314 = vector.broadcast %cst_91 : f32 to vector<16x32xf32>
    %315 = arith.cmpf ogt, %313, %314 : vector<16x32xf32>
    %316 = math.exp %313 : vector<16x32xf32>
    %cst_92 = arith.constant 1.000000e+00 : f32
    %317 = vector.broadcast %cst_92 : f32 to vector<16x32xf32>
    %318 = arith.subf %316, %317 : vector<16x32xf32>
    %cst_93 = arith.constant 1.67326319 : f32
    %319 = vector.broadcast %cst_93 : f32 to vector<16x32xf32>
    %320 = arith.mulf %319, %318 : vector<16x32xf32>
    %321 = arith.select %315, %313, %320 : vector<16x32xi1>, vector<16x32xf32>
    %cst_94 = arith.constant 1.05070102 : f32
    %322 = vector.broadcast %cst_94 : f32 to vector<16x32xf32>
    %323 = arith.mulf %322, %321 : vector<16x32xf32>
    %324 = arith.truncf %323 : vector<16x32xf32> to vector<16x32xbf16>
    %c0_95 = arith.constant 0 : index
    %c0_96 = arith.constant 0 : index
    %325 = vector.load %arg18[%c0_95, %c0_96] : memref<32x32xbf16, #tpu.memory_space<vmem>>, vector<32x32xbf16>
    %cst_97 = arith.constant dense<0.000000e+00> : vector<16x32xf32>
    %326 = tpu.matmul %324, %325, %cst_97 {dimension_numbers = #tpu.dot_dimension_numbers<[1], [0], [0], [1], [0, 0, 1, 1], [], []>} : vector<16x32xbf16>, vector<32x32xbf16>, vector<16x32xf32> -> vector<16x32xf32>
    %c0_98 = arith.constant 0 : index
    %c0_99 = arith.constant 0 : index
    %327 = vector.load %arg19[%c0_98, %c0_99] : memref<1x32xf32, #tpu.memory_space<vmem>>, vector<1x32xf32>
    %328 = vector.broadcast %327 : vector<1x32xf32> to vector<16x32xf32>
    %329 = arith.addf %326, %328 : vector<16x32xf32>
    %cst_100 = arith.constant 0.000000e+00 : f32
    %330 = vector.broadcast %cst_100 : f32 to vector<16x32xf32>
    %331 = arith.cmpf ogt, %329, %330 : vector<16x32xf32>
    %332 = math.exp %329 : vector<16x32xf32>
    %cst_101 = arith.constant 1.000000e+00 : f32
    %333 = vector.broadcast %cst_101 : f32 to vector<16x32xf32>
    %334 = arith.subf %332, %333 : vector<16x32xf32>
    %cst_102 = arith.constant 1.67326319 : f32
    %335 = vector.broadcast %cst_102 : f32 to vector<16x32xf32>
    %336 = arith.mulf %335, %334 : vector<16x32xf32>
    %337 = arith.select %331, %329, %336 : vector<16x32xi1>, vector<16x32xf32>
    %cst_103 = arith.constant 1.05070102 : f32
    %338 = vector.broadcast %cst_103 : f32 to vector<16x32xf32>
    %339 = arith.mulf %338, %337 : vector<16x32xf32>
    %340 = arith.truncf %339 : vector<16x32xf32> to vector<16x32xbf16>
    %c0_104 = arith.constant 0 : index
    %c0_105 = arith.constant 0 : index
    %341 = vector.load %arg20[%c0_104, %c0_105] : memref<32x16xbf16, #tpu.memory_space<vmem>>, vector<32x16xbf16>
    %cst_106 = arith.constant dense<0.000000e+00> : vector<16x16xf32>
    %342 = tpu.matmul %340, %341, %cst_106 {dimension_numbers = #tpu.dot_dimension_numbers<[1], [0], [0], [1], [0, 0, 1, 1], [], []>} : vector<16x32xbf16>, vector<32x16xbf16>, vector<16x16xf32> -> vector<16x16xf32>
    %c0_107 = arith.constant 0 : index
    %c0_108 = arith.constant 0 : index
    %343 = vector.load %arg21[%c0_107, %c0_108] : memref<1x16xf32, #tpu.memory_space<vmem>>, vector<1x16xf32>
    %344 = vector.broadcast %343 : vector<1x16xf32> to vector<16x16xf32>
    %345 = arith.addf %342, %344 : vector<16x16xf32>
    %c0_109 = arith.constant 0 : index
    %c0_110 = arith.constant 0 : index
    %346 = vector.load %arg22[%c0_109, %c0_110] : memref<16x32xbf16, #tpu.memory_space<vmem>>, vector<16x32xbf16>
    %cst_111 = arith.constant dense<0.000000e+00> : vector<16x32xf32>
    %347 = tpu.matmul %304, %346, %cst_111 {dimension_numbers = #tpu.dot_dimension_numbers<[1], [0], [0], [1], [0, 0, 1, 1], [], []>} : vector<16x16xbf16>, vector<16x32xbf16>, vector<16x32xf32> -> vector<16x32xf32>
    %c0_112 = arith.constant 0 : index
    %c0_113 = arith.constant 0 : index
    %348 = vector.load %arg23[%c0_112, %c0_113] : memref<1x32xf32, #tpu.memory_space<vmem>>, vector<1x32xf32>
    %349 = vector.broadcast %348 : vector<1x32xf32> to vector<16x32xf32>
    %350 = arith.addf %347, %349 : vector<16x32xf32>
    %cst_114 = arith.constant 0.000000e+00 : f32
    %351 = vector.broadcast %cst_114 : f32 to vector<16x32xf32>
    %352 = arith.cmpf ogt, %350, %351 : vector<16x32xf32>
    %353 = math.exp %350 : vector<16x32xf32>
    %cst_115 = arith.constant 1.000000e+00 : f32
    %354 = vector.broadcast %cst_115 : f32 to vector<16x32xf32>
    %355 = arith.subf %353, %354 : vector<16x32xf32>
    %cst_116 = arith.constant 1.67326319 : f32
    %356 = vector.broadcast %cst_116 : f32 to vector<16x32xf32>
    %357 = arith.mulf %356, %355 : vector<16x32xf32>
    %358 = arith.select %352, %350, %357 : vector<16x32xi1>, vector<16x32xf32>
    %cst_117 = arith.constant 1.05070102 : f32
    %359 = vector.broadcast %cst_117 : f32 to vector<16x32xf32>
    %360 = arith.mulf %359, %358 : vector<16x32xf32>
    %361 = arith.truncf %360 : vector<16x32xf32> to vector<16x32xbf16>
    %c0_118 = arith.constant 0 : index
    %c0_119 = arith.constant 0 : index
    %362 = vector.load %arg24[%c0_118, %c0_119] : memref<32x32xbf16, #tpu.memory_space<vmem>>, vector<32x32xbf16>
    %cst_120 = arith.constant dense<0.000000e+00> : vector<16x32xf32>
    %363 = tpu.matmul %361, %362, %cst_120 {dimension_numbers = #tpu.dot_dimension_numbers<[1], [0], [0], [1], [0, 0, 1, 1], [], []>} : vector<16x32xbf16>, vector<32x32xbf16>, vector<16x32xf32> -> vector<16x32xf32>
    %c0_121 = arith.constant 0 : index
    %c0_122 = arith.constant 0 : index
    %364 = vector.load %arg25[%c0_121, %c0_122] : memref<1x32xf32, #tpu.memory_space<vmem>>, vector<1x32xf32>
    %365 = vector.broadcast %364 : vector<1x32xf32> to vector<16x32xf32>
    %366 = arith.addf %363, %365 : vector<16x32xf32>
    %cst_123 = arith.constant 0.000000e+00 : f32
    %367 = vector.broadcast %cst_123 : f32 to vector<16x32xf32>
    %368 = arith.cmpf ogt, %366, %367 : vector<16x32xf32>
    %369 = math.exp %366 : vector<16x32xf32>
    %cst_124 = arith.constant 1.000000e+00 : f32
    %370 = vector.broadcast %cst_124 : f32 to vector<16x32xf32>
    %371 = arith.subf %369, %370 : vector<16x32xf32>
    %cst_125 = arith.constant 1.67326319 : f32
    %372 = vector.broadcast %cst_125 : f32 to vector<16x32xf32>
    %373 = arith.mulf %372, %371 : vector<16x32xf32>
    %374 = arith.select %368, %366, %373 : vector<16x32xi1>, vector<16x32xf32>
    %cst_126 = arith.constant 1.05070102 : f32
    %375 = vector.broadcast %cst_126 : f32 to vector<16x32xf32>
    %376 = arith.mulf %375, %374 : vector<16x32xf32>
    %377 = arith.truncf %376 : vector<16x32xf32> to vector<16x32xbf16>
    %c0_127 = arith.constant 0 : index
    %c0_128 = arith.constant 0 : index
    %378 = vector.load %arg26[%c0_127, %c0_128] : memref<32x16xbf16, #tpu.memory_space<vmem>>, vector<32x16xbf16>
    %cst_129 = arith.constant dense<0.000000e+00> : vector<16x16xf32>
    %379 = tpu.matmul %377, %378, %cst_129 {dimension_numbers = #tpu.dot_dimension_numbers<[1], [0], [0], [1], [0, 0, 1, 1], [], []>} : vector<16x32xbf16>, vector<32x16xbf16>, vector<16x16xf32> -> vector<16x16xf32>
    %c0_130 = arith.constant 0 : index
    %c0_131 = arith.constant 0 : index
    %380 = vector.load %arg27[%c0_130, %c0_131] : memref<1x16xf32, #tpu.memory_space<vmem>>, vector<1x16xf32>
    %381 = vector.broadcast %380 : vector<1x16xf32> to vector<16x16xf32>
    %382 = arith.addf %379, %381 : vector<16x16xf32>
    %383 = arith.negf %345 : vector<16x16xf32>
    %384 = math.exp %383 : vector<16x16xf32>
    %cst_132 = arith.constant 1.000000e+00 : f32
    %385 = vector.broadcast %cst_132 : f32 to vector<16x16xf32>
    %386 = arith.addf %385, %384 : vector<16x16xf32>
    %387 = arith.divf %385, %386 : vector<16x16xf32>
    %388 = arith.mulf %387, %382 : vector<16x16xf32>
    %389 = arith.truncf %388 : vector<16x16xf32> to vector<16x16xbf16>
    %cst_133 = arith.constant dense<0.000000e+00> : vector<2x16xf32>
    %390 = tpu.matmul %8, %389, %cst_133 {dimension_numbers = #tpu.dot_dimension_numbers<[1], [0], [0], [1], [0, 0, 1, 1], [], []>} : vector<2x16xbf16>, vector<16x16xbf16>, vector<2x16xf32> -> vector<2x16xf32>
    %391 = arith.truncf %390 : vector<2x16xf32> to vector<2x16xbf16>
    %c0_134 = arith.constant 0 : index
    %c0_135 = arith.constant 0 : index
    %392 = vector.load %arg28[%c0_134, %c0_135] : memref<16x32xbf16, #tpu.memory_space<vmem>>, vector<16x32xbf16>
    %cst_136 = arith.constant dense<0.000000e+00> : vector<2x32xf32>
    %393 = tpu.matmul %391, %392, %cst_136 {dimension_numbers = #tpu.dot_dimension_numbers<[1], [0], [0], [1], [0, 0, 1, 1], [], []>} : vector<2x16xbf16>, vector<16x32xbf16>, vector<2x32xf32> -> vector<2x32xf32>
    %c0_137 = arith.constant 0 : index
    %c0_138 = arith.constant 0 : index
    %394 = vector.load %arg29[%c0_137, %c0_138] : memref<1x32xf32, #tpu.memory_space<vmem>>, vector<1x32xf32>
    %395 = vector.broadcast %394 : vector<1x32xf32> to vector<2x32xf32>
    %396 = arith.addf %393, %395 : vector<2x32xf32>
    %cst_139 = arith.constant 0.000000e+00 : f32
    %397 = vector.broadcast %cst_139 : f32 to vector<2x32xf32>
    %398 = arith.cmpf ogt, %396, %397 : vector<2x32xf32>
    %399 = math.exp %396 : vector<2x32xf32>
    %cst_140 = arith.constant 1.000000e+00 : f32
    %400 = vector.broadcast %cst_140 : f32 to vector<2x32xf32>
    %401 = arith.subf %399, %400 : vector<2x32xf32>
    %cst_141 = arith.constant 1.67326319 : f32
    %402 = vector.broadcast %cst_141 : f32 to vector<2x32xf32>
    %403 = arith.mulf %402, %401 : vector<2x32xf32>
    %404 = arith.select %398, %396, %403 : vector<2x32xi1>, vector<2x32xf32>
    %cst_142 = arith.constant 1.05070102 : f32
    %405 = vector.broadcast %cst_142 : f32 to vector<2x32xf32>
    %406 = arith.mulf %405, %404 : vector<2x32xf32>
    %407 = arith.truncf %406 : vector<2x32xf32> to vector<2x32xbf16>
    %c0_143 = arith.constant 0 : index
    %c0_144 = arith.constant 0 : index
    %408 = vector.load %arg30[%c0_143, %c0_144] : memref<32x32xbf16, #tpu.memory_space<vmem>>, vector<32x32xbf16>
    %cst_145 = arith.constant dense<0.000000e+00> : vector<2x32xf32>
    %409 = tpu.matmul %407, %408, %cst_145 {dimension_numbers = #tpu.dot_dimension_numbers<[1], [0], [0], [1], [0, 0, 1, 1], [], []>} : vector<2x32xbf16>, vector<32x32xbf16>, vector<2x32xf32> -> vector<2x32xf32>
    %c0_146 = arith.constant 0 : index
    %c0_147 = arith.constant 0 : index
    %410 = vector.load %arg31[%c0_146, %c0_147] : memref<1x32xf32, #tpu.memory_space<vmem>>, vector<1x32xf32>
    %411 = vector.broadcast %410 : vector<1x32xf32> to vector<2x32xf32>
    %412 = arith.addf %409, %411 : vector<2x32xf32>
    %cst_148 = arith.constant 0.000000e+00 : f32
    %413 = vector.broadcast %cst_148 : f32 to vector<2x32xf32>
    %414 = arith.cmpf ogt, %412, %413 : vector<2x32xf32>
    %415 = math.exp %412 : vector<2x32xf32>
    %cst_149 = arith.constant 1.000000e+00 : f32
    %416 = vector.broadcast %cst_149 : f32 to vector<2x32xf32>
    %417 = arith.subf %415, %416 : vector<2x32xf32>
    %cst_150 = arith.constant 1.67326319 : f32
    %418 = vector.broadcast %cst_150 : f32 to vector<2x32xf32>
    %419 = arith.mulf %418, %417 : vector<2x32xf32>
    %420 = arith.select %414, %412, %419 : vector<2x32xi1>, vector<2x32xf32>
    %cst_151 = arith.constant 1.05070102 : f32
    %421 = vector.broadcast %cst_151 : f32 to vector<2x32xf32>
    %422 = arith.mulf %421, %420 : vector<2x32xf32>
    %423 = arith.truncf %422 : vector<2x32xf32> to vector<2x32xbf16>
    %c0_152 = arith.constant 0 : index
    %c0_153 = arith.constant 0 : index
    %424 = vector.load %arg32[%c0_152, %c0_153] : memref<32x1xbf16, #tpu.memory_space<vmem>>, vector<32x1xbf16>
    %cst_154 = arith.constant dense<0.000000e+00> : vector<2x1xf32>
    %425 = tpu.matmul %423, %424, %cst_154 {dimension_numbers = #tpu.dot_dimension_numbers<[1], [0], [0], [1], [0, 0, 1, 1], [], []>} : vector<2x32xbf16>, vector<32x1xbf16>, vector<2x1xf32> -> vector<2x1xf32>
    %c0_155 = arith.constant 0 : index
    %c0_156 = arith.constant 0 : index
    %426 = vector.load %arg33[%c0_155, %c0_156] : memref<1x1xf32, #tpu.memory_space<vmem>>, vector<1x1xf32>
    %427 = vector.broadcast %426 : vector<1x1xf32> to vector<2x1xf32>
    %428 = arith.addf %425, %427 : vector<2x1xf32>
    %c0_157 = arith.constant 0 : index
    %c0_158 = arith.constant 0 : index
    %c0_159 = arith.constant 0 : index
    %429 = vector.load %arg34[%c0_157, %c0_158, %c0_159] : memref<1x2x1xf32, #tpu.memory_space<vmem>>, vector<1x2x1xf32>
    %430 = vector.shape_cast %429 : vector<1x2x1xf32> to vector<2x1xf32>
    %431 = vector.shape_cast %428 : vector<2x1xf32> to vector<1x2x1xf32>
    tpu.vector_store %arg34[%c0_157, %c0_158, %c0_159], %431 {strides = array<i32>} : memref<1x2x1xf32, #tpu.memory_space<vmem>>, vector<1x2x1xf32>,
    return
  }
  func.func @transform_0(%arg0: i32) -> (i32, i32, i32) {
    %c0_i32 = arith.constant 0 : i32
    %c0_i32_0 = arith.constant 0 : i32
    %c0_i32_1 = arith.constant 0 : i32
    return %arg0, %c0_i32, %c0_i32_0 : i32, i32, i32
  }
  func.func @transform_1(%arg0: i32) -> (i32, i32, i32) {
    %c0_i32 = arith.constant 0 : i32
    %c0_i32_0 = arith.constant 0 : i32
    %c0_i32_1 = arith.constant 0 : i32
    return %arg0, %c0_i32, %c0_i32_0 : i32, i32, i32
  }
  func.func @transform_2(%arg0: i32) -> (i32, i32, i32, i32) {
    %c0_i32 = arith.constant 0 : i32
    %c0_i32_0 = arith.constant 0 : i32
    %c0_i32_1 = arith.constant 0 : i32
    %c0_i32_2 = arith.constant 0 : i32
    return %arg0, %c0_i32, %c0_i32_0, %c0_i32_1 : i32, i32, i32, i32
  }
  func.func @transform_3(%arg0: i32) -> (i32, i32, i32) {
    %c0_i32 = arith.constant 0 : i32
    %c0_i32_0 = arith.constant 0 : i32
    %c0_i32_1 = arith.constant 0 : i32
    return %arg0, %c0_i32, %c0_i32_0 : i32, i32, i32
  }
  func.func @transform_4(%arg0: i32) -> (i32, i32) {
    %c0_i32 = arith.constant 0 : i32
    %c0_i32_0 = arith.constant 0 : i32
    %c0_i32_1 = arith.constant 0 : i32
    return %c0_i32, %c0_i32_0 : i32, i32
  }
  func.func @transform_5(%arg0: i32) -> (i32, i32) {
    %c0_i32 = arith.constant 0 : i32
    %c0_i32_0 = arith.constant 0 : i32
    %c0_i32_1 = arith.constant 0 : i32
    return %c0_i32, %c0_i32_0 : i32, i32
  }
  func.func @transform_6(%arg0: i32) -> (i32, i32) {
    %c0_i32 = arith.constant 0 : i32
    %c0_i32_0 = arith.constant 0 : i32
    %c0_i32_1 = arith.constant 0 : i32
    return %c0_i32, %c0_i32_0 : i32, i32
  }
  func.func @transform_7(%arg0: i32) -> (i32, i32) {
    %c0_i32 = arith.constant 0 : i32
    %c0_i32_0 = arith.constant 0 : i32
    %c0_i32_1 = arith.constant 0 : i32
    return %c0_i32, %c0_i32_0 : i32, i32
  }
  func.func @transform_8(%arg0: i32) -> (i32, i32) {
    %c0_i32 = arith.constant 0 : i32
    %c0_i32_0 = arith.constant 0 : i32
    %c0_i32_1 = arith.constant 0 : i32
    return %c0_i32, %c0_i32_0 : i32, i32
  }
  func.func @transform_9(%arg0: i32) -> (i32, i32) {
    %c0_i32 = arith.constant 0 : i32
    %c0_i32_0 = arith.constant 0 : i32
    %c0_i32_1 = arith.constant 0 : i32
    return %c0_i32, %c0_i32_0 : i32, i32
  }
  func.func @transform_10(%arg0: i32) -> (i32, i32) {
    %c0_i32 = arith.constant 0 : i32
    %c0_i32_0 = arith.constant 0 : i32
    %c0_i32_1 = arith.constant 0 : i32
    return %c0_i32, %c0_i32_0 : i32, i32
  }
  func.func @transform_11(%arg0: i32) -> (i32, i32) {
    %c0_i32 = arith.constant 0 : i32
    %c0_i32_0 = arith.constant 0 : i32
    %c0_i32_1 = arith.constant 0 : i32
    return %c0_i32, %c0_i32_0 : i32, i32
  }
  func.func @transform_12(%arg0: i32) -> (i32, i32) {
    %c0_i32 = arith.constant 0 : i32
    %c0_i32_0 = arith.constant 0 : i32
    %c0_i32_1 = arith.constant 0 : i32
    return %c0_i32, %c0_i32_0 : i32, i32
  }
  func.func @transform_13(%arg0: i32) -> (i32, i32) {
    %c0_i32 = arith.constant 0 : i32
    %c0_i32_0 = arith.constant 0 : i32
    %c0_i32_1 = arith.constant 0 : i32
    return %c0_i32, %c0_i32_0 : i32, i32
  }
  func.func @transform_14(%arg0: i32) -> (i32, i32) {
    %c0_i32 = arith.constant 0 : i32
    %c0_i32_0 = arith.constant 0 : i32
    %c0_i32_1 = arith.constant 0 : i32
    return %c0_i32, %c0_i32_0 : i32, i32
  }
  func.func @transform_15(%arg0: i32) -> (i32, i32) {
    %c0_i32 = arith.constant 0 : i32
    %c0_i32_0 = arith.constant 0 : i32
    %c0_i32_1 = arith.constant 0 : i32
    return %c0_i32, %c0_i32_0 : i32, i32
  }
  func.func @transform_16(%arg0: i32) -> (i32, i32) {
    %c0_i32 = arith.constant 0 : i32
    %c0_i32_0 = arith.constant 0 : i32
    %c0_i32_1 = arith.constant 0 : i32
    return %c0_i32, %c0_i32_0 : i32, i32
  }
  func.func @transform_17(%arg0: i32) -> (i32, i32) {
    %c0_i32 = arith.constant 0 : i32
    %c0_i32_0 = arith.constant 0 : i32
    %c0_i32_1 = arith.constant 0 : i32
    return %c0_i32, %c0_i32_0 : i32, i32
  }
  func.func @transform_18(%arg0: i32) -> (i32, i32) {
    %c0_i32 = arith.constant 0 : i32
    %c0_i32_0 = arith.constant 0 : i32
    %c0_i32_1 = arith.constant 0 : i32
    return %c0_i32, %c0_i32_0 : i32, i32
  }
  func.func @transform_19(%arg0: i32) -> (i32, i32) {
    %c0_i32 = arith.constant 0 : i32
    %c0_i32_0 = arith.constant 0 : i32
    %c0_i32_1 = arith.constant 0 : i32
    return %c0_i32, %c0_i32_0 : i32, i32
  }
  func.func @transform_20(%arg0: i32) -> (i32, i32) {
    %c0_i32 = arith.constant 0 : i32
    %c0_i32_0 = arith.constant 0 : i32
    %c0_i32_1 = arith.constant 0 : i32
    return %c0_i32, %c0_i32_0 : i32, i32
  }
  func.func @transform_21(%arg0: i32) -> (i32, i32) {
    %c0_i32 = arith.constant 0 : i32
    %c0_i32_0 = arith.constant 0 : i32
    %c0_i32_1 = arith.constant 0 : i32
    return %c0_i32, %c0_i32_0 : i32, i32
  }
  func.func @transform_22(%arg0: i32) -> (i32, i32) {
    %c0_i32 = arith.constant 0 : i32
    %c0_i32_0 = arith.constant 0 : i32
    %c0_i32_1 = arith.constant 0 : i32
    return %c0_i32, %c0_i32_0 : i32, i32
  }
  func.func @transform_23(%arg0: i32) -> (i32, i32) {
    %c0_i32 = arith.constant 0 : i32
    %c0_i32_0 = arith.constant 0 : i32
    %c0_i32_1 = arith.constant 0 : i32
    return %c0_i32, %c0_i32_0 : i32, i32
  }
  func.func @transform_24(%arg0: i32) -> (i32, i32) {
    %c0_i32 = arith.constant 0 : i32
    %c0_i32_0 = arith.constant 0 : i32
    %c0_i32_1 = arith.constant 0 : i32
    return %c0_i32, %c0_i32_0 : i32, i32
  }
  func.func @transform_25(%arg0: i32) -> (i32, i32) {
    %c0_i32 = arith.constant 0 : i32
    %c0_i32_0 = arith.constant 0 : i32
    %c0_i32_1 = arith.constant 0 : i32
    return %c0_i32, %c0_i32_0 : i32, i32
  }
  func.func @transform_26(%arg0: i32) -> (i32, i32) {
    %c0_i32 = arith.constant 0 : i32
    %c0_i32_0 = arith.constant 0 : i32
    %c0_i32_1 = arith.constant 0 : i32
    return %c0_i32, %c0_i32_0 : i32, i32
  }
  func.func @transform_27(%arg0: i32) -> (i32, i32) {
    %c0_i32 = arith.constant 0 : i32
    %c0_i32_0 = arith.constant 0 : i32
    %c0_i32_1 = arith.constant 0 : i32
    return %c0_i32, %c0_i32_0 : i32, i32
  }
  func.func @transform_28(%arg0: i32) -> (i32, i32) {
    %c0_i32 = arith.constant 0 : i32
    %c0_i32_0 = arith.constant 0 : i32
    %c0_i32_1 = arith.constant 0 : i32
    return %c0_i32, %c0_i32_0 : i32, i32
  }
  func.func @transform_29(%arg0: i32) -> (i32, i32) {
    %c0_i32 = arith.constant 0 : i32
    %c0_i32_0 = arith.constant 0 : i32
    %c0_i32_1 = arith.constant 0 : i32
    return %c0_i32, %c0_i32_0 : i32, i32
  }
  func.func @transform_30(%arg0: i32) -> (i32, i32) {
    %c0_i32 = arith.constant 0 : i32
    %c0_i32_0 = arith.constant 0 : i32
    %c0_i32_1 = arith.constant 0 : i32
    return %c0_i32, %c0_i32_0 : i32, i32
  }
  func.func @transform_31(%arg0: i32) -> (i32, i32) {
    %c0_i32 = arith.constant 0 : i32
    %c0_i32_0 = arith.constant 0 : i32
    %c0_i32_1 = arith.constant 0 : i32
    return %c0_i32, %c0_i32_0 : i32, i32
  }
  func.func @transform_32(%arg0: i32) -> (i32, i32) {
    %c0_i32 = arith.constant 0 : i32
    %c0_i32_0 = arith.constant 0 : i32
    %c0_i32_1 = arith.constant 0 : i32
    return %c0_i32, %c0_i32_0 : i32, i32
  }
  func.func @transform_33(%arg0: i32) -> (i32, i32, i32) {
    %c0_i32 = arith.constant 0 : i32
    %c0_i32_0 = arith.constant 0 : i32
    %c0_i32_1 = arith.constant 0 : i32
    return %arg0, %c0_i32, %c0_i32_0 : i32, i32, i32
  }
}

</mosaic_0001>

<llo_original>
// kernel: mdam_forward.1
$region0: #{mdam_forward.1}
  #allocation0 [shape = 'u32[]', space=smem, size = 0x4, offset = 0x4, fixed_abs, tag = 'smem constant byte address 0x4 - core index']
  #allocation1 [shape = 'u32[144,128]{1,0:T(1,128)}', space=vmem, size = 0x12000, scoped, tag = 'internal scratch']
  #allocation2 [shape = 'f32[1,1]{1,0:T(1,128)S(1)}', space=vmem, size = 0x200, scoped, tag = 'scoped memory for mdam_forward.1']
  %s0 = inlined_call_operand.smem [shape: u32[34], index: -1, kind: input, shape index: {}]
  %s1 = sld [smem:[%s0]]
  %s2 = scalar_lea.smem %s0, 1
  %s3 = sld [smem:[%s2]]
  %s4 = scalar_lea.smem %s0, 2
  %s5 = sld [smem:[%s4]]
  %s6 = scalar_lea.smem %s0, 3
  %s7 = sld [smem:[%s6]]
  %s8 = scalar_lea.smem %s0, 4
  %s9 = sld [smem:[%s8]]
  %s10 = scalar_lea.smem %s0, 5
  %s11 = sld [smem:[%s10]]
  %s12 = scalar_lea.smem %s0, 6
  %s13 = sld [smem:[%s12]]
  %s14 = scalar_lea.smem %s0, 7
  %s15 = sld [smem:[%s14]]
  %s16 = scalar_lea.smem %s0, 8
  %s17 = sld [smem:[%s16]]
  %s18 = scalar_lea.smem %s0, 9
  %s19 = sld [smem:[%s18]]
  %s20 = scalar_lea.smem %s0, 10
  %s21 = sld [smem:[%s20]]
  %s22 = scalar_lea.smem %s0, 11
  %s23 = sld [smem:[%s22]]
  %s24 = scalar_lea.smem %s0, 12
  %s25 = sld [smem:[%s24]]
  %s26 = scalar_lea.smem %s0, 13
  %s27 = sld [smem:[%s26]]
  %s28 = scalar_lea.smem %s0, 14
  %s29 = sld [smem:[%s28]]
  %s30 = scalar_lea.smem %s0, 15
  %s31 = sld [smem:[%s30]]
  %s32 = scalar_lea.smem %s0, 16
  %s33 = sld [smem:[%s32]]
  %s34 = scalar_lea.smem %s0, 17
  %s35 = sld [smem:[%s34]]
  %s36 = scalar_lea.smem %s0, 18
  %s37 = sld [smem:[%s36]]
  %s38 = scalar_lea.smem %s0, 19
  %s39 = sld [smem:[%s38]]
  %s40 = scalar_lea.smem %s0, 20
  %s41 = sld [smem:[%s40]]
  %s42 = scalar_lea.smem %s0, 21
  %s43 = sld [smem:[%s42]]
  %s44 = scalar_lea.smem %s0, 22
  %s45 = sld [smem:[%s44]]
  %s46 = scalar_lea.smem %s0, 23
  %s47 = sld [smem:[%s46]]
  %s48 = scalar_lea.smem %s0, 24
  %s49 = sld [smem:[%s48]]
  %s50 = scalar_lea.smem %s0, 25
  %s51 = sld [smem:[%s50]]
  %s52 = scalar_lea.smem %s0, 26
  %s53 = sld [smem:[%s52]]
  %s54 = scalar_lea.smem %s0, 27
  %s55 = sld [smem:[%s54]]
  %s56 = scalar_lea.smem %s0, 28
  %s57 = sld [smem:[%s56]]
  %s58 = scalar_lea.smem %s0, 29
  %s59 = sld [smem:[%s58]]
  %s60 = scalar_lea.smem %s0, 30
  %s61 = sld [smem:[%s60]]
  %s62 = scalar_lea.smem %s0, 31
  %s63 = sld [smem:[%s62]]
  %s64 = scalar_lea.smem %s0, 32
  %s65 = sld [smem:[%s64]]
  %s66 = scalar_lea.smem %s0, 33
  %s67 = sld [smem:[%s66]]
  %s68 = sld [smem:[#allocation0]]
  $region142: #{mdam_forward.1} parent=0
    _
  %s70 = ssub.s32 1, %s68
  %s71 = scalar_select 0, %s70, %s68
  %v72 = vstv %s65
  %73 = vst [vmem:[#allocation2] sm:$0x1] %v72
  // Predicated region
  $region2: #{mdam_forward.1} parent=0 // pred_check
    _
  $region3: #{mdam_forward.1} parent=0 // pred_check_branch
    %75 = sbr.rel (0) target = $region5
  $region4: #{mdam_forward.1} parent=0 // pred_region
    _
  $region5: #{mdam_forward.1} parent=0 // pred_fallthru
    _
  // Predicated region
  $region6: #{mdam_forward.1} parent=0 // pred_check
    _
  $region7: #{mdam_forward.1} parent=0 // pred_check_branch
    %77 = sbr.rel (0) target = $region9
  $region8: #{mdam_forward.1} parent=0 // pred_region
    _
  $region9: #{mdam_forward.1} parent=0 // pred_fallthru
    _
  // Predicated region
  $region10: #{mdam_forward.1} parent=0 // pred_check
    _
  $region11: #{mdam_forward.1} parent=0 // pred_check_branch
    %79 = sbr.rel (0) target = $region13
  $region12: #{mdam_forward.1} parent=0 // pred_region
    _
  $region13: #{mdam_forward.1} parent=0 // pred_fallthru
    _
  // Predicated region
  $region14: #{mdam_forward.1} parent=0 // pred_check
    _
  $region15: #{mdam_forward.1} parent=0 // pred_check_branch
    %81 = sbr.rel (0) target = $region17
  $region16: #{mdam_forward.1} parent=0 // pred_region
    _
  $region17: #{mdam_forward.1} parent=0 // pred_fallthru
    _
  // Predicated region
  $region18: #{mdam_forward.1} parent=0 // pred_check
    _
  $region19: #{mdam_forward.1} parent=0 // pred_check_branch
    %83 = sbr.rel (0) target = $region21
  $region20: #{mdam_forward.1} parent=0 // pred_region
    _
  $region21: #{mdam_forward.1} parent=0 // pred_fallthru
    _
  // Predicated region
  $region22: #{mdam_forward.1} parent=0 // pred_check
    _
  $region23: #{mdam_forward.1} parent=0 // pred_check_branch
    %85 = sbr.rel (0) target = $region25
  $region24: #{mdam_forward.1} parent=0 // pred_region
    _
  $region25: #{mdam_forward.1} parent=0 // pred_fallthru
    _
  // Predicated region
  $region26: #{mdam_forward.1} parent=0 // pred_check
    _
  $region27: #{mdam_forward.1} parent=0 // pred_check_branch
    %87 = sbr.rel (0) target = $region29
  $region28: #{mdam_forward.1} parent=0 // pred_region
    _
  $region29: #{mdam_forward.1} parent=0 // pred_fallthru
    _
  // Predicated region
  $region30: #{mdam_forward.1} parent=0 // pred_check
    _
  $region31: #{mdam_forward.1} parent=0 // pred_check_branch
    %89 = sbr.rel (0) target = $region33
  $region32: #{mdam_forward.1} parent=0 // pred_region
    _
  $region33: #{mdam_forward.1} parent=0 // pred_fallthru
    _
  // Predicated region
  $region34: #{mdam_forward.1} parent=0 // pred_check
    _
  $region35: #{mdam_forward.1} parent=0 // pred_check_branch
    %91 = sbr.rel (0) target = $region37
  $region36: #{mdam_forward.1} parent=0 // pred_region
    _
  $region37: #{mdam_forward.1} parent=0 // pred_fallthru
    _
  // Predicated region
  $region38: #{mdam_forward.1} parent=0 // pred_check
    _
  $region39: #{mdam_forward.1} parent=0 // pred_check_branch
    %93 = sbr.rel (0) target = $region41
  $region40: #{mdam_forward.1} parent=0 // pred_region
    _
  $region41: #{mdam_forward.1} parent=0 // pred_fallthru
    _
  // Predicated region
  $region42: #{mdam_forward.1} parent=0 // pred_check
    _
  $region43: #{mdam_forward.1} parent=0 // pred_check_branch
    %95 = sbr.rel (0) target = $region45
  $region44: #{mdam_forward.1} parent=0 // pred_region
    _
  $region45: #{mdam_forward.1} parent=0 // pred_fallthru
    _
  // Predicated region
  $region46: #{mdam_forward.1} parent=0 // pred_check
    _
  $region47: #{mdam_forward.1} parent=0 // pred_check_branch
    %97 = sbr.rel (0) target = $region49
  $region48: #{mdam_forward.1} parent=0 // pred_region
    _
  $region49: #{mdam_forward.1} parent=0 // pred_fallthru
    _
  // Predicated region
  $region50: #{mdam_forward.1} parent=0 // pred_check
    _
  $region51: #{mdam_forward.1} parent=0 // pred_check_branch
    %99 = sbr.rel (0) target = $region53
  $region52: #{mdam_forward.1} parent=0 // pred_region
    _
  $region53: #{mdam_forward.1} parent=0 // pred_fallthru
    _
  // Predicated region
  $region54: #{mdam_forward.1} parent=0 // pred_check
    _
  $region55: #{mdam_forward.1} parent=0 // pred_check_branch
    %101 = sbr.rel (0) target = $region57
  $region56: #{mdam_forward.1} parent=0 // pred_region
    _
  $region57: #{mdam_forward.1} parent=0 // pred_fallthru
    _
  // Predicated region
  $region58: #{mdam_forward.1} parent=0 // pred_check
    _
  $region59: #{mdam_forward.1} parent=0 // pred_check_branch
    %103 = sbr.rel (0) target = $region61
  $region60: #{mdam_forward.1} parent=0 // pred_region
    _
  $region61: #{mdam_forward.1} parent=0 // pred_fallthru
    _
  // Predicated region
  $region62: #{mdam_forward.1} parent=0 // pred_check
    _
  $region63: #{mdam_forward.1} parent=0 // pred_check_branch
    %105 = sbr.rel (0) target = $region65
  $region64: #{mdam_forward.1} parent=0 // pred_region
    _
  $region65: #{mdam_forward.1} parent=0 // pred_fallthru
    _
  // Predicated region
  $region66: #{mdam_forward.1} parent=0 // pred_check
    _
  $region67: #{mdam_forward.1} parent=0 // pred_check_branch
    %107 = sbr.rel (0) target = $region69
  $region68: #{mdam_forward.1} parent=0 // pred_region
    _
  $region69: #{mdam_forward.1} parent=0 // pred_fallthru
    _
  // Predicated region
  $region70: #{mdam_forward.1} parent=0 // pred_check
    _
  $region71: #{mdam_forward.1} parent=0 // pred_check_branch
    %109 = sbr.rel (0) target = $region73
  $region72: #{mdam_forward.1} parent=0 // pred_region
    _
  $region73: #{mdam_forward.1} parent=0 // pred_fallthru
    _
  // Predicated region
  $region74: #{mdam_forward.1} parent=0 // pred_check
    _
  $region75: #{mdam_forward.1} parent=0 // pred_check_branch
    %111 = sbr.rel (0) target = $region77
  $region76: #{mdam_forward.1} parent=0 // pred_region
    _
  $region77: #{mdam_forward.1} parent=0 // pred_fallthru
    _
  // Predicated region
  $region78: #{mdam_forward.1} parent=0 // pred_check
    _
  $region79: #{mdam_forward.1} parent=0 // pred_check_branch
    %113 = sbr.rel (0) target = $region81
  $region80: #{mdam_forward.1} parent=0 // pred_region
    _
  $region81: #{mdam_forward.1} parent=0 // pred_fallthru
    _
  // Predicated region
  $region82: #{mdam_forward.1} parent=0 // pred_check
    _
  $region83: #{mdam_forward.1} parent=0 // pred_check_branch
    %115 = sbr.rel (0) target = $region85
  $region84: #{mdam_forward.1} parent=0 // pred_region
    _
  $region85: #{mdam_forward.1} parent=0 // pred_fallthru
    _
  // Predicated region
  $region86: #{mdam_forward.1} parent=0 // pred_check
    _
  $region87: #{mdam_forward.1} parent=0 // pred_check_branch
    %117 = sbr.rel (0) target = $region89
  $region88: #{mdam_forward.1} parent=0 // pred_region
    _
  $region89: #{mdam_forward.1} parent=0 // pred_fallthru
    _
  // Predicated region
  $region90: #{mdam_forward.1} parent=0 // pred_check
    _
  $region91: #{mdam_forward.1} parent=0 // pred_check_branch
    %119 = sbr.rel (0) target = $region93
  $region92: #{mdam_forward.1} parent=0 // pred_region
    _
  $region93: #{mdam_forward.1} parent=0 // pred_fallthru
    _
  // Predicated region
  $region94: #{mdam_forward.1} parent=0 // pred_check
    _
  $region95: #{mdam_forward.1} parent=0 // pred_check_branch
    %121 = sbr.rel (0) target = $region97
  $region96: #{mdam_forward.1} parent=0 // pred_region
    _
  $region97: #{mdam_forward.1} parent=0 // pred_fallthru
    _
  // Predicated region
  $region98: #{mdam_forward.1} parent=0 // pred_check
    _
  $region99: #{mdam_forward.1} parent=0 // pred_check_branch
    %123 = sbr.rel (0) target = $region101
  $region100: #{mdam_forward.1} parent=0 // pred_region
    _
  $region101: #{mdam_forward.1} parent=0 // pred_fallthru
    _
  // Predicated region
  $region102: #{mdam_forward.1} parent=0 // pred_check
    _
  $region103: #{mdam_forward.1} parent=0 // pred_check_branch
    %125 = sbr.rel (0) target = $region105
  $region104: #{mdam_forward.1} parent=0 // pred_region
    _
  $region105: #{mdam_forward.1} parent=0 // pred_fallthru
    _
  // Predicated region
  $region106: #{mdam_forward.1} parent=0 // pred_check
    _
  $region107: #{mdam_forward.1} parent=0 // pred_check_branch
    %127 = sbr.rel (0) target = $region109
  $region108: #{mdam_forward.1} parent=0 // pred_region
    _
  $region109: #{mdam_forward.1} parent=0 // pred_fallthru
    _
  // Predicated region
  $region110: #{mdam_forward.1} parent=0 // pred_check
    _
  $region111: #{mdam_forward.1} parent=0 // pred_check_branch
    %129 = sbr.rel (0) target = $region113
  $region112: #{mdam_forward.1} parent=0 // pred_region
    _
  $region113: #{mdam_forward.1} parent=0 // pred_fallthru
    _
  // Predicated region
  $region114: #{mdam_forward.1} parent=0 // pred_check
    _
  $region115: #{mdam_forward.1} parent=0 // pred_check_branch
    %131 = sbr.rel (0) target = $region117
  $region116: #{mdam_forward.1} parent=0 // pred_region
    _
  $region117: #{mdam_forward.1} parent=0 // pred_fallthru
    _
  // Predicated region
  $region118: #{mdam_forward.1} parent=0 // pred_check
    _
  $region119: #{mdam_forward.1} parent=0 // pred_check_branch
    %133 = sbr.rel (0) target = $region121
  $region120: #{mdam_forward.1} parent=0 // pred_region
    _
  $region121: #{mdam_forward.1} parent=0 // pred_fallthru
    _
  // Predicated region
  $region122: #{mdam_forward.1} parent=0 // pred_check
    _
  $region123: #{mdam_forward.1} parent=0 // pred_check_branch
    %135 = sbr.rel (0) target = $region125
  $region124: #{mdam_forward.1} parent=0 // pred_region
    _
  $region125: #{mdam_forward.1} parent=0 // pred_fallthru
    _
  // Predicated region
  $region126: #{mdam_forward.1} parent=0 // pred_check
    _
  $region127: #{mdam_forward.1} parent=0 // pred_check_branch
    %137 = sbr.rel (0) target = $region129
  $region128: #{mdam_forward.1} parent=0 // pred_region
    _
  $region129: #{mdam_forward.1} parent=0 // pred_fallthru
    _
  // Predicated region
  $region130: #{mdam_forward.1} parent=0 // pred_check
    _
  $region131: #{mdam_forward.1} parent=0 // pred_check_branch
    %139 = sbr.rel (0) target = $region133
  $region132: #{mdam_forward.1} parent=0 // pred_region
    _
  $region133: #{mdam_forward.1} parent=0 // pred_fallthru
    _
  %v141 = vld [vmem:[%s1] sm:$0xff]
  %v142 = vld [vmem:[%s1 + $0x8] sm:$0xff]
  %v143 = vld [vmem:[%s3] sm:$0xff]
  %v144 = vld [vmem:[%s3 + $0x8] sm:$0xff]
  %v145 = vld [vmem:[%s5] sm:$0xff]
  %v146 = vld [vmem:[%s5 + $0x8] sm:$0xff]
  %v147 = vld [vmem:[%s5 + $0x10] sm:$0xff]
  %v148 = vld [vmem:[%s5 + $0x18] sm:$0xff]
  %v149 = vld [vmem:[%s5 + $0x20] sm:$0xff]
  %v150 = vld [vmem:[%s5 + $0x28] sm:$0xff]
  %v151 = vld [vmem:[%s5 + $0x30] sm:$0xff]
  %v152 = vld [vmem:[%s5 + $0x38] sm:$0xff]
  %v153 = vld [vmem:[%s7] sm:$0x3]
  %v154 = vpack.c.bf16 %v153, %v153
  %v155 = vld [vmem:[%s21] sm:$0xf]
  %v156 = vld [vmem:[%s23] sm:$0xf]
  %v157 = vld [vmem:[%s23 + $0x4] sm:$0xf]
  %v158 = vld [vmem:[%s25] sm:$0x1]
  %v159 = vld [vmem:[%s27] sm:$0x1]
  %v160 = vsub.f32 1.0, %v143
  %v161 = vsub.f32 1.0, %v144
  %v162 = vlaneseq
  %v163 = vshrl.u32 %v162, 7
  %v164 = vsub.s32 0, %v163
  %v165 = vrot.slane %v160, %v164
  %167 = vbcast.lane.b32.xlu0 %v165, 256
  %v168 = vpop.permute.xlu0 %167
  %s170 = sor.u32 256, 8
  %171 = vbcast.lane.b32.xlu0 %v165, %s170
  %v172 = vpop.permute.xlu0 %171
  %v173 = vlaneseq
  %v174 = vshrl.u32 %v173, 7
  %v175 = vsub.s32 1, %v174
  %v176 = vrot.slane %v160, %v175
  %178 = vbcast.lane.b32.xlu0 %v176, 256
  %v179 = vpop.permute.xlu0 %178
  %s181 = sor.u32 256, 8
  %182 = vbcast.lane.b32.xlu0 %v176, %s181
  %v183 = vpop.permute.xlu0 %182
  %v184 = vlaneseq
  %v185 = vshrl.u32 %v184, 7
  %v186 = vsub.s32 2, %v185
  %v187 = vrot.slane %v160, %v186
  %189 = vbcast.lane.b32.xlu0 %v187, 256
  %v190 = vpop.permute.xlu0 %189
  %s192 = sor.u32 256, 8
  %193 = vbcast.lane.b32.xlu0 %v187, %s192
  %v194 = vpop.permute.xlu0 %193
  %v195 = vlaneseq
  %v196 = vshrl.u32 %v195, 7
  %v197 = vsub.s32 3, %v196
  %v198 = vrot.slane %v160, %v197
  %200 = vbcast.lane.b32.xlu0 %v198, 256
  %v201 = vpop.permute.xlu0 %200
  %s203 = sor.u32 256, 8
  %204 = vbcast.lane.b32.xlu0 %v198, %s203
  %v205 = vpop.permute.xlu0 %204
  %v206 = vlaneseq
  %v207 = vshrl.u32 %v206, 7
  %v208 = vsub.s32 4, %v207
  %v209 = vrot.slane %v160, %v208
  %211 = vbcast.lane.b32.xlu0 %v209, 256
  %v212 = vpop.permute.xlu0 %211
  %s214 = sor.u32 256, 8
  %215 = vbcast.lane.b32.xlu0 %v209, %s214
  %v216 = vpop.permute.xlu0 %215
  %v217 = vlaneseq
  %v218 = vshrl.u32 %v217, 7
  %v219 = vsub.s32 5, %v218
  %v220 = vrot.slane %v160, %v219
  %222 = vbcast.lane.b32.xlu0 %v220, 256
  %v223 = vpop.permute.xlu0 %222
  %s225 = sor.u32 256, 8
  %226 = vbcast.lane.b32.xlu0 %v220, %s225
  %v227 = vpop.permute.xlu0 %226
  %v228 = vlaneseq
  %v229 = vshrl.u32 %v228, 7
  %v230 = vsub.s32 6, %v229
  %v231 = vrot.slane %v160, %v230
  %233 = vbcast.lane.b32.xlu0 %v231, 256
  %v234 = vpop.permute.xlu0 %233
  %s236 = sor.u32 256, 8
  %237 = vbcast.lane.b32.xlu0 %v231, %s236
  %v238 = vpop.permute.xlu0 %237
  %v239 = vlaneseq
  %v240 = vshrl.u32 %v239, 7
  %v241 = vsub.s32 7, %v240
  %v242 = vrot.slane %v160, %v241
  %244 = vbcast.lane.b32.xlu0 %v242, 256
  %v245 = vpop.permute.xlu0 %244
  %s247 = sor.u32 256, 8
  %248 = vbcast.lane.b32.xlu0 %v242, %s247
  %v249 = vpop.permute.xlu0 %248
  %v250 = vlaneseq
  %v251 = vshrl.u32 %v250, 7
  %v252 = vsub.s32 0, %v251
  %v253 = vrot.slane %v161, %v252
  %255 = vbcast.lane.b32.xlu0 %v253, 256
  %v256 = vpop.permute.xlu0 %255
  %s258 = sor.u32 256, 8
  %259 = vbcast.lane.b32.xlu0 %v253, %s258
  %v260 = vpop.permute.xlu0 %259
  %v261 = vlaneseq
  %v262 = vshrl.u32 %v261, 7
  %v263 = vsub.s32 1, %v262
  %v264 = vrot.slane %v161, %v263
  %266 = vbcast.lane.b32.xlu0 %v264, 256
  %v267 = vpop.permute.xlu0 %266
  %s269 = sor.u32 256, 8
  %270 = vbcast.lane.b32.xlu0 %v264, %s269
  %v271 = vpop.permute.xlu0 %270
  %v272 = vlaneseq
  %v273 = vshrl.u32 %v272, 7
  %v274 = vsub.s32 2, %v273
  %v275 = vrot.slane %v161, %v274
  %277 = vbcast.lane.b32.xlu0 %v275, 256
  %v278 = vpop.permute.xlu0 %277
  %s280 = sor.u32 256, 8
  %281 = vbcast.lane.b32.xlu0 %v275, %s280
  %v282 = vpop.permute.xlu0 %281
  %v283 = vlaneseq
  %v284 = vshrl.u32 %v283, 7
  %v285 = vsub.s32 3, %v284
  %v286 = vrot.slane %v161, %v285
  %288 = vbcast.lane.b32.xlu0 %v286, 256
  %v289 = vpop.permute.xlu0 %288
  %s291 = sor.u32 256, 8
  %292 = vbcast.lane.b32.xlu0 %v286, %s291
  %v293 = vpop.permute.xlu0 %292
  %v294 = vlaneseq
  %v295 = vshrl.u32 %v294, 7
  %v296 = vsub.s32 4, %v295
  %v297 = vrot.slane %v161, %v296
  %299 = vbcast.lane.b32.xlu0 %v297, 256
  %v300 = vpop.permute.xlu0 %299
  %s302 = sor.u32 256, 8
  %303 = vbcast.lane.b32.xlu0 %v297, %s302
  %v304 = vpop.permute.xlu0 %303
  %v305 = vlaneseq
  %v306 = vshrl.u32 %v305, 7
  %v307 = vsub.s32 5, %v306
  %v308 = vrot.slane %v161, %v307
  %310 = vbcast.lane.b32.xlu0 %v308, 256
  %v311 = vpop.permute.xlu0 %310
  %s313 = sor.u32 256, 8
  %314 = vbcast.lane.b32.xlu0 %v308, %s313
  %v315 = vpop.permute.xlu0 %314
  %v316 = vlaneseq
  %v317 = vshrl.u32 %v316, 7
  %v318 = vsub.s32 6, %v317
  %v319 = vrot.slane %v161, %v318
  %321 = vbcast.lane.b32.xlu0 %v319, 256
  %v322 = vpop.permute.xlu0 %321
  %s324 = sor.u32 256, 8
  %325 = vbcast.lane.b32.xlu0 %v319, %s324
  %v326 = vpop.permute.xlu0 %325
  %v327 = vlaneseq
  %v328 = vshrl.u32 %v327, 7
  %v329 = vsub.s32 7, %v328
  %v330 = vrot.slane %v161, %v329
  %332 = vbcast.lane.b32.xlu0 %v330, 256
  %v333 = vpop.permute.xlu0 %332
  %s335 = sor.u32 256, 8
  %336 = vbcast.lane.b32.xlu0 %v330, %s335
  %v337 = vpop.permute.xlu0 %336
  %v338 = vmul.f32 %v168, 1000000.0
  %v339 = vmul.f32 %v172, 1000000.0
  %v340 = vmul.f32 %v179, 1000000.0
  %v341 = vmul.f32 %v183, 1000000.0
  %v342 = vmul.f32 %v190, 1000000.0
  %v343 = vmul.f32 %v194, 1000000.0
  %v344 = vmul.f32 %v201, 1000000.0
  %v345 = vmul.f32 %v205, 1000000.0
  %v346 = vmul.f32 %v212, 1000000.0
  %v347 = vmul.f32 %v216, 1000000.0
  %v348 = vmul.f32 %v223, 1000000.0
  %v349 = vmul.f32 %v227, 1000000.0
  %v350 = vmul.f32 %v234, 1000000.0
  %v351 = vmul.f32 %v238, 1000000.0
  %v352 = vmul.f32 %v245, 1000000.0
  %v353 = vmul.f32 %v249, 1000000.0
  %v354 = vmul.f32 %v256, 1000000.0
  %v355 = vmul.f32 %v260, 1000000.0
  %v356 = vmul.f32 %v267, 1000000.0
  %v357 = vmul.f32 %v271, 1000000.0
  %v358 = vmul.f32 %v278, 1000000.0
  %v359 = vmul.f32 %v282, 1000000.0
  %v360 = vmul.f32 %v289, 1000000.0
  %v361 = vmul.f32 %v293, 1000000.0
  %v362 = vmul.f32 %v300, 1000000.0
  %v363 = vmul.f32 %v304, 1000000.0
  %v364 = vmul.f32 %v311, 1000000.0
  %v365 = vmul.f32 %v315, 1000000.0
  %v366 = vmul.f32 %v322, 1000000.0
  %v367 = vmul.f32 %v326, 1000000.0
  %v368 = vmul.f32 %v333, 1000000.0
  %v369 = vmul.f32 %v337, 1000000.0
  %v370 = vpack.c.bf16 %v142, %v141
  %v371 = vld [vmem:[%s9] sm:$0xff]
  %v372 = vld [vmem:[%s9 + $0x8] sm:$0xff]
  %v373 = vld [vmem:[%s11] sm:$0x3]
  %v375 = vlaneseq
  %v376 = vshrl.u32 %v375, 7
  %v377 = vsub.s32 0, %v376
  %v378 = vrot.slane %v373, %v377
  %v379 = vlaneseq
  %v380 = vshrl.u32 %v379, 7
  %v381 = vsub.s32 1, %v380
  %v382 = vrot.slane %v373, %v381
  %v387 = vunpack.c.l.b16 %v371
  %v388 = vunpack.c.h.b16 %v371
  %v389 = vunpack.c.l.b16 %v372
  %v390 = vunpack.c.h.b16 %v372
  %v391 = vpack.c.b16 %v389, %v387
  %v392 = vpack.c.b16 %v390, %v388
  %vm395 = vcmask 130048
  %v397 = vsel %vm395, %v370, 0
  %399 = vmatprep.subr.bf16.mxu0 0
  %400 = vmatpush1.bf16.msra.mxu0 0
  %401 = vmatprep.subr.bf16.mxu0 0
  %402 = vmatpush1.bf16.msra.mxu0 0
  %403 = vmatprep.subr.bf16.mxu0 0
  %404 = vmatpush1.bf16.msra.mxu0 0
  %405 = vmatprep.subr.bf16.mxu0 0
  %406 = vmatpush1.bf16.msra.mxu0 0
  %407 = vmatprep.subr.bf16.mxu0 0
  %408 = vmatpush1.bf16.msra.mxu0 0
  %409 = vmatprep.subr.bf16.mxu0 0
  %410 = vmatpush1.bf16.msra.mxu0 0
  %411 = vmatprep.subr.bf16.mxu0 0
  %412 = vmatpush1.bf16.msra.mxu0 0
  %413 = vmatprep.subr.bf16.mxu0 %v392
  %414 = vmatpush1.bf16.msra.mxu0 %v391
  %415 = vmatprep.subr.bf16.mxu0 0
  %416 = vmatpush2.bf16.msra.mxu0 0
  %417 = vmatprep.subr.bf16.mxu0 0
  %418 = vmatpush2.bf16.msra.mxu0 0
  %419 = vmatprep.subr.bf16.mxu0 0
  %420 = vmatpush2.bf16.msra.mxu0 0
  %421 = vmatprep.subr.bf16.mxu0 0
  %422 = vmatpush2.bf16.msra.mxu0 0
  %423 = vmatprep.subr.bf16.mxu0 0
  %424 = vmatpush2.bf16.msra.mxu0 0
  %425 = vmatprep.subr.bf16.mxu0 0
  %426 = vmatpush2.bf16.msra.mxu0 0
  %427 = vmatprep.subr.bf16.mxu0 0
  %428 = vmatpush2.bf16.msra.mxu0 0
  %429 = vmatprep.subr.bf16.mxu0 0
  %430 = vmatpush2.bf16.msra.mxu0 0
  %431 = vmatprep.mubr.bf16.mxu0 0
  %432 = vmatmul.mubr.bf16.gmra.mxu0 %v397
  %v433 = vpop.f32.mrf.mxu0
  %v434 = vadd.f32 %v378, %v433
  %v435 = vpop.f32.mrf.mxu0
  %v436 = vadd.f32 %v382, %v435
  %v437 = vpop.f32.mrf.mxu0
  %v438 = vadd.f32 %v378, %v437
  %v439 = vpop.f32.mrf.mxu0
  %v440 = vadd.f32 %v382, %v439
  %441 = vdwg.mxu0
  %vm442 = vcmp.gt.f32.partialorder %v434, 0.0
  %vm443 = vcmp.gt.f32.partialorder %v436, 0.0
  %vm444 = vcmp.gt.f32.partialorder %v438, 0.0
  %vm445 = vcmp.gt.f32.partialorder %v440, 0.0
  %v446 = vmul.f32 %v434, 1.442695
  %v447 = vpow.pop %v446
  %v448 = vmul.f32 %v436, 1.442695
  %v449 = vpow.pop %v448
  %v450 = vmul.f32 %v438, 1.442695
  %v451 = vpow.pop %v450
  %v452 = vmul.f32 %v440, 1.442695
  %v453 = vpow.pop %v452
  %v454 = vsub.f32 %v447, 1.0
  %v455 = vsub.f32 %v449, 1.0
  %v456 = vsub.f32 %v451, 1.0
  %v457 = vsub.f32 %v453, 1.0
  %v458 = vmul.f32 %v454, 1.6732632
  %v459 = vmul.f32 %v455, 1.6732632
  %v460 = vmul.f32 %v456, 1.6732632
  %v461 = vmul.f32 %v457, 1.6732632
  %v462 = vsel %vm442, %v434, %v458
  %v463 = vsel %vm443, %v436, %v459
  %v464 = vsel %vm444, %v438, %v460
  %v465 = vsel %vm445, %v440, %v461
  %v466 = vmul.f32 %v462, 1.050701
  %v467 = vmul.f32 %v463, 1.050701
  %v468 = vmul.f32 %v464, 1.050701
  %v469 = vmul.f32 %v465, 1.050701
  %v470 = vpack.c.bf16 %v468, %v466
  %v471 = vpack.c.bf16 %v469, %v467
  %v472 = vld [vmem:[%s13] sm:$0xff]
  %v473 = vld [vmem:[%s13 + $0x8] sm:$0xff]
  %v474 = vld [vmem:[%s13 + $0x10] sm:$0xff]
  %v475 = vld [vmem:[%s13 + $0x18] sm:$0xff]
  %v476 = vld [vmem:[%s13 + $0x20] sm:$0xff]
  %v477 = vld [vmem:[%s13 + $0x28] sm:$0xff]
  %v478 = vld [vmem:[%s13 + $0x30] sm:$0xff]
  %v479 = vld [vmem:[%s13 + $0x38] sm:$0xff]
  %v480 = vld [vmem:[%s13 + $0x40] sm:$0xff]
  %v481 = vld [vmem:[%s13 + $0x48] sm:$0xff]
  %v482 = vld [vmem:[%s13 + $0x50] sm:$0xff]
  %v483 = vld [vmem:[%s13 + $0x58] sm:$0xff]
  %v484 = vld [vmem:[%s13 + $0x60] sm:$0xff]
  %v485 = vld [vmem:[%s13 + $0x68] sm:$0xff]
  %v486 = vld [vmem:[%s13 + $0x70] sm:$0xff]
  %v487 = vld [vmem:[%s13 + $0x78] sm:$0xff]
  %v488 = vld [vmem:[%s13 + $0x80] sm:$0xff]
  %v489 = vld [vmem:[%s13 + $0x88] sm:$0xff]
  %v490 = vld [vmem:[%s13 + $0x90] sm:$0xff]
  %v491 = vld [vmem:[%s13 + $0x98] sm:$0xff]
  %v492 = vld [vmem:[%s13 + $0xa0] sm:$0xff]
  %v493 = vld [vmem:[%s13 + $0xa8] sm:$0xff]
  %v494 = vld [vmem:[%s13 + $0xb0] sm:$0xff]
  %v495 = vld [vmem:[%s13 + $0xb8] sm:$0xff]
  %v496 = vld [vmem:[%s13 + $0xc0] sm:$0xff]
  %v497 = vld [vmem:[%s13 + $0xc8] sm:$0xff]
  %v498 = vld [vmem:[%s13 + $0xd0] sm:$0xff]
  %v499 = vld [vmem:[%s13 + $0xd8] sm:$0xff]
  %v500 = vld [vmem:[%s13 + $0xe0] sm:$0xff]
  %v501 = vld [vmem:[%s13 + $0xe8] sm:$0xff]
  %v502 = vld [vmem:[%s13 + $0xf0] sm:$0xff]
  %v503 = vld [vmem:[%s13 + $0xf8] sm:$0xff]
  %v504 = vld [vmem:[%s15] sm:$0x3]
  %v506 = vlaneseq
  %v507 = vshrl.u32 %v506, 7
  %v508 = vsub.s32 0, %v507
  %v509 = vrot.slane %v504, %v508
  %v510 = vlaneseq
  %v511 = vshrl.u32 %v510, 7
  %v512 = vsub.s32 1, %v511
  %v513 = vrot.slane %v504, %v512
  %v548 = vunpack.c.l.b16 %v472
  %v549 = vunpack.c.h.b16 %v472
  %v550 = vunpack.c.l.b16 %v473
  %v551 = vunpack.c.h.b16 %v473
  %v552 = vunpack.c.l.b16 %v474
  %v553 = vunpack.c.h.b16 %v474
  %v554 = vunpack.c.l.b16 %v475
  %v555 = vunpack.c.h.b16 %v475
  %v556 = vunpack.c.l.b16 %v476
  %v557 = vunpack.c.h.b16 %v476
  %v558 = vunpack.c.l.b16 %v477
  %v559 = vunpack.c.h.b16 %v477
  %v560 = vunpack.c.l.b16 %v478
  %v561 = vunpack.c.h.b16 %v478
  %v562 = vunpack.c.l.b16 %v479
  %v563 = vunpack.c.h.b16 %v479
  %v564 = vunpack.c.l.b16 %v480
  %v565 = vunpack.c.h.b16 %v480
  %v566 = vunpack.c.l.b16 %v481
  %v567 = vunpack.c.h.b16 %v481
  %v568 = vunpack.c.l.b16 %v482
  %v569 = vunpack.c.h.b16 %v482
  %v570 = vunpack.c.l.b16 %v483
  %v571 = vunpack.c.h.b16 %v483
  %v572 = vunpack.c.l.b16 %v484
  %v573 = vunpack.c.h.b16 %v484
  %v574 = vunpack.c.l.b16 %v485
  %v575 = vunpack.c.h.b16 %v485
  %v576 = vunpack.c.l.b16 %v486
  %v577 = vunpack.c.h.b16 %v486
  %v578 = vunpack.c.l.b16 %v487
  %v579 = vunpack.c.h.b16 %v487
  %v580 = vunpack.c.l.b16 %v488
  %v581 = vunpack.c.h.b16 %v488
  %v582 = vunpack.c.l.b16 %v489
  %v583 = vunpack.c.h.b16 %v489
  %v584 = vunpack.c.l.b16 %v490
  %v585 = vunpack.c.h.b16 %v490
  %v586 = vunpack.c.l.b16 %v491
  %v587 = vunpack.c.h.b16 %v491
  %v588 = vunpack.c.l.b16 %v492
  %v589 = vunpack.c.h.b16 %v492
  %v590 = vunpack.c.l.b16 %v493
  %v591 = vunpack.c.h.b16 %v493
  %v592 = vunpack.c.l.b16 %v494
  %v593 = vunpack.c.h.b16 %v494
  %v594 = vunpack.c.l.b16 %v495
  %v595 = vunpack.c.h.b16 %v495
  %v596 = vunpack.c.l.b16 %v496
  %v597 = vunpack.c.h.b16 %v496
  %v598 = vunpack.c.l.b16 %v497
  %v599 = vunpack.c.h.b16 %v497
  %v600 = vunpack.c.l.b16 %v498
  %v601 = vunpack.c.h.b16 %v498
  %v602 = vunpack.c.l.b16 %v499
  %v603 = vunpack.c.h.b16 %v499
  %v604 = vunpack.c.l.b16 %v500
  %v605 = vunpack.c.h.b16 %v500
  %v606 = vunpack.c.l.b16 %v501
  %v607 = vunpack.c.h.b16 %v501
  %v608 = vunpack.c.l.b16 %v502
  %v609 = vunpack.c.h.b16 %v502
  %v610 = vunpack.c.l.b16 %v503
  %v611 = vunpack.c.h.b16 %v503
  %v612 = vpack.c.b16 %v550, %v548
  %v613 = vpack.c.b16 %v551, %v549
  %v614 = vpack.c.b16 %v554, %v552
  %v615 = vpack.c.b16 %v555, %v553
  %v616 = vpack.c.b16 %v558, %v556
  %v617 = vpack.c.b16 %v559, %v557
  %v618 = vpack.c.b16 %v562, %v560
  %v619 = vpack.c.b16 %v563, %v561
  %v620 = vpack.c.b16 %v566, %v564
  %v621 = vpack.c.b16 %v567, %v565
  %v622 = vpack.c.b16 %v570, %v568
  %v623 = vpack.c.b16 %v571, %v569
  %v624 = vpack.c.b16 %v574, %v572
  %v625 = vpack.c.b16 %v575, %v573
  %v626 = vpack.c.b16 %v578, %v576
  %v627 = vpack.c.b16 %v579, %v577
  %v628 = vpack.c.b16 %v582, %v580
  %v629 = vpack.c.b16 %v583, %v581
  %v630 = vpack.c.b16 %v586, %v584
  %v631 = vpack.c.b16 %v587, %v585
  %v632 = vpack.c.b16 %v590, %v588
  %v633 = vpack.c.b16 %v591, %v589
  %v634 = vpack.c.b16 %v594, %v592
  %v635 = vpack.c.b16 %v595, %v593
  %v636 = vpack.c.b16 %v598, %v596
  %v637 = vpack.c.b16 %v599, %v597
  %v638 = vpack.c.b16 %v602, %v600
  %v639 = vpack.c.b16 %v603, %v601
  %v640 = vpack.c.b16 %v606, %v604
  %v641 = vpack.c.b16 %v607, %v605
  %v642 = vpack.c.b16 %v610, %v608
  %v643 = vpack.c.b16 %v611, %v609
  %676 = vmatprep.subr.bf16.mxu0 %v627
  %677 = vmatpush1.bf16.msra.mxu0 %v626
  %678 = vmatprep.subr.bf16.mxu0 %v625
  %679 = vmatpush1.bf16.msra.mxu0 %v624
  %680 = vmatprep.subr.bf16.mxu0 %v623
  %681 = vmatpush1.bf16.msra.mxu0 %v622
  %682 = vmatprep.subr.bf16.mxu0 %v621
  %683 = vmatpush1.bf16.msra.mxu0 %v620
  %684 = vmatprep.subr.bf16.mxu0 %v619
  %685 = vmatpush1.bf16.msra.mxu0 %v618
  %686 = vmatprep.subr.bf16.mxu0 %v617
  %687 = vmatpush1.bf16.msra.mxu0 %v616
  %688 = vmatprep.subr.bf16.mxu0 %v615
  %689 = vmatpush1.bf16.msra.mxu0 %v614
  %690 = vmatprep.subr.bf16.mxu0 %v613
  %691 = vmatpush1.bf16.msra.mxu0 %v612
  %692 = vmatprep.subr.bf16.mxu0 %v643
  %693 = vmatpush2.bf16.msra.mxu0 %v642
  %694 = vmatprep.subr.bf16.mxu0 %v641
  %695 = vmatpush2.bf16.msra.mxu0 %v640
  %696 = vmatprep.subr.bf16.mxu0 %v639
  %697 = vmatpush2.bf16.msra.mxu0 %v638
  %698 = vmatprep.subr.bf16.mxu0 %v637
  %699 = vmatpush2.bf16.msra.mxu0 %v636
  %700 = vmatprep.subr.bf16.mxu0 %v635
  %701 = vmatpush2.bf16.msra.mxu0 %v634
  %702 = vmatprep.subr.bf16.mxu0 %v633
  %703 = vmatpush2.bf16.msra.mxu0 %v632
  %704 = vmatprep.subr.bf16.mxu0 %v631
  %705 = vmatpush2.bf16.msra.mxu0 %v630
  %706 = vmatprep.subr.bf16.mxu0 %v629
  %707 = vmatpush2.bf16.msra.mxu0 %v628
  %708 = vmatprep.mubr.bf16.mxu0 %v471
  %709 = vmatmul.mubr.bf16.gmra.mxu0 %v470
  %v710 = vpop.f32.mrf.mxu0
  %v711 = vadd.f32 %v509, %v710
  %v712 = vpop.f32.mrf.mxu0
  %v713 = vadd.f32 %v513, %v712
  %v714 = vpop.f32.mrf.mxu0
  %v715 = vadd.f32 %v509, %v714
  %v716 = vpop.f32.mrf.mxu0
  %v717 = vadd.f32 %v513, %v716
  %718 = vdwg.mxu0
  %vm719 = vcmp.gt.f32.partialorder %v711, 0.0
  %vm720 = vcmp.gt.f32.partialorder %v713, 0.0
  %vm721 = vcmp.gt.f32.partialorder %v715, 0.0
  %vm722 = vcmp.gt.f32.partialorder %v717, 0.0
  %v723 = vmul.f32 %v711, 1.442695
  %v724 = vpow.pop %v723
  %v725 = vmul.f32 %v713, 1.442695
  %v726 = vpow.pop %v725
  %v727 = vmul.f32 %v715, 1.442695
  %v728 = vpow.pop %v727
  %v729 = vmul.f32 %v717, 1.442695
  %v730 = vpow.pop %v729
  %v731 = vsub.f32 %v724, 1.0
  %v732 = vsub.f32 %v726, 1.0
  %v733 = vsub.f32 %v728, 1.0
  %v734 = vsub.f32 %v730, 1.0
  %v735 = vmul.f32 %v731, 1.6732632
  %v736 = vmul.f32 %v732, 1.6732632
  %v737 = vmul.f32 %v733, 1.6732632
  %v738 = vmul.f32 %v734, 1.6732632
  %v739 = vsel %vm719, %v711, %v735
  %v740 = vsel %vm720, %v713, %v736
  %v741 = vsel %vm721, %v715, %v737
  %v742 = vsel %vm722, %v717, %v738
  %v743 = vmul.f32 %v739, 1.050701
  %v744 = vmul.f32 %v740, 1.050701
  %v745 = vmul.f32 %v741, 1.050701
  %v746 = vmul.f32 %v742, 1.050701
  %v747 = vpack.c.bf16 %v745, %v743
  %v748 = vpack.c.bf16 %v746, %v744
  %v749 = vld [vmem:[%s17] sm:$0xf]
  %v750 = vld [vmem:[%s17 + $0x4] sm:$0xf]
  %v751 = vld [vmem:[%s17 + $0x8] sm:$0xf]
  %v752 = vld [vmem:[%s17 + $0xc] sm:$0xf]
  %v753 = vld [vmem:[%s17 + $0x10] sm:$0xf]
  %v754 = vld [vmem:[%s17 + $0x14] sm:$0xf]
  %v755 = vld [vmem:[%s17 + $0x18] sm:$0xf]
  %v756 = vld [vmem:[%s17 + $0x1c] sm:$0xf]
  %v757 = vld [vmem:[%s17 + $0x20] sm:$0xf]
  %v758 = vld [vmem:[%s17 + $0x24] sm:$0xf]
  %v759 = vld [vmem:[%s17 + $0x28] sm:$0xf]
  %v760 = vld [vmem:[%s17 + $0x2c] sm:$0xf]
  %v761 = vld [vmem:[%s17 + $0x30] sm:$0xf]
  %v762 = vld [vmem:[%s17 + $0x34] sm:$0xf]
  %v763 = vld [vmem:[%s17 + $0x38] sm:$0xf]
  %v764 = vld [vmem:[%s17 + $0x3c] sm:$0xf]
  %v765 = vld [vmem:[%s17 + $0x40] sm:$0xf]
  %v766 = vld [vmem:[%s17 + $0x44] sm:$0xf]
  %v767 = vld [vmem:[%s17 + $0x48] sm:$0xf]
  %v768 = vld [vmem:[%s17 + $0x4c] sm:$0xf]
  %v769 = vld [vmem:[%s17 + $0x50] sm:$0xf]
  %v770 = vld [vmem:[%s17 + $0x54] sm:$0xf]
  %v771 = vld [vmem:[%s17 + $0x58] sm:$0xf]
  %v772 = vld [vmem:[%s17 + $0x5c] sm:$0xf]
  %v773 = vld [vmem:[%s17 + $0x60] sm:$0xf]
  %v774 = vld [vmem:[%s17 + $0x64] sm:$0xf]
  %v775 = vld [vmem:[%s17 + $0x68] sm:$0xf]
  %v776 = vld [vmem:[%s17 + $0x6c] sm:$0xf]
  %v777 = vld [vmem:[%s17 + $0x70] sm:$0xf]
  %v778 = vld [vmem:[%s17 + $0x74] sm:$0xf]
  %v779 = vld [vmem:[%s17 + $0x78] sm:$0xf]
  %v780 = vld [vmem:[%s17 + $0x7c] sm:$0xf]
  %v781 = vld [vmem:[%s19] sm:$0x1]
  %v783 = vlaneseq
  %v784 = vshrl.u32 %v783, 7
  %v785 = vsub.s32 0, %v784
  %v786 = vrot.slane %v781, %v785
  %v820 = vunpack.c.l.b16 %v749
  %v821 = vunpack.c.l.b16 %v750
  %v822 = vunpack.c.l.b16 %v751
  %v823 = vunpack.c.l.b16 %v752
  %v824 = vunpack.c.l.b16 %v753
  %v825 = vunpack.c.l.b16 %v754
  %v826 = vunpack.c.l.b16 %v755
  %v827 = vunpack.c.l.b16 %v756
  %v828 = vunpack.c.l.b16 %v757
  %v829 = vunpack.c.l.b16 %v758
  %v830 = vunpack.c.l.b16 %v759
  %v831 = vunpack.c.l.b16 %v760
  %v832 = vunpack.c.l.b16 %v761
  %v833 = vunpack.c.l.b16 %v762
  %v834 = vunpack.c.l.b16 %v763
  %v835 = vunpack.c.l.b16 %v764
  %v836 = vunpack.c.l.b16 %v765
  %v837 = vunpack.c.l.b16 %v766
  %v838 = vunpack.c.l.b16 %v767
  %v839 = vunpack.c.l.b16 %v768
  %v840 = vunpack.c.l.b16 %v769
  %v841 = vunpack.c.l.b16 %v770
  %v842 = vunpack.c.l.b16 %v771
  %v843 = vunpack.c.l.b16 %v772
  %v844 = vunpack.c.l.b16 %v773
  %v845 = vunpack.c.l.b16 %v774
  %v846 = vunpack.c.l.b16 %v775
  %v847 = vunpack.c.l.b16 %v776
  %v848 = vunpack.c.l.b16 %v777
  %v849 = vunpack.c.l.b16 %v778
  %v850 = vunpack.c.l.b16 %v779
  %v851 = vunpack.c.l.b16 %v780
  %v852 = vpack.c.b16 %v821, %v820
  %v853 = vpack.c.b16 %v823, %v822
  %v854 = vpack.c.b16 %v825, %v824
  %v855 = vpack.c.b16 %v827, %v826
  %v856 = vpack.c.b16 %v829, %v828
  %v857 = vpack.c.b16 %v831, %v830
  %v858 = vpack.c.b16 %v833, %v832
  %v859 = vpack.c.b16 %v835, %v834
  %v860 = vpack.c.b16 %v837, %v836
  %v861 = vpack.c.b16 %v839, %v838
  %v862 = vpack.c.b16 %v841, %v840
  %v863 = vpack.c.b16 %v843, %v842
  %v864 = vpack.c.b16 %v845, %v844
  %v865 = vpack.c.b16 %v847, %v846
  %v866 = vpack.c.b16 %v849, %v848
  %v867 = vpack.c.b16 %v851, %v850
  %884 = vmatprep.subr.bf16.mxu0 0
  %885 = vmatpush1.bf16.msra.mxu0 %v859
  %886 = vmatprep.subr.bf16.mxu0 0
  %887 = vmatpush1.bf16.msra.mxu0 %v858
  %888 = vmatprep.subr.bf16.mxu0 0
  %889 = vmatpush1.bf16.msra.mxu0 %v857
  %890 = vmatprep.subr.bf16.mxu0 0
  %891 = vmatpush1.bf16.msra.mxu0 %v856
  %892 = vmatprep.subr.bf16.mxu0 0
  %893 = vmatpush1.bf16.msra.mxu0 %v855
  %894 = vmatprep.subr.bf16.mxu0 0
  %895 = vmatpush1.bf16.msra.mxu0 %v854
  %896 = vmatprep.subr.bf16.mxu0 0
  %897 = vmatpush1.bf16.msra.mxu0 %v853
  %898 = vmatprep.subr.bf16.mxu0 0
  %899 = vmatpush1.bf16.msra.mxu0 %v852
  %900 = vmatprep.subr.bf16.mxu0 0
  %901 = vmatpush2.bf16.msra.mxu0 %v867
  %902 = vmatprep.subr.bf16.mxu0 0
  %903 = vmatpush2.bf16.msra.mxu0 %v866
  %904 = vmatprep.subr.bf16.mxu0 0
  %905 = vmatpush2.bf16.msra.mxu0 %v865
  %906 = vmatprep.subr.bf16.mxu0 0
  %907 = vmatpush2.bf16.msra.mxu0 %v864
  %908 = vmatprep.subr.bf16.mxu0 0
  %909 = vmatpush2.bf16.msra.mxu0 %v863
  %910 = vmatprep.subr.bf16.mxu0 0
  %911 = vmatpush2.bf16.msra.mxu0 %v862
  %912 = vmatprep.subr.bf16.mxu0 0
  %913 = vmatpush2.bf16.msra.mxu0 %v861
  %914 = vmatprep.subr.bf16.mxu0 0
  %915 = vmatpush2.bf16.msra.mxu0 %v860
  %916 = vmatprep.mubr.bf16.mxu0 %v748
  %917 = vmatmul.mubr.bf16.gmra.mxu0 %v747
  %v918 = vpop.f32.mrf.mxu0
  %v919 = vadd.f32 %v786, %v918
  %v920 = vpop.f32.mrf.mxu0
  %v921 = vpop.f32.mrf.mxu0
  %v922 = vadd.f32 %v786, %v921
  %v923 = vpop.f32.mrf.mxu0
  %924 = vdwg.mxu0
  %v925 = vlaneseq
  %v926 = vshrl.u32 %v925, 7
  %v927 = vsub.s32 0, %v926
  %v928 = vrot.slane %v145, %v927
  %930 = vbcast.lane.b32.xlu0 %v928, 256
  %v931 = vpop.permute.xlu0 %930
  %s933 = sor.u32 256, 8
  %934 = vbcast.lane.b32.xlu0 %v928, %s933
  %v935 = vpop.permute.xlu0 %934
  %v936 = vlaneseq
  %v937 = vshrl.u32 %v936, 7
  %v938 = vsub.s32 1, %v937
  %v939 = vrot.slane %v145, %v938
  %941 = vbcast.lane.b32.xlu0 %v939, 256
  %v942 = vpop.permute.xlu0 %941
  %s944 = sor.u32 256, 8
  %945 = vbcast.lane.b32.xlu0 %v939, %s944
  %v946 = vpop.permute.xlu0 %945
  %v947 = vlaneseq
  %v948 = vshrl.u32 %v947, 7
  %v949 = vsub.s32 2, %v948
  %v950 = vrot.slane %v145, %v949
  %952 = vbcast.lane.b32.xlu0 %v950, 256
  %v953 = vpop.permute.xlu0 %952
  %s955 = sor.u32 256, 8
  %956 = vbcast.lane.b32.xlu0 %v950, %s955
  %v957 = vpop.permute.xlu0 %956
  %v958 = vlaneseq
  %v959 = vshrl.u32 %v958, 7
  %v960 = vsub.s32 3, %v959
  %v961 = vrot.slane %v145, %v960
  %963 = vbcast.lane.b32.xlu0 %v961, 256
  %v964 = vpop.permute.xlu0 %963
  %s966 = sor.u32 256, 8
  %967 = vbcast.lane.b32.xlu0 %v961, %s966
  %v968 = vpop.permute.xlu0 %967
  %v969 = vlaneseq
  %v970 = vshrl.u32 %v969, 7
  %v971 = vsub.s32 4, %v970
  %v972 = vrot.slane %v145, %v971
  %974 = vbcast.lane.b32.xlu0 %v972, 256
  %v975 = vpop.permute.xlu0 %974
  %s977 = sor.u32 256, 8
  %978 = vbcast.lane.b32.xlu0 %v972, %s977
  %v979 = vpop.permute.xlu0 %978
  %v980 = vlaneseq
  %v981 = vshrl.u32 %v980, 7
  %v982 = vsub.s32 5, %v981
  %v983 = vrot.slane %v145, %v982
  %985 = vbcast.lane.b32.xlu0 %v983, 256
  %v986 = vpop.permute.xlu0 %985
  %s988 = sor.u32 256, 8
  %989 = vbcast.lane.b32.xlu0 %v983, %s988
  %v990 = vpop.permute.xlu0 %989
  %v991 = vlaneseq
  %v992 = vshrl.u32 %v991, 7
  %v993 = vsub.s32 6, %v992
  %v994 = vrot.slane %v145, %v993
  %996 = vbcast.lane.b32.xlu0 %v994, 256
  %v997 = vpop.permute.xlu0 %996
  %s999 = sor.u32 256, 8
  %1000 = vbcast.lane.b32.xlu0 %v994, %s999
  %v1001 = vpop.permute.xlu0 %1000
  %v1002 = vlaneseq
  %v1003 = vshrl.u32 %v1002, 7
  %v1004 = vsub.s32 7, %v1003
  %v1005 = vrot.slane %v145, %v1004
  %1007 = vbcast.lane.b32.xlu0 %v1005, 256
  %v1008 = vpop.permute.xlu0 %1007
  %s1010 = sor.u32 256, 8
  %1011 = vbcast.lane.b32.xlu0 %v1005, %s1010
  %v1012 = vpop.permute.xlu0 %1011
  %v1013 = vlaneseq
  %v1014 = vshrl.u32 %v1013, 7
  %v1015 = vsub.s32 0, %v1014
  %v1016 = vrot.slane %v146, %v1015
  %1018 = vbcast.lane.b32.xlu0 %v1016, 256
  %v1019 = vpop.permute.xlu0 %1018
  %s1021 = sor.u32 256, 8
  %1022 = vbcast.lane.b32.xlu0 %v1016, %s1021
  %v1023 = vpop.permute.xlu0 %1022
  %v1024 = vlaneseq
  %v1025 = vshrl.u32 %v1024, 7
  %v1026 = vsub.s32 1, %v1025
  %v1027 = vrot.slane %v146, %v1026
  %1029 = vbcast.lane.b32.xlu0 %v1027, 256
  %v1030 = vpop.permute.xlu0 %1029
  %s1032 = sor.u32 256, 8
  %1033 = vbcast.lane.b32.xlu0 %v1027, %s1032
  %v1034 = vpop.permute.xlu0 %1033
  %v1035 = vlaneseq
  %v1036 = vshrl.u32 %v1035, 7
  %v1037 = vsub.s32 2, %v1036
  %v1038 = vrot.slane %v146, %v1037
  %1040 = vbcast.lane.b32.xlu0 %v1038, 256
  %v1041 = vpop.permute.xlu0 %1040
  %s1043 = sor.u32 256, 8
  %1044 = vbcast.lane.b32.xlu0 %v1038, %s1043
  %v1045 = vpop.permute.xlu0 %1044
  %v1046 = vlaneseq
  %v1047 = vshrl.u32 %v1046, 7
  %v1048 = vsub.s32 3, %v1047
  %v1049 = vrot.slane %v146, %v1048
  %1051 = vbcast.lane.b32.xlu0 %v1049, 256
  %v1052 = vpop.permute.xlu0 %1051
  %s1054 = sor.u32 256, 8
  %1055 = vbcast.lane.b32.xlu0 %v1049, %s1054
  %v1056 = vpop.permute.xlu0 %1055
  %v1057 = vlaneseq
  %v1058 = vshrl.u32 %v1057, 7
  %v1059 = vsub.s32 4, %v1058
  %v1060 = vrot.slane %v146, %v1059
  %1062 = vbcast.lane.b32.xlu0 %v1060, 256
  %v1063 = vpop.permute.xlu0 %1062
  %s1065 = sor.u32 256, 8
  %1066 = vbcast.lane.b32.xlu0 %v1060, %s1065
  %v1067 = vpop.permute.xlu0 %1066
  %v1068 = vlaneseq
  %v1069 = vshrl.u32 %v1068, 7
  %v1070 = vsub.s32 5, %v1069
  %v1071 = vrot.slane %v146, %v1070
  %1073 = vbcast.lane.b32.xlu0 %v1071, 256
  %v1074 = vpop.permute.xlu0 %1073
  %s1076 = sor.u32 256, 8
  %1077 = vbcast.lane.b32.xlu0 %v1071, %s1076
  %v1078 = vpop.permute.xlu0 %1077
  %v1079 = vlaneseq
  %v1080 = vshrl.u32 %v1079, 7
  %v1081 = vsub.s32 6, %v1080
  %v1082 = vrot.slane %v146, %v1081
  %1084 = vbcast.lane.b32.xlu0 %v1082, 256
  %v1085 = vpop.permute.xlu0 %1084
  %s1087 = sor.u32 256, 8
  %1088 = vbcast.lane.b32.xlu0 %v1082, %s1087
  %v1089 = vpop.permute.xlu0 %1088
  %v1090 = vlaneseq
  %v1091 = vshrl.u32 %v1090, 7
  %v1092 = vsub.s32 7, %v1091
  %v1093 = vrot.slane %v146, %v1092
  %1095 = vbcast.lane.b32.xlu0 %v1093, 256
  %v1096 = vpop.permute.xlu0 %1095
  %s1098 = sor.u32 256, 8
  %1099 = vbcast.lane.b32.xlu0 %v1093, %s1098
  %v1100 = vpop.permute.xlu0 %1099
  %v1103 = vcombine.high %v919, %v919
  %v1105 = vunpack.c.l.s4 1966171168
  %v1106 = vunpack.c.0.s8 %v1105
  %v1107 = vlaneseq
  %v1108 = vshrl.u32 %v1107, 7
  %v1109 = vsub.s32 %v1106, %v1108
  %v1110 = vrot.slane %v919, %v1109
  %v1112 = vunpack.c.l.s4 1966171168
  %v1113 = vunpack.c.0.s8 %v1112
  %v1114 = vlaneseq
  %v1115 = vshrl.u32 %v1114, 7
  %v1116 = vsub.s32 %v1113, %v1115
  %v1117 = vrot.slane %v1103, %v1116
  %v1118 = vcombine.high %v1110, %v1110
  %v1119 = vcombine.high %v1117, %v1117
  %v1121 = vunpack.c.l.s4 1966171168
  %v1122 = vunpack.c.0.s8 %v1121
  %v1123 = vlaneseq
  %v1124 = vshrl.u32 %v1123, 7
  %v1125 = vsub.s32 %v1122, %v1124
  %v1126 = vrot.slane %v1110, %v1125
  %v1128 = vunpack.c.l.s4 1966171168
  %v1129 = vunpack.c.0.s8 %v1128
  %v1130 = vlaneseq
  %v1131 = vshrl.u32 %v1130, 7
  %v1132 = vsub.s32 %v1129, %v1131
  %v1133 = vrot.slane %v1117, %v1132
  %v1135 = vunpack.c.l.s4 1966171168
  %v1136 = vunpack.c.0.s8 %v1135
  %v1137 = vlaneseq
  %v1138 = vshrl.u32 %v1137, 7
  %v1139 = vsub.s32 %v1136, %v1138
  %v1140 = vrot.slane %v1118, %v1139
  %v1142 = vunpack.c.l.s4 1966171168
  %v1143 = vunpack.c.0.s8 %v1142
  %v1144 = vlaneseq
  %v1145 = vshrl.u32 %v1144, 7
  %v1146 = vsub.s32 %v1143, %v1145
  %v1147 = vrot.slane %v1119, %v1146
  %v1148 = vcombine.high %v1126, %v1126
  %v1149 = vcombine.high %v1133, %v1133
  %v1150 = vcombine.high %v1140, %v1140
  %v1151 = vcombine.high %v1147, %v1147
  %v1152 = vcombine.high %v922, %v922
  %v1154 = vunpack.c.l.s4 1966171168
  %v1155 = vunpack.c.0.s8 %v1154
  %v1156 = vlaneseq
  %v1157 = vshrl.u32 %v1156, 7
  %v1158 = vsub.s32 %v1155, %v1157
  %v1159 = vrot.slane %v922, %v1158
  %v1161 = vunpack.c.l.s4 1966171168
  %v1162 = vunpack.c.0.s8 %v1161
  %v1163 = vlaneseq
  %v1164 = vshrl.u32 %v1163, 7
  %v1165 = vsub.s32 %v1162, %v1164
  %v1166 = vrot.slane %v1152, %v1165
  %v1167 = vcombine.high %v1159, %v1159
  %v1168 = vcombine.high %v1166, %v1166
  %v1170 = vunpack.c.l.s4 1966171168
  %v1171 = vunpack.c.0.s8 %v1170
  %v1172 = vlaneseq
  %v1173 = vshrl.u32 %v1172, 7
  %v1174 = vsub.s32 %v1171, %v1173
  %v1175 = vrot.slane %v1159, %v1174
  %v1177 = vunpack.c.l.s4 1966171168
  %v1178 = vunpack.c.0.s8 %v1177
  %v1179 = vlaneseq
  %v1180 = vshrl.u32 %v1179, 7
  %v1181 = vsub.s32 %v1178, %v1180
  %v1182 = vrot.slane %v1166, %v1181
  %v1184 = vunpack.c.l.s4 1966171168
  %v1185 = vunpack.c.0.s8 %v1184
  %v1186 = vlaneseq
  %v1187 = vshrl.u32 %v1186, 7
  %v1188 = vsub.s32 %v1185, %v1187
  %v1189 = vrot.slane %v1167, %v1188
  %v1191 = vunpack.c.l.s4 1966171168
  %v1192 = vunpack.c.0.s8 %v1191
  %v1193 = vlaneseq
  %v1194 = vshrl.u32 %v1193, 7
  %v1195 = vsub.s32 %v1192, %v1194
  %v1196 = vrot.slane %v1168, %v1195
  %v1197 = vcombine.high %v1175, %v1175
  %v1198 = vcombine.high %v1182, %v1182
  %v1199 = vcombine.high %v1189, %v1189
  %v1200 = vcombine.high %v1196, %v1196
  %v1201 = vlaneseq
  %v1202 = vshrl.u32 %v1201, 7
  %v1203 = vsub.s32 0, %v1202
  %v1204 = vrot.slane %v1126, %v1203
  %v1205 = vlaneseq
  %v1206 = vshrl.u32 %v1205, 7
  %v1207 = vsub.s32 0, %v1206
  %v1208 = vrot.slane %v1140, %v1207
  %v1209 = vlaneseq
  %v1210 = vshrl.u32 %v1209, 7
  %v1211 = vsub.s32 0, %v1210
  %v1212 = vrot.slane %v1148, %v1211
  %v1213 = vlaneseq
  %v1214 = vshrl.u32 %v1213, 7
  %v1215 = vsub.s32 0, %v1214
  %v1216 = vrot.slane %v1150, %v1215
  %v1217 = vlaneseq
  %v1218 = vshrl.u32 %v1217, 7
  %v1219 = vsub.s32 0, %v1218
  %v1220 = vrot.slane %v1133, %v1219
  %v1221 = vlaneseq
  %v1222 = vshrl.u32 %v1221, 7
  %v1223 = vsub.s32 0, %v1222
  %v1224 = vrot.slane %v1147, %v1223
  %v1225 = vlaneseq
  %v1226 = vshrl.u32 %v1225, 7
  %v1227 = vsub.s32 0, %v1226
  %v1228 = vrot.slane %v1149, %v1227
  %v1229 = vlaneseq
  %v1230 = vshrl.u32 %v1229, 7
  %v1231 = vsub.s32 0, %v1230
  %v1232 = vrot.slane %v1151, %v1231
  %v1233 = vlaneseq
  %v1234 = vshrl.u32 %v1233, 7
  %v1235 = vsub.s32 0, %v1234
  %v1236 = vrot.slane %v1175, %v1235
  %v1237 = vlaneseq
  %v1238 = vshrl.u32 %v1237, 7
  %v1239 = vsub.s32 0, %v1238
  %v1240 = vrot.slane %v1189, %v1239
  %v1241 = vlaneseq
  %v1242 = vshrl.u32 %v1241, 7
  %v1243 = vsub.s32 0, %v1242
  %v1244 = vrot.slane %v1197, %v1243
  %v1245 = vlaneseq
  %v1246 = vshrl.u32 %v1245, 7
  %v1247 = vsub.s32 0, %v1246
  %v1248 = vrot.slane %v1199, %v1247
  %v1249 = vlaneseq
  %v1250 = vshrl.u32 %v1249, 7
  %v1251 = vsub.s32 0, %v1250
  %v1252 = vrot.slane %v1182, %v1251
  %v1253 = vlaneseq
  %v1254 = vshrl.u32 %v1253, 7
  %v1255 = vsub.s32 0, %v1254
  %v1256 = vrot.slane %v1196, %v1255
  %v1257 = vlaneseq
  %v1258 = vshrl.u32 %v1257, 7
  %v1259 = vsub.s32 0, %v1258
  %v1260 = vrot.slane %v1198, %v1259
  %v1261 = vlaneseq
  %v1262 = vshrl.u32 %v1261, 7
  %v1263 = vsub.s32 0, %v1262
  %v1264 = vrot.slane %v1200, %v1263
  %v1281 = vmul.f32 %v931, %v1204
  %v1282 = vmul.f32 %v935, %v1204
  %v1283 = vmul.f32 %v942, %v1208
  %v1284 = vmul.f32 %v946, %v1208
  %v1285 = vmul.f32 %v953, %v1212
  %v1286 = vmul.f32 %v957, %v1212
  %v1287 = vmul.f32 %v964, %v1216
  %v1288 = vmul.f32 %v968, %v1216
  %v1289 = vmul.f32 %v975, %v1220
  %v1290 = vmul.f32 %v979, %v1220
  %v1291 = vmul.f32 %v986, %v1224
  %v1292 = vmul.f32 %v990, %v1224
  %v1293 = vmul.f32 %v997, %v1228
  %v1294 = vmul.f32 %v1001, %v1228
  %v1295 = vmul.f32 %v1008, %v1232
  %v1296 = vmul.f32 %v1012, %v1232
  %v1297 = vmul.f32 %v1019, %v1236
  %v1298 = vmul.f32 %v1023, %v1236
  %v1299 = vmul.f32 %v1030, %v1240
  %v1300 = vmul.f32 %v1034, %v1240
  %v1301 = vmul.f32 %v1041, %v1244
  %v1302 = vmul.f32 %v1045, %v1244
  %v1303 = vmul.f32 %v1052, %v1248
  %v1304 = vmul.f32 %v1056, %v1248
  %v1305 = vmul.f32 %v1063, %v1252
  %v1306 = vmul.f32 %v1067, %v1252
  %v1307 = vmul.f32 %v1074, %v1256
  %v1308 = vmul.f32 %v1078, %v1256
  %v1309 = vmul.f32 %v1085, %v1260
  %v1310 = vmul.f32 %v1089, %v1260
  %v1311 = vmul.f32 %v1096, %v1264
  %v1312 = vmul.f32 %v1100, %v1264
  %v1313 = vlaneseq
  %v1314 = vshrl.u32 %v1313, 7
  %v1315 = vsub.s32 0, %v1314
  %v1316 = vrot.slane %v147, %v1315
  %1318 = vbcast.lane.b32.xlu0 %v1316, 256
  %v1319 = vpop.permute.xlu0 %1318
  %s1321 = sor.u32 256, 8
  %1322 = vbcast.lane.b32.xlu0 %v1316, %s1321
  %v1323 = vpop.permute.xlu0 %1322
  %v1324 = vlaneseq
  %v1325 = vshrl.u32 %v1324, 7
  %v1326 = vsub.s32 1, %v1325
  %v1327 = vrot.slane %v147, %v1326
  %1329 = vbcast.lane.b32.xlu0 %v1327, 256
  %v1330 = vpop.permute.xlu0 %1329
  %s1332 = sor.u32 256, 8
  %1333 = vbcast.lane.b32.xlu0 %v1327, %s1332
  %v1334 = vpop.permute.xlu0 %1333
  %v1335 = vlaneseq
  %v1336 = vshrl.u32 %v1335, 7
  %v1337 = vsub.s32 2, %v1336
  %v1338 = vrot.slane %v147, %v1337
  %1340 = vbcast.lane.b32.xlu0 %v1338, 256
  %v1341 = vpop.permute.xlu0 %1340
  %s1343 = sor.u32 256, 8
  %1344 = vbcast.lane.b32.xlu0 %v1338, %s1343
  %v1345 = vpop.permute.xlu0 %1344
  %v1346 = vlaneseq
  %v1347 = vshrl.u32 %v1346, 7
  %v1348 = vsub.s32 3, %v1347
  %v1349 = vrot.slane %v147, %v1348
  %1351 = vbcast.lane.b32.xlu0 %v1349, 256
  %v1352 = vpop.permute.xlu0 %1351
  %s1354 = sor.u32 256, 8
  %1355 = vbcast.lane.b32.xlu0 %v1349, %s1354
  %v1356 = vpop.permute.xlu0 %1355
  %v1357 = vlaneseq
  %v1358 = vshrl.u32 %v1357, 7
  %v1359 = vsub.s32 4, %v1358
  %v1360 = vrot.slane %v147, %v1359
  %1362 = vbcast.lane.b32.xlu0 %v1360, 256
  %v1363 = vpop.permute.xlu0 %1362
  %s1365 = sor.u32 256, 8
  %1366 = vbcast.lane.b32.xlu0 %v1360, %s1365
  %v1367 = vpop.permute.xlu0 %1366
  %v1368 = vlaneseq
  %v1369 = vshrl.u32 %v1368, 7
  %v1370 = vsub.s32 5, %v1369
  %v1371 = vrot.slane %v147, %v1370
  %1373 = vbcast.lane.b32.xlu0 %v1371, 256
  %v1374 = vpop.permute.xlu0 %1373
  %s1376 = sor.u32 256, 8
  %1377 = vbcast.lane.b32.xlu0 %v1371, %s1376
  %v1378 = vpop.permute.xlu0 %1377
  %v1379 = vlaneseq
  %v1380 = vshrl.u32 %v1379, 7
  %v1381 = vsub.s32 6, %v1380
  %v1382 = vrot.slane %v147, %v1381
  %1384 = vbcast.lane.b32.xlu0 %v1382, 256
  %v1385 = vpop.permute.xlu0 %1384
  %s1387 = sor.u32 256, 8
  %1388 = vbcast.lane.b32.xlu0 %v1382, %s1387
  %v1389 = vpop.permute.xlu0 %1388
  %v1390 = vlaneseq
  %v1391 = vshrl.u32 %v1390, 7
  %v1392 = vsub.s32 7, %v1391
  %v1393 = vrot.slane %v147, %v1392
  %1395 = vbcast.lane.b32.xlu0 %v1393, 256
  %v1396 = vpop.permute.xlu0 %1395
  %s1398 = sor.u32 256, 8
  %1399 = vbcast.lane.b32.xlu0 %v1393, %s1398
  %v1400 = vpop.permute.xlu0 %1399
  %v1401 = vlaneseq
  %v1402 = vshrl.u32 %v1401, 7
  %v1403 = vsub.s32 0, %v1402
  %v1404 = vrot.slane %v148, %v1403
  %1406 = vbcast.lane.b32.xlu0 %v1404, 256
  %v1407 = vpop.permute.xlu0 %1406
  %s1409 = sor.u32 256, 8
  %1410 = vbcast.lane.b32.xlu0 %v1404, %s1409
  %v1411 = vpop.permute.xlu0 %1410
  %v1412 = vlaneseq
  %v1413 = vshrl.u32 %v1412, 7
  %v1414 = vsub.s32 1, %v1413
  %v1415 = vrot.slane %v148, %v1414
  %1417 = vbcast.lane.b32.xlu0 %v1415, 256
  %v1418 = vpop.permute.xlu0 %1417
  %s1420 = sor.u32 256, 8
  %1421 = vbcast.lane.b32.xlu0 %v1415, %s1420
  %v1422 = vpop.permute.xlu0 %1421
  %v1423 = vlaneseq
  %v1424 = vshrl.u32 %v1423, 7
  %v1425 = vsub.s32 2, %v1424
  %v1426 = vrot.slane %v148, %v1425
  %1428 = vbcast.lane.b32.xlu0 %v1426, 256
  %v1429 = vpop.permute.xlu0 %1428
  %s1431 = sor.u32 256, 8
  %1432 = vbcast.lane.b32.xlu0 %v1426, %s1431
  %v1433 = vpop.permute.xlu0 %1432
  %v1434 = vlaneseq
  %v1435 = vshrl.u32 %v1434, 7
  %v1436 = vsub.s32 3, %v1435
  %v1437 = vrot.slane %v148, %v1436
  %1439 = vbcast.lane.b32.xlu0 %v1437, 256
  %v1440 = vpop.permute.xlu0 %1439
  %s1442 = sor.u32 256, 8
  %1443 = vbcast.lane.b32.xlu0 %v1437, %s1442
  %v1444 = vpop.permute.xlu0 %1443
  %v1445 = vlaneseq
  %v1446 = vshrl.u32 %v1445, 7
  %v1447 = vsub.s32 4, %v1446
  %v1448 = vrot.slane %v148, %v1447
  %1450 = vbcast.lane.b32.xlu0 %v1448, 256
  %v1451 = vpop.permute.xlu0 %1450
  %s1453 = sor.u32 256, 8
  %1454 = vbcast.lane.b32.xlu0 %v1448, %s1453
  %v1455 = vpop.permute.xlu0 %1454
  %v1456 = vlaneseq
  %v1457 = vshrl.u32 %v1456, 7
  %v1458 = vsub.s32 5, %v1457
  %v1459 = vrot.slane %v148, %v1458
  %1461 = vbcast.lane.b32.xlu0 %v1459, 256
  %v1462 = vpop.permute.xlu0 %1461
  %s1464 = sor.u32 256, 8
  %1465 = vbcast.lane.b32.xlu0 %v1459, %s1464
  %v1466 = vpop.permute.xlu0 %1465
  %v1467 = vlaneseq
  %v1468 = vshrl.u32 %v1467, 7
  %v1469 = vsub.s32 6, %v1468
  %v1470 = vrot.slane %v148, %v1469
  %1472 = vbcast.lane.b32.xlu0 %v1470, 256
  %v1473 = vpop.permute.xlu0 %1472
  %s1475 = sor.u32 256, 8
  %1476 = vbcast.lane.b32.xlu0 %v1470, %s1475
  %v1477 = vpop.permute.xlu0 %1476
  %v1478 = vlaneseq
  %v1479 = vshrl.u32 %v1478, 7
  %v1480 = vsub.s32 7, %v1479
  %v1481 = vrot.slane %v148, %v1480
  %1483 = vbcast.lane.b32.xlu0 %v1481, 256
  %v1484 = vpop.permute.xlu0 %1483
  %s1486 = sor.u32 256, 8
  %1487 = vbcast.lane.b32.xlu0 %v1481, %s1486
  %v1488 = vpop.permute.xlu0 %1487
  %v1489 = vmul.f32 %v1319, %v1204
  %v1490 = vmul.f32 %v1323, %v1204
  %v1491 = vmul.f32 %v1330, %v1208
  %v1492 = vmul.f32 %v1334, %v1208
  %v1493 = vmul.f32 %v1341, %v1212
  %v1494 = vmul.f32 %v1345, %v1212
  %v1495 = vmul.f32 %v1352, %v1216
  %v1496 = vmul.f32 %v1356, %v1216
  %v1497 = vmul.f32 %v1363, %v1220
  %v1498 = vmul.f32 %v1367, %v1220
  %v1499 = vmul.f32 %v1374, %v1224
  %v1500 = vmul.f32 %v1378, %v1224
  %v1501 = vmul.f32 %v1385, %v1228
  %v1502 = vmul.f32 %v1389, %v1228
  %v1503 = vmul.f32 %v1396, %v1232
  %v1504 = vmul.f32 %v1400, %v1232
  %v1505 = vmul.f32 %v1407, %v1236
  %v1506 = vmul.f32 %v1411, %v1236
  %v1507 = vmul.f32 %v1418, %v1240
  %v1508 = vmul.f32 %v1422, %v1240
  %v1509 = vmul.f32 %v1429, %v1244
  %v1510 = vmul.f32 %v1433, %v1244
  %v1511 = vmul.f32 %v1440, %v1248
  %v1512 = vmul.f32 %v1444, %v1248
  %v1513 = vmul.f32 %v1451, %v1252
  %v1514 = vmul.f32 %v1455, %v1252
  %v1515 = vmul.f32 %v1462, %v1256
  %v1516 = vmul.f32 %v1466, %v1256
  %v1517 = vmul.f32 %v1473, %v1260
  %v1518 = vmul.f32 %v1477, %v1260
  %v1519 = vmul.f32 %v1484, %v1264
  %v1520 = vmul.f32 %v1488, %v1264
  %1553 = vrot.lane.b32.xlu0 %v1489, 120
  %v1554 = vpop.permute.xlu0 %1553
  %1555 = vrot.lane.b32.xlu0 %v1490, 120
  %v1556 = vpop.permute.xlu0 %1555
  %1557 = vrot.lane.b32.xlu0 %v1491, 120
  %v1558 = vpop.permute.xlu0 %1557
  %1559 = vrot.lane.b32.xlu0 %v1492, 120
  %v1560 = vpop.permute.xlu0 %1559
  %1561 = vrot.lane.b32.xlu0 %v1493, 120
  %v1562 = vpop.permute.xlu0 %1561
  %1563 = vrot.lane.b32.xlu0 %v1494, 120
  %v1564 = vpop.permute.xlu0 %1563
  %1565 = vrot.lane.b32.xlu0 %v1495, 120
  %v1566 = vpop.permute.xlu0 %1565
  %1567 = vrot.lane.b32.xlu0 %v1496, 120
  %v1568 = vpop.permute.xlu0 %1567
  %1569 = vrot.lane.b32.xlu0 %v1497, 120
  %v1570 = vpop.permute.xlu0 %1569
  %1571 = vrot.lane.b32.xlu0 %v1498, 120
  %v1572 = vpop.permute.xlu0 %1571
  %1573 = vrot.lane.b32.xlu0 %v1499, 120
  %v1574 = vpop.permute.xlu0 %1573
  %1575 = vrot.lane.b32.xlu0 %v1500, 120
  %v1576 = vpop.permute.xlu0 %1575
  %1577 = vrot.lane.b32.xlu0 %v1501, 120
  %v1578 = vpop.permute.xlu0 %1577
  %1579 = vrot.lane.b32.xlu0 %v1502, 120
  %v1580 = vpop.permute.xlu0 %1579
  %1581 = vrot.lane.b32.xlu0 %v1503, 120
  %v1582 = vpop.permute.xlu0 %1581
  %1583 = vrot.lane.b32.xlu0 %v1504, 120
  %v1584 = vpop.permute.xlu0 %1583
  %1585 = vrot.lane.b32.xlu0 %v1505, 120
  %v1586 = vpop.permute.xlu0 %1585
  %1587 = vrot.lane.b32.xlu0 %v1506, 120
  %v1588 = vpop.permute.xlu0 %1587
  %1589 = vrot.lane.b32.xlu0 %v1507, 120
  %v1590 = vpop.permute.xlu0 %1589
  %1591 = vrot.lane.b32.xlu0 %v1508, 120
  %v1592 = vpop.permute.xlu0 %1591
  %1593 = vrot.lane.b32.xlu0 %v1509, 120
  %v1594 = vpop.permute.xlu0 %1593
  %1595 = vrot.lane.b32.xlu0 %v1510, 120
  %v1596 = vpop.permute.xlu0 %1595
  %1597 = vrot.lane.b32.xlu0 %v1511, 120
  %v1598 = vpop.permute.xlu0 %1597
  %1599 = vrot.lane.b32.xlu0 %v1512, 120
  %v1600 = vpop.permute.xlu0 %1599
  %1601 = vrot.lane.b32.xlu0 %v1513, 120
  %v1602 = vpop.permute.xlu0 %1601
  %1603 = vrot.lane.b32.xlu0 %v1514, 120
  %v1604 = vpop.permute.xlu0 %1603
  %1605 = vrot.lane.b32.xlu0 %v1515, 120
  %v1606 = vpop.permute.xlu0 %1605
  %1607 = vrot.lane.b32.xlu0 %v1516, 120
  %v1608 = vpop.permute.xlu0 %1607
  %1609 = vrot.lane.b32.xlu0 %v1517, 120
  %v1610 = vpop.permute.xlu0 %1609
  %1611 = vrot.lane.b32.xlu0 %v1518, 120
  %v1612 = vpop.permute.xlu0 %1611
  %1613 = vrot.lane.b32.xlu0 %v1519, 120
  %v1614 = vpop.permute.xlu0 %1613
  %1615 = vrot.lane.b32.xlu0 %v1520, 120
  %v1616 = vpop.permute.xlu0 %1615
  %v1649 = vadd.f32 %v1281, %v1554
  %v1650 = vadd.f32 %v1282, %v1556
  %v1651 = vadd.f32 %v1283, %v1558
  %v1652 = vadd.f32 %v1284, %v1560
  %v1653 = vadd.f32 %v1285, %v1562
  %v1654 = vadd.f32 %v1286, %v1564
  %v1655 = vadd.f32 %v1287, %v1566
  %v1656 = vadd.f32 %v1288, %v1568
  %v1657 = vadd.f32 %v1289, %v1570
  %v1658 = vadd.f32 %v1290, %v1572
  %v1659 = vadd.f32 %v1291, %v1574
  %v1660 = vadd.f32 %v1292, %v1576
  %v1661 = vadd.f32 %v1293, %v1578
  %v1662 = vadd.f32 %v1294, %v1580
  %v1663 = vadd.f32 %v1295, %v1582
  %v1664 = vadd.f32 %v1296, %v1584
  %v1665 = vadd.f32 %v1297, %v1586
  %v1666 = vadd.f32 %v1298, %v1588
  %v1667 = vadd.f32 %v1299, %v1590
  %v1668 = vadd.f32 %v1300, %v1592
  %v1669 = vadd.f32 %v1301, %v1594
  %v1670 = vadd.f32 %v1302, %v1596
  %v1671 = vadd.f32 %v1303, %v1598
  %v1672 = vadd.f32 %v1304, %v1600
  %v1673 = vadd.f32 %v1305, %v1602
  %v1674 = vadd.f32 %v1306, %v1604
  %v1675 = vadd.f32 %v1307, %v1606
  %v1676 = vadd.f32 %v1308, %v1608
  %v1677 = vadd.f32 %v1309, %v1610
  %v1678 = vadd.f32 %v1310, %v1612
  %v1679 = vadd.f32 %v1311, %v1614
  %v1680 = vadd.f32 %v1312, %v1616
  %v1681 = vlaneseq
  %v1682 = vshrl.u32 %v1681, 7
  %v1683 = vsub.s32 0, %v1682
  %v1684 = vrot.slane %v149, %v1683
  %1686 = vbcast.lane.b32.xlu0 %v1684, 256
  %v1687 = vpop.permute.xlu0 %1686
  %s1689 = sor.u32 256, 8
  %1690 = vbcast.lane.b32.xlu0 %v1684, %s1689
  %v1691 = vpop.permute.xlu0 %1690
  %v1692 = vlaneseq
  %v1693 = vshrl.u32 %v1692, 7
  %v1694 = vsub.s32 1, %v1693
  %v1695 = vrot.slane %v149, %v1694
  %1697 = vbcast.lane.b32.xlu0 %v1695, 256
  %v1698 = vpop.permute.xlu0 %1697
  %s1700 = sor.u32 256, 8
  %1701 = vbcast.lane.b32.xlu0 %v1695, %s1700
  %v1702 = vpop.permute.xlu0 %1701
  %v1703 = vlaneseq
  %v1704 = vshrl.u32 %v1703, 7
  %v1705 = vsub.s32 2, %v1704
  %v1706 = vrot.slane %v149, %v1705
  %1708 = vbcast.lane.b32.xlu0 %v1706, 256
  %v1709 = vpop.permute.xlu0 %1708
  %s1711 = sor.u32 256, 8
  %1712 = vbcast.lane.b32.xlu0 %v1706, %s1711
  %v1713 = vpop.permute.xlu0 %1712
  %v1714 = vlaneseq
  %v1715 = vshrl.u32 %v1714, 7
  %v1716 = vsub.s32 3, %v1715
  %v1717 = vrot.slane %v149, %v1716
  %1719 = vbcast.lane.b32.xlu0 %v1717, 256
  %v1720 = vpop.permute.xlu0 %1719
  %s1722 = sor.u32 256, 8
  %1723 = vbcast.lane.b32.xlu0 %v1717, %s1722
  %v1724 = vpop.permute.xlu0 %1723
  %v1725 = vlaneseq
  %v1726 = vshrl.u32 %v1725, 7
  %v1727 = vsub.s32 4, %v1726
  %v1728 = vrot.slane %v149, %v1727
  %1730 = vbcast.lane.b32.xlu0 %v1728, 256
  %v1731 = vpop.permute.xlu0 %1730
  %s1733 = sor.u32 256, 8
  %1734 = vbcast.lane.b32.xlu0 %v1728, %s1733
  %v1735 = vpop.permute.xlu0 %1734
  %v1736 = vlaneseq
  %v1737 = vshrl.u32 %v1736, 7
  %v1738 = vsub.s32 5, %v1737
  %v1739 = vrot.slane %v149, %v1738
  %1741 = vbcast.lane.b32.xlu0 %v1739, 256
  %v1742 = vpop.permute.xlu0 %1741
  %s1744 = sor.u32 256, 8
  %1745 = vbcast.lane.b32.xlu0 %v1739, %s1744
  %v1746 = vpop.permute.xlu0 %1745
  %v1747 = vlaneseq
  %v1748 = vshrl.u32 %v1747, 7
  %v1749 = vsub.s32 6, %v1748
  %v1750 = vrot.slane %v149, %v1749
  %1752 = vbcast.lane.b32.xlu0 %v1750, 256
  %v1753 = vpop.permute.xlu0 %1752
  %s1755 = sor.u32 256, 8
  %1756 = vbcast.lane.b32.xlu0 %v1750, %s1755
  %v1757 = vpop.permute.xlu0 %1756
  %v1758 = vlaneseq
  %v1759 = vshrl.u32 %v1758, 7
  %v1760 = vsub.s32 7, %v1759
  %v1761 = vrot.slane %v149, %v1760
  %1763 = vbcast.lane.b32.xlu0 %v1761, 256
  %v1764 = vpop.permute.xlu0 %1763
  %s1766 = sor.u32 256, 8
  %1767 = vbcast.lane.b32.xlu0 %v1761, %s1766
  %v1768 = vpop.permute.xlu0 %1767
  %v1769 = vlaneseq
  %v1770 = vshrl.u32 %v1769, 7
  %v1771 = vsub.s32 0, %v1770
  %v1772 = vrot.slane %v150, %v1771
  %1774 = vbcast.lane.b32.xlu0 %v1772, 256
  %v1775 = vpop.permute.xlu0 %1774
  %s1777 = sor.u32 256, 8
  %1778 = vbcast.lane.b32.xlu0 %v1772, %s1777
  %v1779 = vpop.permute.xlu0 %1778
  %v1780 = vlaneseq
  %v1781 = vshrl.u32 %v1780, 7
  %v1782 = vsub.s32 1, %v1781
  %v1783 = vrot.slane %v150, %v1782
  %1785 = vbcast.lane.b32.xlu0 %v1783, 256
  %v1786 = vpop.permute.xlu0 %1785
  %s1788 = sor.u32 256, 8
  %1789 = vbcast.lane.b32.xlu0 %v1783, %s1788
  %v1790 = vpop.permute.xlu0 %1789
  %v1791 = vlaneseq
  %v1792 = vshrl.u32 %v1791, 7
  %v1793 = vsub.s32 2, %v1792
  %v1794 = vrot.slane %v150, %v1793
  %1796 = vbcast.lane.b32.xlu0 %v1794, 256
  %v1797 = vpop.permute.xlu0 %1796
  %s1799 = sor.u32 256, 8
  %1800 = vbcast.lane.b32.xlu0 %v1794, %s1799
  %v1801 = vpop.permute.xlu0 %1800
  %v1802 = vlaneseq
  %v1803 = vshrl.u32 %v1802, 7
  %v1804 = vsub.s32 3, %v1803
  %v1805 = vrot.slane %v150, %v1804
  %1807 = vbcast.lane.b32.xlu0 %v1805, 256
  %v1808 = vpop.permute.xlu0 %1807
  %s1810 = sor.u32 256, 8
  %1811 = vbcast.lane.b32.xlu0 %v1805, %s1810
  %v1812 = vpop.permute.xlu0 %1811
  %v1813 = vlaneseq
  %v1814 = vshrl.u32 %v1813, 7
  %v1815 = vsub.s32 4, %v1814
  %v1816 = vrot.slane %v150, %v1815
  %1818 = vbcast.lane.b32.xlu0 %v1816, 256
  %v1819 = vpop.permute.xlu0 %1818
  %s1821 = sor.u32 256, 8
  %1822 = vbcast.lane.b32.xlu0 %v1816, %s1821
  %v1823 = vpop.permute.xlu0 %1822
  %v1824 = vlaneseq
  %v1825 = vshrl.u32 %v1824, 7
  %v1826 = vsub.s32 5, %v1825
  %v1827 = vrot.slane %v150, %v1826
  %1829 = vbcast.lane.b32.xlu0 %v1827, 256
  %v1830 = vpop.permute.xlu0 %1829
  %s1832 = sor.u32 256, 8
  %1833 = vbcast.lane.b32.xlu0 %v1827, %s1832
  %v1834 = vpop.permute.xlu0 %1833
  %v1835 = vlaneseq
  %v1836 = vshrl.u32 %v1835, 7
  %v1837 = vsub.s32 6, %v1836
  %v1838 = vrot.slane %v150, %v1837
  %1840 = vbcast.lane.b32.xlu0 %v1838, 256
  %v1841 = vpop.permute.xlu0 %1840
  %s1843 = sor.u32 256, 8
  %1844 = vbcast.lane.b32.xlu0 %v1838, %s1843
  %v1845 = vpop.permute.xlu0 %1844
  %v1846 = vlaneseq
  %v1847 = vshrl.u32 %v1846, 7
  %v1848 = vsub.s32 7, %v1847
  %v1849 = vrot.slane %v150, %v1848
  %1851 = vbcast.lane.b32.xlu0 %v1849, 256
  %v1852 = vpop.permute.xlu0 %1851
  %s1854 = sor.u32 256, 8
  %1855 = vbcast.lane.b32.xlu0 %v1849, %s1854
  %v1856 = vpop.permute.xlu0 %1855
  %v1857 = vmul.f32 %v1687, %v1204
  %v1858 = vmul.f32 %v1691, %v1204
  %v1859 = vmul.f32 %v1698, %v1208
  %v1860 = vmul.f32 %v1702, %v1208
  %v1861 = vmul.f32 %v1709, %v1212
  %v1862 = vmul.f32 %v1713, %v1212
  %v1863 = vmul.f32 %v1720, %v1216
  %v1864 = vmul.f32 %v1724, %v1216
  %v1865 = vmul.f32 %v1731, %v1220
  %v1866 = vmul.f32 %v1735, %v1220
  %v1867 = vmul.f32 %v1742, %v1224
  %v1868 = vmul.f32 %v1746, %v1224
  %v1869 = vmul.f32 %v1753, %v1228
  %v1870 = vmul.f32 %v1757, %v1228
  %v1871 = vmul.f32 %v1764, %v1232
  %v1872 = vmul.f32 %v1768, %v1232
  %v1873 = vmul.f32 %v1775, %v1236
  %v1874 = vmul.f32 %v1779, %v1236
  %v1875 = vmul.f32 %v1786, %v1240
  %v1876 = vmul.f32 %v1790, %v1240
  %v1877 = vmul.f32 %v1797, %v1244
  %v1878 = vmul.f32 %v1801, %v1244
  %v1879 = vmul.f32 %v1808, %v1248
  %v1880 = vmul.f32 %v1812, %v1248
  %v1881 = vmul.f32 %v1819, %v1252
  %v1882 = vmul.f32 %v1823, %v1252
  %v1883 = vmul.f32 %v1830, %v1256
  %v1884 = vmul.f32 %v1834, %v1256
  %v1885 = vmul.f32 %v1841, %v1260
  %v1886 = vmul.f32 %v1845, %v1260
  %v1887 = vmul.f32 %v1852, %v1264
  %v1888 = vmul.f32 %v1856, %v1264
  %1921 = vrot.lane.b32.xlu0 %v1857, 112
  %v1922 = vpop.permute.xlu0 %1921
  %1923 = vrot.lane.b32.xlu0 %v1858, 112
  %v1924 = vpop.permute.xlu0 %1923
  %1925 = vrot.lane.b32.xlu0 %v1859, 112
  %v1926 = vpop.permute.xlu0 %1925
  %1927 = vrot.lane.b32.xlu0 %v1860, 112
  %v1928 = vpop.permute.xlu0 %1927
  %1929 = vrot.lane.b32.xlu0 %v1861, 112
  %v1930 = vpop.permute.xlu0 %1929
  %1931 = vrot.lane.b32.xlu0 %v1862, 112
  %v1932 = vpop.permute.xlu0 %1931
  %1933 = vrot.lane.b32.xlu0 %v1863, 112
  %v1934 = vpop.permute.xlu0 %1933
  %1935 = vrot.lane.b32.xlu0 %v1864, 112
  %v1936 = vpop.permute.xlu0 %1935
  %1937 = vrot.lane.b32.xlu0 %v1865, 112
  %v1938 = vpop.permute.xlu0 %1937
  %1939 = vrot.lane.b32.xlu0 %v1866, 112
  %v1940 = vpop.permute.xlu0 %1939
  %1941 = vrot.lane.b32.xlu0 %v1867, 112
  %v1942 = vpop.permute.xlu0 %1941
  %1943 = vrot.lane.b32.xlu0 %v1868, 112
  %v1944 = vpop.permute.xlu0 %1943
  %1945 = vrot.lane.b32.xlu0 %v1869, 112
  %v1946 = vpop.permute.xlu0 %1945
  %1947 = vrot.lane.b32.xlu0 %v1870, 112
  %v1948 = vpop.permute.xlu0 %1947
  %1949 = vrot.lane.b32.xlu0 %v1871, 112
  %v1950 = vpop.permute.xlu0 %1949
  %1951 = vrot.lane.b32.xlu0 %v1872, 112
  %v1952 = vpop.permute.xlu0 %1951
  %1953 = vrot.lane.b32.xlu0 %v1873, 112
  %v1954 = vpop.permute.xlu0 %1953
  %1955 = vrot.lane.b32.xlu0 %v1874, 112
  %v1956 = vpop.permute.xlu0 %1955
  %1957 = vrot.lane.b32.xlu0 %v1875, 112
  %v1958 = vpop.permute.xlu0 %1957
  %1959 = vrot.lane.b32.xlu0 %v1876, 112
  %v1960 = vpop.permute.xlu0 %1959
  %1961 = vrot.lane.b32.xlu0 %v1877, 112
  %v1962 = vpop.permute.xlu0 %1961
  %1963 = vrot.lane.b32.xlu0 %v1878, 112
  %v1964 = vpop.permute.xlu0 %1963
  %1965 = vrot.lane.b32.xlu0 %v1879, 112
  %v1966 = vpop.permute.xlu0 %1965
  %1967 = vrot.lane.b32.xlu0 %v1880, 112
  %v1968 = vpop.permute.xlu0 %1967
  %1969 = vrot.lane.b32.xlu0 %v1881, 112
  %v1970 = vpop.permute.xlu0 %1969
  %1971 = vrot.lane.b32.xlu0 %v1882, 112
  %v1972 = vpop.permute.xlu0 %1971
  %1973 = vrot.lane.b32.xlu0 %v1883, 112
  %v1974 = vpop.permute.xlu0 %1973
  %1975 = vrot.lane.b32.xlu0 %v1884, 112
  %v1976 = vpop.permute.xlu0 %1975
  %1977 = vrot.lane.b32.xlu0 %v1885, 112
  %v1978 = vpop.permute.xlu0 %1977
  %1979 = vrot.lane.b32.xlu0 %v1886, 112
  %v1980 = vpop.permute.xlu0 %1979
  %1981 = vrot.lane.b32.xlu0 %v1887, 112
  %v1982 = vpop.permute.xlu0 %1981
  %1983 = vrot.lane.b32.xlu0 %v1888, 112
  %v1984 = vpop.permute.xlu0 %1983
  %v2017 = vadd.f32 %v1649, %v1922
  %v2018 = vadd.f32 %v1650, %v1924
  %v2019 = vadd.f32 %v1651, %v1926
  %v2020 = vadd.f32 %v1652, %v1928
  %v2021 = vadd.f32 %v1653, %v1930
  %v2022 = vadd.f32 %v1654, %v1932
  %v2023 = vadd.f32 %v1655, %v1934
  %v2024 = vadd.f32 %v1656, %v1936
  %v2025 = vadd.f32 %v1657, %v1938
  %v2026 = vadd.f32 %v1658, %v1940
  %v2027 = vadd.f32 %v1659, %v1942
  %v2028 = vadd.f32 %v1660, %v1944
  %v2029 = vadd.f32 %v1661, %v1946
  %v2030 = vadd.f32 %v1662, %v1948
  %v2031 = vadd.f32 %v1663, %v1950
  %v2032 = vadd.f32 %v1664, %v1952
  %v2033 = vadd.f32 %v1665, %v1954
  %v2034 = vadd.f32 %v1666, %v1956
  %v2035 = vadd.f32 %v1667, %v1958
  %v2036 = vadd.f32 %v1668, %v1960
  %v2037 = vadd.f32 %v1669, %v1962
  %v2038 = vadd.f32 %v1670, %v1964
  %v2039 = vadd.f32 %v1671, %v1966
  %v2040 = vadd.f32 %v1672, %v1968
  %v2041 = vadd.f32 %v1673, %v1970
  %v2042 = vadd.f32 %v1674, %v1972
  %v2043 = vadd.f32 %v1675, %v1974
  %v2044 = vadd.f32 %v1676, %v1976
  %v2045 = vadd.f32 %v1677, %v1978
  %v2046 = vadd.f32 %v1678, %v1980
  %v2047 = vadd.f32 %v1679, %v1982
  %v2048 = vadd.f32 %v1680, %v1984
  %v2049 = vlaneseq
  %v2050 = vshrl.u32 %v2049, 7
  %v2051 = vsub.s32 0, %v2050
  %v2052 = vrot.slane %v151, %v2051
  %2054 = vbcast.lane.b32.xlu0 %v2052, 256
  %v2055 = vpop.permute.xlu0 %2054
  %s2057 = sor.u32 256, 8
  %2058 = vbcast.lane.b32.xlu0 %v2052, %s2057
  %v2059 = vpop.permute.xlu0 %2058
  %v2060 = vlaneseq
  %v2061 = vshrl.u32 %v2060, 7
  %v2062 = vsub.s32 1, %v2061
  %v2063 = vrot.slane %v151, %v2062
  %2065 = vbcast.lane.b32.xlu0 %v2063, 256
  %v2066 = vpop.permute.xlu0 %2065
  %s2068 = sor.u32 256, 8
  %2069 = vbcast.lane.b32.xlu0 %v2063, %s2068
  %v2070 = vpop.permute.xlu0 %2069
  %v2071 = vlaneseq
  %v2072 = vshrl.u32 %v2071, 7
  %v2073 = vsub.s32 2, %v2072
  %v2074 = vrot.slane %v151, %v2073
  %2076 = vbcast.lane.b32.xlu0 %v2074, 256
  %v2077 = vpop.permute.xlu0 %2076
  %s2079 = sor.u32 256, 8
  %2080 = vbcast.lane.b32.xlu0 %v2074, %s2079
  %v2081 = vpop.permute.xlu0 %2080
  %v2082 = vlaneseq
  %v2083 = vshrl.u32 %v2082, 7
  %v2084 = vsub.s32 3, %v2083
  %v2085 = vrot.slane %v151, %v2084
  %2087 = vbcast.lane.b32.xlu0 %v2085, 256
  %v2088 = vpop.permute.xlu0 %2087
  %s2090 = sor.u32 256, 8
  %2091 = vbcast.lane.b32.xlu0 %v2085, %s2090
  %v2092 = vpop.permute.xlu0 %2091
  %v2093 = vlaneseq
  %v2094 = vshrl.u32 %v2093, 7
  %v2095 = vsub.s32 4, %v2094
  %v2096 = vrot.slane %v151, %v2095
  %2098 = vbcast.lane.b32.xlu0 %v2096, 256
  %v2099 = vpop.permute.xlu0 %2098
  %s2101 = sor.u32 256, 8
  %2102 = vbcast.lane.b32.xlu0 %v2096, %s2101
  %v2103 = vpop.permute.xlu0 %2102
  %v2104 = vlaneseq
  %v2105 = vshrl.u32 %v2104, 7
  %v2106 = vsub.s32 5, %v2105
  %v2107 = vrot.slane %v151, %v2106
  %2109 = vbcast.lane.b32.xlu0 %v2107, 256
  %v2110 = vpop.permute.xlu0 %2109
  %s2112 = sor.u32 256, 8
  %2113 = vbcast.lane.b32.xlu0 %v2107, %s2112
  %v2114 = vpop.permute.xlu0 %2113
  %v2115 = vlaneseq
  %v2116 = vshrl.u32 %v2115, 7
  %v2117 = vsub.s32 6, %v2116
  %v2118 = vrot.slane %v151, %v2117
  %2120 = vbcast.lane.b32.xlu0 %v2118, 256
  %v2121 = vpop.permute.xlu0 %2120
  %s2123 = sor.u32 256, 8
  %2124 = vbcast.lane.b32.xlu0 %v2118, %s2123
  %v2125 = vpop.permute.xlu0 %2124
  %v2126 = vlaneseq
  %v2127 = vshrl.u32 %v2126, 7
  %v2128 = vsub.s32 7, %v2127
  %v2129 = vrot.slane %v151, %v2128
  %2131 = vbcast.lane.b32.xlu0 %v2129, 256
  %v2132 = vpop.permute.xlu0 %2131
  %s2134 = sor.u32 256, 8
  %2135 = vbcast.lane.b32.xlu0 %v2129, %s2134
  %v2136 = vpop.permute.xlu0 %2135
  %v2137 = vlaneseq
  %v2138 = vshrl.u32 %v2137, 7
  %v2139 = vsub.s32 0, %v2138
  %v2140 = vrot.slane %v152, %v2139
  %2142 = vbcast.lane.b32.xlu0 %v2140, 256
  %v2143 = vpop.permute.xlu0 %2142
  %s2145 = sor.u32 256, 8
  %2146 = vbcast.lane.b32.xlu0 %v2140, %s2145
  %v2147 = vpop.permute.xlu0 %2146
  %v2148 = vlaneseq
  %v2149 = vshrl.u32 %v2148, 7
  %v2150 = vsub.s32 1, %v2149
  %v2151 = vrot.slane %v152, %v2150
  %2153 = vbcast.lane.b32.xlu0 %v2151, 256
  %v2154 = vpop.permute.xlu0 %2153
  %s2156 = sor.u32 256, 8
  %2157 = vbcast.lane.b32.xlu0 %v2151, %s2156
  %v2158 = vpop.permute.xlu0 %2157
  %v2159 = vlaneseq
  %v2160 = vshrl.u32 %v2159, 7
  %v2161 = vsub.s32 2, %v2160
  %v2162 = vrot.slane %v152, %v2161
  %2164 = vbcast.lane.b32.xlu0 %v2162, 256
  %v2165 = vpop.permute.xlu0 %2164
  %s2167 = sor.u32 256, 8
  %2168 = vbcast.lane.b32.xlu0 %v2162, %s2167
  %v2169 = vpop.permute.xlu0 %2168
  %v2170 = vlaneseq
  %v2171 = vshrl.u32 %v2170, 7
  %v2172 = vsub.s32 3, %v2171
  %v2173 = vrot.slane %v152, %v2172
  %2175 = vbcast.lane.b32.xlu0 %v2173, 256
  %v2176 = vpop.permute.xlu0 %2175
  %s2178 = sor.u32 256, 8
  %2179 = vbcast.lane.b32.xlu0 %v2173, %s2178
  %v2180 = vpop.permute.xlu0 %2179
  %v2181 = vlaneseq
  %v2182 = vshrl.u32 %v2181, 7
  %v2183 = vsub.s32 4, %v2182
  %v2184 = vrot.slane %v152, %v2183
  %2186 = vbcast.lane.b32.xlu0 %v2184, 256
  %v2187 = vpop.permute.xlu0 %2186
  %s2189 = sor.u32 256, 8
  %2190 = vbcast.lane.b32.xlu0 %v2184, %s2189
  %v2191 = vpop.permute.xlu0 %2190
  %v2192 = vlaneseq
  %v2193 = vshrl.u32 %v2192, 7
  %v2194 = vsub.s32 5, %v2193
  %v2195 = vrot.slane %v152, %v2194
  %2197 = vbcast.lane.b32.xlu0 %v2195, 256
  %v2198 = vpop.permute.xlu0 %2197
  %s2200 = sor.u32 256, 8
  %2201 = vbcast.lane.b32.xlu0 %v2195, %s2200
  %v2202 = vpop.permute.xlu0 %2201
  %v2203 = vlaneseq
  %v2204 = vshrl.u32 %v2203, 7
  %v2205 = vsub.s32 6, %v2204
  %v2206 = vrot.slane %v152, %v2205
  %2208 = vbcast.lane.b32.xlu0 %v2206, 256
  %v2209 = vpop.permute.xlu0 %2208
  %s2211 = sor.u32 256, 8
  %2212 = vbcast.lane.b32.xlu0 %v2206, %s2211
  %v2213 = vpop.permute.xlu0 %2212
  %v2214 = vlaneseq
  %v2215 = vshrl.u32 %v2214, 7
  %v2216 = vsub.s32 7, %v2215
  %v2217 = vrot.slane %v152, %v2216
  %2219 = vbcast.lane.b32.xlu0 %v2217, 256
  %v2220 = vpop.permute.xlu0 %2219
  %s2222 = sor.u32 256, 8
  %2223 = vbcast.lane.b32.xlu0 %v2217, %s2222
  %v2224 = vpop.permute.xlu0 %2223
  %v2225 = vmul.f32 %v2055, %v1204
  %v2226 = vmul.f32 %v2059, %v1204
  %v2227 = vmul.f32 %v2066, %v1208
  %v2228 = vmul.f32 %v2070, %v1208
  %v2229 = vmul.f32 %v2077, %v1212
  %v2230 = vmul.f32 %v2081, %v1212
  %v2231 = vmul.f32 %v2088, %v1216
  %v2232 = vmul.f32 %v2092, %v1216
  %v2233 = vmul.f32 %v2099, %v1220
  %v2234 = vmul.f32 %v2103, %v1220
  %v2235 = vmul.f32 %v2110, %v1224
  %v2236 = vmul.f32 %v2114, %v1224
  %v2237 = vmul.f32 %v2121, %v1228
  %v2238 = vmul.f32 %v2125, %v1228
  %v2239 = vmul.f32 %v2132, %v1232
  %v2240 = vmul.f32 %v2136, %v1232
  %v2241 = vmul.f32 %v2143, %v1236
  %v2242 = vmul.f32 %v2147, %v1236
  %v2243 = vmul.f32 %v2154, %v1240
  %v2244 = vmul.f32 %v2158, %v1240
  %v2245 = vmul.f32 %v2165, %v1244
  %v2246 = vmul.f32 %v2169, %v1244
  %v2247 = vmul.f32 %v2176, %v1248
  %v2248 = vmul.f32 %v2180, %v1248
  %v2249 = vmul.f32 %v2187, %v1252
  %v2250 = vmul.f32 %v2191, %v1252
  %v2251 = vmul.f32 %v2198, %v1256
  %v2252 = vmul.f32 %v2202, %v1256
  %v2253 = vmul.f32 %v2209, %v1260
  %v2254 = vmul.f32 %v2213, %v1260
  %v2255 = vmul.f32 %v2220, %v1264
  %v2256 = vmul.f32 %v2224, %v1264
  %2289 = vrot.lane.b32.xlu0 %v2225, 104
  %v2290 = vpop.permute.xlu0 %2289
  %2291 = vrot.lane.b32.xlu0 %v2226, 104
  %v2292 = vpop.permute.xlu0 %2291
  %2293 = vrot.lane.b32.xlu0 %v2227, 104
  %v2294 = vpop.permute.xlu0 %2293
  %2295 = vrot.lane.b32.xlu0 %v2228, 104
  %v2296 = vpop.permute.xlu0 %2295
  %2297 = vrot.lane.b32.xlu0 %v2229, 104
  %v2298 = vpop.permute.xlu0 %2297
  %2299 = vrot.lane.b32.xlu0 %v2230, 104
  %v2300 = vpop.permute.xlu0 %2299
  %2301 = vrot.lane.b32.xlu0 %v2231, 104
  %v2302 = vpop.permute.xlu0 %2301
  %2303 = vrot.lane.b32.xlu0 %v2232, 104
  %v2304 = vpop.permute.xlu0 %2303
  %2305 = vrot.lane.b32.xlu0 %v2233, 104
  %v2306 = vpop.permute.xlu0 %2305
  %2307 = vrot.lane.b32.xlu0 %v2234, 104
  %v2308 = vpop.permute.xlu0 %2307
  %2309 = vrot.lane.b32.xlu0 %v2235, 104
  %v2310 = vpop.permute.xlu0 %2309
  %2311 = vrot.lane.b32.xlu0 %v2236, 104
  %v2312 = vpop.permute.xlu0 %2311
  %2313 = vrot.lane.b32.xlu0 %v2237, 104
  %v2314 = vpop.permute.xlu0 %2313
  %2315 = vrot.lane.b32.xlu0 %v2238, 104
  %v2316 = vpop.permute.xlu0 %2315
  %2317 = vrot.lane.b32.xlu0 %v2239, 104
  %v2318 = vpop.permute.xlu0 %2317
  %2319 = vrot.lane.b32.xlu0 %v2240, 104
  %v2320 = vpop.permute.xlu0 %2319
  %2321 = vrot.lane.b32.xlu0 %v2241, 104
  %v2322 = vpop.permute.xlu0 %2321
  %2323 = vrot.lane.b32.xlu0 %v2242, 104
  %v2324 = vpop.permute.xlu0 %2323
  %2325 = vrot.lane.b32.xlu0 %v2243, 104
  %v2326 = vpop.permute.xlu0 %2325
  %2327 = vrot.lane.b32.xlu0 %v2244, 104
  %v2328 = vpop.permute.xlu0 %2327
  %2329 = vrot.lane.b32.xlu0 %v2245, 104
  %v2330 = vpop.permute.xlu0 %2329
  %2331 = vrot.lane.b32.xlu0 %v2246, 104
  %v2332 = vpop.permute.xlu0 %2331
  %2333 = vrot.lane.b32.xlu0 %v2247, 104
  %v2334 = vpop.permute.xlu0 %2333
  %2335 = vrot.lane.b32.xlu0 %v2248, 104
  %v2336 = vpop.permute.xlu0 %2335
  %2337 = vrot.lane.b32.xlu0 %v2249, 104
  %v2338 = vpop.permute.xlu0 %2337
  %2339 = vrot.lane.b32.xlu0 %v2250, 104
  %v2340 = vpop.permute.xlu0 %2339
  %2341 = vrot.lane.b32.xlu0 %v2251, 104
  %v2342 = vpop.permute.xlu0 %2341
  %2343 = vrot.lane.b32.xlu0 %v2252, 104
  %v2344 = vpop.permute.xlu0 %2343
  %2345 = vrot.lane.b32.xlu0 %v2253, 104
  %v2346 = vpop.permute.xlu0 %2345
  %2347 = vrot.lane.b32.xlu0 %v2254, 104
  %v2348 = vpop.permute.xlu0 %2347
  %2349 = vrot.lane.b32.xlu0 %v2255, 104
  %v2350 = vpop.permute.xlu0 %2349
  %2351 = vrot.lane.b32.xlu0 %v2256, 104
  %v2352 = vpop.permute.xlu0 %2351
  %v2385 = vadd.f32 %v2017, %v2290
  %v2386 = vadd.f32 %v2018, %v2292
  %v2387 = vadd.f32 %v2019, %v2294
  %v2388 = vadd.f32 %v2020, %v2296
  %v2389 = vadd.f32 %v2021, %v2298
  %v2390 = vadd.f32 %v2022, %v2300
  %v2391 = vadd.f32 %v2023, %v2302
  %v2392 = vadd.f32 %v2024, %v2304
  %v2393 = vadd.f32 %v2025, %v2306
  %v2394 = vadd.f32 %v2026, %v2308
  %v2395 = vadd.f32 %v2027, %v2310
  %v2396 = vadd.f32 %v2028, %v2312
  %v2397 = vadd.f32 %v2029, %v2314
  %v2398 = vadd.f32 %v2030, %v2316
  %v2399 = vadd.f32 %v2031, %v2318
  %v2400 = vadd.f32 %v2032, %v2320
  %v2401 = vadd.f32 %v2033, %v2322
  %v2402 = vadd.f32 %v2034, %v2324
  %v2403 = vadd.f32 %v2035, %v2326
  %v2404 = vadd.f32 %v2036, %v2328
  %v2405 = vadd.f32 %v2037, %v2330
  %v2406 = vadd.f32 %v2038, %v2332
  %v2407 = vadd.f32 %v2039, %v2334
  %v2408 = vadd.f32 %v2040, %v2336
  %v2409 = vadd.f32 %v2041, %v2338
  %v2410 = vadd.f32 %v2042, %v2340
  %v2411 = vadd.f32 %v2043, %v2342
  %v2412 = vadd.f32 %v2044, %v2344
  %v2413 = vadd.f32 %v2045, %v2346
  %v2414 = vadd.f32 %v2046, %v2348
  %v2415 = vadd.f32 %v2047, %v2350
  %v2416 = vadd.f32 %v2048, %v2352
  %v2417 = vsub.f32 %v2385, %v338
  %v2418 = vsub.f32 %v2386, %v339
  %v2419 = vsub.f32 %v2387, %v340
  %v2420 = vsub.f32 %v2388, %v341
  %v2421 = vsub.f32 %v2389, %v342
  %v2422 = vsub.f32 %v2390, %v343
  %v2423 = vsub.f32 %v2391, %v344
  %v2424 = vsub.f32 %v2392, %v345
  %v2425 = vsub.f32 %v2393, %v346
  %v2426 = vsub.f32 %v2394, %v347
  %v2427 = vsub.f32 %v2395, %v348
  %v2428 = vsub.f32 %v2396, %v349
  %v2429 = vsub.f32 %v2397, %v350
  %v2430 = vsub.f32 %v2398, %v351
  %v2431 = vsub.f32 %v2399, %v352
  %v2432 = vsub.f32 %v2400, %v353
  %v2433 = vsub.f32 %v2401, %v354
  %v2434 = vsub.f32 %v2402, %v355
  %v2435 = vsub.f32 %v2403, %v356
  %v2436 = vsub.f32 %v2404, %v357
  %v2437 = vsub.f32 %v2405, %v358
  %v2438 = vsub.f32 %v2406, %v359
  %v2439 = vsub.f32 %v2407, %v360
  %v2440 = vsub.f32 %v2408, %v361
  %v2441 = vsub.f32 %v2409, %v362
  %v2442 = vsub.f32 %v2410, %v363
  %v2443 = vsub.f32 %v2411, %v364
  %v2444 = vsub.f32 %v2412, %v365
  %v2445 = vsub.f32 %v2413, %v366
  %v2446 = vsub.f32 %v2414, %v367
  %v2447 = vsub.f32 %v2415, %v368
  %v2448 = vsub.f32 %v2416, %v369
  %vm2449 = vcmask 326912
  %v2450 = vsel %vm2449, %v2417, -inf
  %v2451 = vsel %vm2449, %v2419, -inf
  %v2452 = vsel %vm2449, %v2421, -inf
  %v2453 = vmax.f32 %v2450, %v2452
  %v2454 = vsel %vm2449, %v2423, -inf
  %v2455 = vmax.f32 %v2451, %v2454
  %v2456 = vsel %vm2449, %v2425, -inf
  %v2457 = vmax.f32 %v2453, %v2456
  %v2458 = vsel %vm2449, %v2427, -inf
  %v2459 = vmax.f32 %v2455, %v2458
  %v2460 = vsel %vm2449, %v2429, -inf
  %v2461 = vmax.f32 %v2457, %v2460
  %v2462 = vsel %vm2449, %v2431, -inf
  %v2463 = vmax.f32 %v2459, %v2462
  %v2464 = vsel %vm2449, %v2433, -inf
  %v2465 = vmax.f32 %v2461, %v2464
  %v2466 = vsel %vm2449, %v2435, -inf
  %v2467 = vmax.f32 %v2463, %v2466
  %v2468 = vsel %vm2449, %v2437, -inf
  %v2469 = vmax.f32 %v2465, %v2468
  %v2470 = vsel %vm2449, %v2439, -inf
  %v2471 = vmax.f32 %v2467, %v2470
  %v2472 = vsel %vm2449, %v2441, -inf
  %v2473 = vmax.f32 %v2469, %v2472
  %v2474 = vsel %vm2449, %v2443, -inf
  %v2475 = vmax.f32 %v2471, %v2474
  %v2476 = vsel %vm2449, %v2445, -inf
  %v2477 = vmax.f32 %v2473, %v2476
  %v2478 = vsel %vm2449, %v2447, -inf
  %v2479 = vmax.f32 %v2475, %v2478
  %v2480 = vmax.f32 %v2477, %v2479
  %v2481 = vsel %vm2449, %v2418, -inf
  %v2482 = vsel %vm2449, %v2420, -inf
  %v2483 = vsel %vm2449, %v2422, -inf
  %v2484 = vmax.f32 %v2481, %v2483
  %v2485 = vsel %vm2449, %v2424, -inf
  %v2486 = vmax.f32 %v2482, %v2485
  %v2487 = vsel %vm2449, %v2426, -inf
  %v2488 = vmax.f32 %v2484, %v2487
  %v2489 = vsel %vm2449, %v2428, -inf
  %v2490 = vmax.f32 %v2486, %v2489
  %v2491 = vsel %vm2449, %v2430, -inf
  %v2492 = vmax.f32 %v2488, %v2491
  %v2493 = vsel %vm2449, %v2432, -inf
  %v2494 = vmax.f32 %v2490, %v2493
  %v2495 = vsel %vm2449, %v2434, -inf
  %v2496 = vmax.f32 %v2492, %v2495
  %v2497 = vsel %vm2449, %v2436, -inf
  %v2498 = vmax.f32 %v2494, %v2497
  %v2499 = vsel %vm2449, %v2438, -inf
  %v2500 = vmax.f32 %v2496, %v2499
  %v2501 = vsel %vm2449, %v2440, -inf
  %v2502 = vmax.f32 %v2498, %v2501
  %v2503 = vsel %vm2449, %v2442, -inf
  %v2504 = vmax.f32 %v2500, %v2503
  %v2505 = vsel %vm2449, %v2444, -inf
  %v2506 = vmax.f32 %v2502, %v2505
  %v2507 = vsel %vm2449, %v2446, -inf
  %v2508 = vmax.f32 %v2504, %v2507
  %v2509 = vsel %vm2449, %v2448, -inf
  %v2510 = vmax.f32 %v2506, %v2509
  %v2511 = vmax.f32 %v2508, %v2510
  %v2512 = vsub.f32 %v2417, %v2480
  %v2513 = vsub.f32 %v2418, %v2511
  %v2514 = vsub.f32 %v2419, %v2480
  %v2515 = vsub.f32 %v2420, %v2511
  %v2516 = vsub.f32 %v2421, %v2480
  %v2517 = vsub.f32 %v2422, %v2511
  %v2518 = vsub.f32 %v2423, %v2480
  %v2519 = vsub.f32 %v2424, %v2511
  %v2520 = vsub.f32 %v2425, %v2480
  %v2521 = vsub.f32 %v2426, %v2511
  %v2522 = vsub.f32 %v2427, %v2480
  %v2523 = vsub.f32 %v2428, %v2511
  %v2524 = vsub.f32 %v2429, %v2480
  %v2525 = vsub.f32 %v2430, %v2511
  %v2526 = vsub.f32 %v2431, %v2480
  %v2527 = vsub.f32 %v2432, %v2511
  %v2528 = vsub.f32 %v2433, %v2480
  %v2529 = vsub.f32 %v2434, %v2511
  %v2530 = vsub.f32 %v2435, %v2480
  %v2531 = vsub.f32 %v2436, %v2511
  %v2532 = vsub.f32 %v2437, %v2480
  %v2533 = vsub.f32 %v2438, %v2511
  %v2534 = vsub.f32 %v2439, %v2480
  %v2535 = vsub.f32 %v2440, %v2511
  %v2536 = vsub.f32 %v2441, %v2480
  %v2537 = vsub.f32 %v2442, %v2511
  %v2538 = vsub.f32 %v2443, %v2480
  %v2539 = vsub.f32 %v2444, %v2511
  %v2540 = vsub.f32 %v2445, %v2480
  %v2541 = vsub.f32 %v2446, %v2511
  %v2542 = vsub.f32 %v2447, %v2480
  %v2543 = vsub.f32 %v2448, %v2511
  %v2544 = vmul.f32 %v2512, 1.442695
  %v2545 = vpow.pop %v2544
  %v2546 = vmul.f32 %v2513, 1.442695
  %v2547 = vpow.pop %v2546
  %v2548 = vmul.f32 %v2514, 1.442695
  %v2549 = vpow.pop %v2548
  %v2550 = vmul.f32 %v2515, 1.442695
  %v2551 = vpow.pop %v2550
  %v2552 = vmul.f32 %v2516, 1.442695
  %v2553 = vpow.pop %v2552
  %v2554 = vmul.f32 %v2517, 1.442695
  %v2555 = vpow.pop %v2554
  %v2556 = vmul.f32 %v2518, 1.442695
  %v2557 = vpow.pop %v2556
  %v2558 = vmul.f32 %v2519, 1.442695
  %v2559 = vpow.pop %v2558
  %v2560 = vmul.f32 %v2520, 1.442695
  %v2561 = vpow.pop %v2560
  %v2562 = vmul.f32 %v2521, 1.442695
  %v2563 = vpow.pop %v2562
  %v2564 = vmul.f32 %v2522, 1.442695
  %v2565 = vpow.pop %v2564
  %v2566 = vmul.f32 %v2523, 1.442695
  %v2567 = vpow.pop %v2566
  %v2568 = vmul.f32 %v2524, 1.442695
  %v2569 = vpow.pop %v2568
  %v2570 = vmul.f32 %v2525, 1.442695
  %v2571 = vpow.pop %v2570
  %v2572 = vmul.f32 %v2526, 1.442695
  %v2573 = vpow.pop %v2572
  %v2574 = vmul.f32 %v2527, 1.442695
  %v2575 = vpow.pop %v2574
  %v2576 = vmul.f32 %v2528, 1.442695
  %v2577 = vpow.pop %v2576
  %v2578 = vmul.f32 %v2529, 1.442695
  %v2579 = vpow.pop %v2578
  %v2580 = vmul.f32 %v2530, 1.442695
  %v2581 = vpow.pop %v2580
  %v2582 = vmul.f32 %v2531, 1.442695
  %v2583 = vpow.pop %v2582
  %v2584 = vmul.f32 %v2532, 1.442695
  %v2585 = vpow.pop %v2584
  %v2586 = vmul.f32 %v2533, 1.442695
  %v2587 = vpow.pop %v2586
  %v2588 = vmul.f32 %v2534, 1.442695
  %v2589 = vpow.pop %v2588
  %v2590 = vmul.f32 %v2535, 1.442695
  %v2591 = vpow.pop %v2590
  %v2592 = vmul.f32 %v2536, 1.442695
  %v2593 = vpow.pop %v2592
  %v2594 = vmul.f32 %v2537, 1.442695
  %v2595 = vpow.pop %v2594
  %v2596 = vmul.f32 %v2538, 1.442695
  %v2597 = vpow.pop %v2596
  %v2598 = vmul.f32 %v2539, 1.442695
  %v2599 = vpow.pop %v2598
  %v2600 = vmul.f32 %v2540, 1.442695
  %v2601 = vpow.pop %v2600
  %v2602 = vmul.f32 %v2541, 1.442695
  %v2603 = vpow.pop %v2602
  %v2604 = vmul.f32 %v2542, 1.442695
  %v2605 = vpow.pop %v2604
  %v2606 = vmul.f32 %v2543, 1.442695
  %v2607 = vpow.pop %v2606
  %v2608 = vsel %vm2449, %v2545, 0.0
  %v2609 = vsel %vm2449, %v2549, 0.0
  %v2610 = vadd.f32 %v2608, %v2609
  %v2611 = vsel %vm2449, %v2553, 0.0
  %v2612 = vadd.f32 %v2610, %v2611
  %v2613 = vsel %vm2449, %v2557, 0.0
  %v2614 = vadd.f32 %v2612, %v2613
  %v2615 = vsel %vm2449, %v2561, 0.0
  %v2616 = vadd.f32 %v2614, %v2615
  %v2617 = vsel %vm2449, %v2565, 0.0
  %v2618 = vadd.f32 %v2616, %v2617
  %v2619 = vsel %vm2449, %v2569, 0.0
  %v2620 = vadd.f32 %v2618, %v2619
  %v2621 = vsel %vm2449, %v2573, 0.0
  %v2622 = vadd.f32 %v2620, %v2621
  %v2623 = vsel %vm2449, %v2577, 0.0
  %v2624 = vadd.f32 %v2622, %v2623
  %v2625 = vsel %vm2449, %v2581, 0.0
  %v2626 = vadd.f32 %v2624, %v2625
  %v2627 = vsel %vm2449, %v2585, 0.0
  %v2628 = vadd.f32 %v2626, %v2627
  %v2629 = vsel %vm2449, %v2589, 0.0
  %v2630 = vadd.f32 %v2628, %v2629
  %v2631 = vsel %vm2449, %v2593, 0.0
  %v2632 = vadd.f32 %v2630, %v2631
  %v2633 = vsel %vm2449, %v2597, 0.0
  %v2634 = vadd.f32 %v2632, %v2633
  %v2635 = vsel %vm2449, %v2601, 0.0
  %v2636 = vadd.f32 %v2634, %v2635
  %v2637 = vsel %vm2449, %v2605, 0.0
  %v2638 = vadd.f32 %v2636, %v2637
  %v2639 = vsel %vm2449, %v2547, 0.0
  %v2640 = vsel %vm2449, %v2551, 0.0
  %v2641 = vadd.f32 %v2639, %v2640
  %v2642 = vsel %vm2449, %v2555, 0.0
  %v2643 = vadd.f32 %v2641, %v2642
  %v2644 = vsel %vm2449, %v2559, 0.0
  %v2645 = vadd.f32 %v2643, %v2644
  %v2646 = vsel %vm2449, %v2563, 0.0
  %v2647 = vadd.f32 %v2645, %v2646
  %v2648 = vsel %vm2449, %v2567, 0.0
  %v2649 = vadd.f32 %v2647, %v2648
  %v2650 = vsel %vm2449, %v2571, 0.0
  %v2651 = vadd.f32 %v2649, %v2650
  %v2652 = vsel %vm2449, %v2575, 0.0
  %v2653 = vadd.f32 %v2651, %v2652
  %v2654 = vsel %vm2449, %v2579, 0.0
  %v2655 = vadd.f32 %v2653, %v2654
  %v2656 = vsel %vm2449, %v2583, 0.0
  %v2657 = vadd.f32 %v2655, %v2656
  %v2658 = vsel %vm2449, %v2587, 0.0
  %v2659 = vadd.f32 %v2657, %v2658
  %v2660 = vsel %vm2449, %v2591, 0.0
  %v2661 = vadd.f32 %v2659, %v2660
  %v2662 = vsel %vm2449, %v2595, 0.0
  %v2663 = vadd.f32 %v2661, %v2662
  %v2664 = vsel %vm2449, %v2599, 0.0
  %v2665 = vadd.f32 %v2663, %v2664
  %v2666 = vsel %vm2449, %v2603, 0.0
  %v2667 = vadd.f32 %v2665, %v2666
  %v2668 = vsel %vm2449, %v2607, 0.0
  %v2669 = vadd.f32 %v2667, %v2668
  %v2670 = vrcp.pop %v2638
  %v2671 = vrcp.pop %v2669
  %v2672 = vmul.f32 %v2545, %v2670
  %v2673 = vmul.f32 %v2547, %v2671
  %v2674 = vmul.f32 %v2549, %v2670
  %v2675 = vmul.f32 %v2551, %v2671
  %v2676 = vmul.f32 %v2553, %v2670
  %v2677 = vmul.f32 %v2555, %v2671
  %v2678 = vmul.f32 %v2557, %v2670
  %v2679 = vmul.f32 %v2559, %v2671
  %v2680 = vmul.f32 %v2561, %v2670
  %v2681 = vmul.f32 %v2563, %v2671
  %v2682 = vmul.f32 %v2565, %v2670
  %v2683 = vmul.f32 %v2567, %v2671
  %v2684 = vmul.f32 %v2569, %v2670
  %v2685 = vmul.f32 %v2571, %v2671
  %v2686 = vmul.f32 %v2573, %v2670
  %v2687 = vmul.f32 %v2575, %v2671
  %v2688 = vmul.f32 %v2577, %v2670
  %v2689 = vmul.f32 %v2579, %v2671
  %v2690 = vmul.f32 %v2581, %v2670
  %v2691 = vmul.f32 %v2583, %v2671
  %v2692 = vmul.f32 %v2585, %v2670
  %v2693 = vmul.f32 %v2587, %v2671
  %v2694 = vmul.f32 %v2589, %v2670
  %v2695 = vmul.f32 %v2591, %v2671
  %v2696 = vmul.f32 %v2593, %v2670
  %v2697 = vmul.f32 %v2595, %v2671
  %v2698 = vmul.f32 %v2597, %v2670
  %v2699 = vmul.f32 %v2599, %v2671
  %v2700 = vmul.f32 %v2601, %v2670
  %v2701 = vmul.f32 %v2603, %v2671
  %v2702 = vmul.f32 %v2605, %v2670
  %v2703 = vmul.f32 %v2607, %v2671
  %2736 = vrot.lane.b32.xlu0 %v2385, 32
  %v2737 = vpop.permute.xlu0 %2736
  %2738 = vrot.lane.b32.xlu0 %v2386, 32
  %v2739 = vpop.permute.xlu0 %2738
  %2740 = vrot.lane.b32.xlu0 %v2387, 32
  %v2741 = vpop.permute.xlu0 %2740
  %2742 = vrot.lane.b32.xlu0 %v2388, 32
  %v2743 = vpop.permute.xlu0 %2742
  %2744 = vrot.lane.b32.xlu0 %v2389, 32
  %v2745 = vpop.permute.xlu0 %2744
  %2746 = vrot.lane.b32.xlu0 %v2390, 32
  %v2747 = vpop.permute.xlu0 %2746
  %2748 = vrot.lane.b32.xlu0 %v2391, 32
  %v2749 = vpop.permute.xlu0 %2748
  %2750 = vrot.lane.b32.xlu0 %v2392, 32
  %v2751 = vpop.permute.xlu0 %2750
  %2752 = vrot.lane.b32.xlu0 %v2393, 32
  %v2753 = vpop.permute.xlu0 %2752
  %2754 = vrot.lane.b32.xlu0 %v2394, 32
  %v2755 = vpop.permute.xlu0 %2754
  %2756 = vrot.lane.b32.xlu0 %v2395, 32
  %v2757 = vpop.permute.xlu0 %2756
  %2758 = vrot.lane.b32.xlu0 %v2396, 32
  %v2759 = vpop.permute.xlu0 %2758
  %2760 = vrot.lane.b32.xlu0 %v2397, 32
  %v2761 = vpop.permute.xlu0 %2760
  %2762 = vrot.lane.b32.xlu0 %v2398, 32
  %v2763 = vpop.permute.xlu0 %2762
  %2764 = vrot.lane.b32.xlu0 %v2399, 32
  %v2765 = vpop.permute.xlu0 %2764
  %2766 = vrot.lane.b32.xlu0 %v2400, 32
  %v2767 = vpop.permute.xlu0 %2766
  %2768 = vrot.lane.b32.xlu0 %v2401, 32
  %v2769 = vpop.permute.xlu0 %2768
  %2770 = vrot.lane.b32.xlu0 %v2402, 32
  %v2771 = vpop.permute.xlu0 %2770
  %2772 = vrot.lane.b32.xlu0 %v2403, 32
  %v2773 = vpop.permute.xlu0 %2772
  %2774 = vrot.lane.b32.xlu0 %v2404, 32
  %v2775 = vpop.permute.xlu0 %2774
  %2776 = vrot.lane.b32.xlu0 %v2405, 32
  %v2777 = vpop.permute.xlu0 %2776
  %2778 = vrot.lane.b32.xlu0 %v2406, 32
  %v2779 = vpop.permute.xlu0 %2778
  %2780 = vrot.lane.b32.xlu0 %v2407, 32
  %v2781 = vpop.permute.xlu0 %2780
  %2782 = vrot.lane.b32.xlu0 %v2408, 32
  %v2783 = vpop.permute.xlu0 %2782
  %2784 = vrot.lane.b32.xlu0 %v2409, 32
  %v2785 = vpop.permute.xlu0 %2784
  %2786 = vrot.lane.b32.xlu0 %v2410, 32
  %v2787 = vpop.permute.xlu0 %2786
  %2788 = vrot.lane.b32.xlu0 %v2411, 32
  %v2789 = vpop.permute.xlu0 %2788
  %2790 = vrot.lane.b32.xlu0 %v2412, 32
  %v2791 = vpop.permute.xlu0 %2790
  %2792 = vrot.lane.b32.xlu0 %v2413, 32
  %v2793 = vpop.permute.xlu0 %2792
  %2794 = vrot.lane.b32.xlu0 %v2414, 32
  %v2795 = vpop.permute.xlu0 %2794
  %2796 = vrot.lane.b32.xlu0 %v2415, 32
  %v2797 = vpop.permute.xlu0 %2796
  %2798 = vrot.lane.b32.xlu0 %v2416, 32
  %v2799 = vpop.permute.xlu0 %2798
  %v2832 = vmul.f32 %v2672, %v2737
  %v2833 = vmul.f32 %v2673, %v2739
  %v2834 = vmul.f32 %v2674, %v2741
  %v2835 = vmul.f32 %v2675, %v2743
  %v2836 = vmul.f32 %v2676, %v2745
  %v2837 = vmul.f32 %v2677, %v2747
  %v2838 = vmul.f32 %v2678, %v2749
  %v2839 = vmul.f32 %v2679, %v2751
  %v2840 = vmul.f32 %v2680, %v2753
  %v2841 = vmul.f32 %v2681, %v2755
  %v2842 = vmul.f32 %v2682, %v2757
  %v2843 = vmul.f32 %v2683, %v2759
  %v2844 = vmul.f32 %v2684, %v2761
  %v2845 = vmul.f32 %v2685, %v2763
  %v2846 = vmul.f32 %v2686, %v2765
  %v2847 = vmul.f32 %v2687, %v2767
  %v2848 = vmul.f32 %v2688, %v2769
  %v2849 = vmul.f32 %v2689, %v2771
  %v2850 = vmul.f32 %v2690, %v2773
  %v2851 = vmul.f32 %v2691, %v2775
  %v2852 = vmul.f32 %v2692, %v2777
  %v2853 = vmul.f32 %v2693, %v2779
  %v2854 = vmul.f32 %v2694, %v2781
  %v2855 = vmul.f32 %v2695, %v2783
  %v2856 = vmul.f32 %v2696, %v2785
  %v2857 = vmul.f32 %v2697, %v2787
  %v2858 = vmul.f32 %v2698, %v2789
  %v2859 = vmul.f32 %v2699, %v2791
  %v2860 = vmul.f32 %v2700, %v2793
  %v2861 = vmul.f32 %v2701, %v2795
  %v2862 = vmul.f32 %v2702, %v2797
  %v2863 = vmul.f32 %v2703, %v2799
  %v2864 = vsel %vm2449, %v2832, 0.0
  %v2865 = vsel %vm2449, %v2834, 0.0
  %v2866 = vadd.f32 %v2864, %v2865
  %v2867 = vsel %vm2449, %v2836, 0.0
  %v2868 = vadd.f32 %v2866, %v2867
  %v2869 = vsel %vm2449, %v2838, 0.0
  %v2870 = vadd.f32 %v2868, %v2869
  %v2871 = vsel %vm2449, %v2840, 0.0
  %v2872 = vadd.f32 %v2870, %v2871
  %v2873 = vsel %vm2449, %v2842, 0.0
  %v2874 = vadd.f32 %v2872, %v2873
  %v2875 = vsel %vm2449, %v2844, 0.0
  %v2876 = vadd.f32 %v2874, %v2875
  %v2877 = vsel %vm2449, %v2846, 0.0
  %v2878 = vadd.f32 %v2876, %v2877
  %v2879 = vsel %vm2449, %v2848, 0.0
  %v2880 = vadd.f32 %v2878, %v2879
  %v2881 = vsel %vm2449, %v2850, 0.0
  %v2882 = vadd.f32 %v2880, %v2881
  %v2883 = vsel %vm2449, %v2852, 0.0
  %v2884 = vadd.f32 %v2882, %v2883
  %v2885 = vsel %vm2449, %v2854, 0.0
  %v2886 = vadd.f32 %v2884, %v2885
  %v2887 = vsel %vm2449, %v2856, 0.0
  %v2888 = vadd.f32 %v2886, %v2887
  %v2889 = vsel %vm2449, %v2858, 0.0
  %v2890 = vadd.f32 %v2888, %v2889
  %v2891 = vsel %vm2449, %v2860, 0.0
  %v2892 = vadd.f32 %v2890, %v2891
  %v2893 = vsel %vm2449, %v2862, 0.0
  %v2894 = vadd.f32 %v2892, %v2893
  %v2895 = vsel %vm2449, %v2833, 0.0
  %v2896 = vsel %vm2449, %v2835, 0.0
  %v2897 = vadd.f32 %v2895, %v2896
  %v2898 = vsel %vm2449, %v2837, 0.0
  %v2899 = vadd.f32 %v2897, %v2898
  %v2900 = vsel %vm2449, %v2839, 0.0
  %v2901 = vadd.f32 %v2899, %v2900
  %v2902 = vsel %vm2449, %v2841, 0.0
  %v2903 = vadd.f32 %v2901, %v2902
  %v2904 = vsel %vm2449, %v2843, 0.0
  %v2905 = vadd.f32 %v2903, %v2904
  %v2906 = vsel %vm2449, %v2845, 0.0
  %v2907 = vadd.f32 %v2905, %v2906
  %v2908 = vsel %vm2449, %v2847, 0.0
  %v2909 = vadd.f32 %v2907, %v2908
  %v2910 = vsel %vm2449, %v2849, 0.0
  %v2911 = vadd.f32 %v2909, %v2910
  %v2912 = vsel %vm2449, %v2851, 0.0
  %v2913 = vadd.f32 %v2911, %v2912
  %v2914 = vsel %vm2449, %v2853, 0.0
  %v2915 = vadd.f32 %v2913, %v2914
  %v2916 = vsel %vm2449, %v2855, 0.0
  %v2917 = vadd.f32 %v2915, %v2916
  %v2918 = vsel %vm2449, %v2857, 0.0
  %v2919 = vadd.f32 %v2917, %v2918
  %v2920 = vsel %vm2449, %v2859, 0.0
  %v2921 = vadd.f32 %v2919, %v2920
  %v2922 = vsel %vm2449, %v2861, 0.0
  %v2923 = vadd.f32 %v2921, %v2922
  %v2924 = vsel %vm2449, %v2863, 0.0
  %v2925 = vadd.f32 %v2923, %v2924
  %v2926 = vpack.c.bf16 %v2925, %v2894
  %v2928 = vlaneseq
  %v2929 = vshrl.u32 %v2928, 7
  %v2930 = vsub.s32 0, %v2929
  %v2931 = vrot.slane %v158, %v2930
  %2934 = vrot.lane.b32.xlu0 %v2926, 96
  %v2935 = vpop.permute.xlu0 %2934
  %vm2936 = vcmask 64512
  %v2938 = vsel %vm2936, %v2935, 0
  %vm2940 = vcmask 1043456
  %v2942 = vsel %vm2940, %v155, 0
  %2944 = vmatprep.subr.bf16.mxu0 0
  %2945 = vmatpush1.bf16.msra.mxu0 0
  %2946 = vmatprep.subr.bf16.mxu0 0
  %2947 = vmatpush1.bf16.msra.mxu0 0
  %2948 = vmatprep.subr.bf16.mxu0 0
  %2949 = vmatpush1.bf16.msra.mxu0 0
  %2950 = vmatprep.subr.bf16.mxu0 0
  %2951 = vmatpush1.bf16.msra.mxu0 0
  %2952 = vmatprep.subr.bf16.mxu0 0
  %2953 = vmatpush1.bf16.msra.mxu0 0
  %2954 = vmatprep.subr.bf16.mxu0 0
  %2955 = vmatpush1.bf16.msra.mxu0 0
  %2956 = vmatprep.subr.bf16.mxu0 0
  %2957 = vmatpush1.bf16.msra.mxu0 0
  %2958 = vmatprep.subr.bf16.mxu0 0
  %2959 = vmatpush1.bf16.msra.mxu0 %v2942
  %2960 = vmatprep.subr.bf16.mxu0 0
  %2961 = vmatpush2.bf16.msra.mxu0 0
  %2962 = vmatprep.subr.bf16.mxu0 0
  %2963 = vmatpush2.bf16.msra.mxu0 0
  %2964 = vmatprep.subr.bf16.mxu0 0
  %2965 = vmatpush2.bf16.msra.mxu0 0
  %2966 = vmatprep.subr.bf16.mxu0 0
  %2967 = vmatpush2.bf16.msra.mxu0 0
  %2968 = vmatprep.subr.bf16.mxu0 0
  %2969 = vmatpush2.bf16.msra.mxu0 0
  %2970 = vmatprep.subr.bf16.mxu0 0
  %2971 = vmatpush2.bf16.msra.mxu0 0
  %2972 = vmatprep.subr.bf16.mxu0 0
  %2973 = vmatpush2.bf16.msra.mxu0 0
  %2974 = vmatprep.subr.bf16.mxu0 0
  %2975 = vmatpush2.bf16.msra.mxu0 0
  %2976 = vmatprep.mubr.bf16.mxu0 0
  %2977 = vmatmul.mubr.bf16.gmra.mxu0 %v2938
  %v2978 = vpop.f32.mrf.mxu0
  %v2979 = vadd.f32 %v2931, %v2978
  %v2980 = vpop.f32.mrf.mxu0
  %v2981 = vpop.f32.mrf.mxu0
  %v2982 = vadd.f32 %v2931, %v2981
  %v2983 = vpop.f32.mrf.mxu0
  %2984 = vdwg.mxu0
  %v2986 = vlaneseq
  %v2987 = vshrl.u32 %v2986, 7
  %v2988 = vsub.s32 0, %v2987
  %v2989 = vrot.slane %v159, %v2988
  %v2993 = vunpack.c.l.b16 %v156
  %v2994 = vunpack.c.l.b16 %v157
  %v2995 = vpack.c.b16 %v2994, %v2993
  %2997 = vmatprep.subr.bf16.mxu0 0
  %2998 = vmatpush1.bf16.msra.mxu0 0
  %2999 = vmatprep.subr.bf16.mxu0 0
  %3000 = vmatpush1.bf16.msra.mxu0 0
  %3001 = vmatprep.subr.bf16.mxu0 0
  %3002 = vmatpush1.bf16.msra.mxu0 0
  %3003 = vmatprep.subr.bf16.mxu0 0
  %3004 = vmatpush1.bf16.msra.mxu0 0
  %3005 = vmatprep.subr.bf16.mxu0 0
  %3006 = vmatpush1.bf16.msra.mxu0 0
  %3007 = vmatprep.subr.bf16.mxu0 0
  %3008 = vmatpush1.bf16.msra.mxu0 0
  %3009 = vmatprep.subr.bf16.mxu0 0
  %3010 = vmatpush1.bf16.msra.mxu0 0
  %3011 = vmatprep.subr.bf16.mxu0 0
  %3012 = vmatpush1.bf16.msra.mxu0 %v2995
  %3013 = vmatprep.subr.bf16.mxu0 0
  %3014 = vmatpush2.bf16.msra.mxu0 0
  %3015 = vmatprep.subr.bf16.mxu0 0
  %3016 = vmatpush2.bf16.msra.mxu0 0
  %3017 = vmatprep.subr.bf16.mxu0 0
  %3018 = vmatpush2.bf16.msra.mxu0 0
  %3019 = vmatprep.subr.bf16.mxu0 0
  %3020 = vmatpush2.bf16.msra.mxu0 0
  %3021 = vmatprep.subr.bf16.mxu0 0
  %3022 = vmatpush2.bf16.msra.mxu0 0
  %3023 = vmatprep.subr.bf16.mxu0 0
  %3024 = vmatpush2.bf16.msra.mxu0 0
  %3025 = vmatprep.subr.bf16.mxu0 0
  %3026 = vmatpush2.bf16.msra.mxu0 0
  %3027 = vmatprep.subr.bf16.mxu0 0
  %3028 = vmatpush2.bf16.msra.mxu0 0
  %3029 = vmatprep.mubr.bf16.mxu0 0
  %3030 = vmatmul.mubr.bf16.gmra.mxu0 %v397
  %v3031 = vpop.f32.mrf.mxu0
  %v3032 = vadd.f32 %v2989, %v3031
  %v3033 = vpop.f32.mrf.mxu0
  %v3034 = vpop.f32.mrf.mxu0
  %v3035 = vadd.f32 %v2989, %v3034
  %v3036 = vpop.f32.mrf.mxu0
  %3037 = vdwg.mxu0
  %v3038 = vadd.f32 %v2979, %v3032
  %v3039 = vadd.f32 %v2982, %v3035
  %v3040 = vxor.u32 %v3038, 2147483648
  %v3041 = vxor.u32 %v3039, 2147483648
  %v3042 = vmul.f32 %v3040, 1.442695
  %v3043 = vpow.pop %v3042
  %v3044 = vmul.f32 %v3041, 1.442695
  %v3045 = vpow.pop %v3044
  %v3046 = vadd.f32 %v3043, 1.0
  %v3047 = vadd.f32 %v3045, 1.0
  %v3048 = vrcp.pop %v3046
  %v3049 = vmul.f32 1.0, %v3048
  %v3050 = vrcp.pop %v3047
  %v3051 = vmul.f32 1.0, %v3050
  %3054 = vrot.lane.b32.xlu0 %v3032, 96
  %v3055 = vpop.permute.xlu0 %3054
  %3056 = vrot.lane.b32.xlu0 %v3035, 96
  %v3057 = vpop.permute.xlu0 %3056
  %v3060 = vmul.f32 %v3049, %v3055
  %v3061 = vmul.f32 %v3051, %v3057
  %3064 = vrot.lane.b32.xlu0 %v3060, 32
  %v3065 = vpop.permute.xlu0 %3064
  %3066 = vrot.lane.b32.xlu0 %v3061, 32
  %v3067 = vpop.permute.xlu0 %3066
  %v3070 = vadd.f32 %v2979, %v3065
  %v3071 = vadd.f32 %v2982, %v3067
  %v3072 = vtanh.pop %v3070
  %v3073 = vtanh.pop %v3071
  %v3074 = vsub.f32 1.0, %v3049
  %v3075 = vsub.f32 1.0, %v3051
  %3078 = vrot.lane.b32.xlu0 %v3072, 112
  %v3079 = vpop.permute.xlu0 %3078
  %3080 = vrot.lane.b32.xlu0 %v3073, 112
  %v3081 = vpop.permute.xlu0 %3080
  %v3084 = vmul.f32 %v3074, %v3079
  %v3085 = vmul.f32 %v3075, %v3081
  %3088 = vrot.lane.b32.xlu0 %v141, 16
  %v3089 = vpop.permute.xlu0 %3088
  %3090 = vrot.lane.b32.xlu0 %v142, 16
  %v3091 = vpop.permute.xlu0 %3090
  %v3094 = vmul.f32 %v3049, %v3089
  %v3095 = vmul.f32 %v3051, %v3091
  %v3096 = vadd.f32 %v3084, %v3094
  %v3097 = vadd.f32 %v3085, %v3095
  %v3098 = vpack.c.bf16 %v3097, %v3096
  %3100 = vrot.lane.b32.xlu0 %v3098, 112
  %v3101 = vpop.permute.xlu0 %3100
  %v3103 = vsel %vm395, %v3101, 0
  %3105 = vmatprep.subr.bf16.mxu0 0
  %3106 = vmatpush1.bf16.msra.mxu0 0
  %3107 = vmatprep.subr.bf16.mxu0 0
  %3108 = vmatpush1.bf16.msra.mxu0 0
  %3109 = vmatprep.subr.bf16.mxu0 0
  %3110 = vmatpush1.bf16.msra.mxu0 0
  %3111 = vmatprep.subr.bf16.mxu0 0
  %3112 = vmatpush1.bf16.msra.mxu0 0
  %3113 = vmatprep.subr.bf16.mxu0 0
  %3114 = vmatpush1.bf16.msra.mxu0 0
  %3115 = vmatprep.subr.bf16.mxu0 0
  %3116 = vmatpush1.bf16.msra.mxu0 0
  %3117 = vmatprep.subr.bf16.mxu0 0
  %3118 = vmatpush1.bf16.msra.mxu0 0
  %3119 = vmatprep.subr.bf16.mxu0 %v392
  %3120 = vmatpush1.bf16.msra.mxu0 %v391
  %3121 = vmatprep.subr.bf16.mxu0 0
  %3122 = vmatpush2.bf16.msra.mxu0 0
  %3123 = vmatprep.subr.bf16.mxu0 0
  %3124 = vmatpush2.bf16.msra.mxu0 0
  %3125 = vmatprep.subr.bf16.mxu0 0
  %3126 = vmatpush2.bf16.msra.mxu0 0
  %3127 = vmatprep.subr.bf16.mxu0 0
  %3128 = vmatpush2.bf16.msra.mxu0 0
  %3129 = vmatprep.subr.bf16.mxu0 0
  %3130 = vmatpush2.bf16.msra.mxu0 0
  %3131 = vmatprep.subr.bf16.mxu0 0
  %3132 = vmatpush2.bf16.msra.mxu0 0
  %3133 = vmatprep.subr.bf16.mxu0 0
  %3134 = vmatpush2.bf16.msra.mxu0 0
  %3135 = vmatprep.subr.bf16.mxu0 0
  %3136 = vmatpush2.bf16.msra.mxu0 0
  %3137 = vmatprep.mubr.bf16.mxu0 0
  %3138 = vmatmul.mubr.bf16.gmra.mxu0 %v3103
  %v3139 = vpop.f32.mrf.mxu0
  %v3140 = vadd.f32 %v378, %v3139
  %v3141 = vpop.f32.mrf.mxu0
  %v3142 = vadd.f32 %v382, %v3141
  %v3143 = vpop.f32.mrf.mxu0
  %v3144 = vadd.f32 %v378, %v3143
  %v3145 = vpop.f32.mrf.mxu0
  %v3146 = vadd.f32 %v382, %v3145
  %3147 = vdwg.mxu0
  %vm3148 = vcmp.gt.f32.partialorder %v3140, 0.0
  %vm3149 = vcmp.gt.f32.partialorder %v3142, 0.0
  %vm3150 = vcmp.gt.f32.partialorder %v3144, 0.0
  %vm3151 = vcmp.gt.f32.partialorder %v3146, 0.0
  %v3152 = vmul.f32 %v3140, 1.442695
  %v3153 = vpow.pop %v3152
  %v3154 = vmul.f32 %v3142, 1.442695
  %v3155 = vpow.pop %v3154
  %v3156 = vmul.f32 %v3144, 1.442695
  %v3157 = vpow.pop %v3156
  %v3158 = vmul.f32 %v3146, 1.442695
  %v3159 = vpow.pop %v3158
  %v3160 = vsub.f32 %v3153, 1.0
  %v3161 = vsub.f32 %v3155, 1.0
  %v3162 = vsub.f32 %v3157, 1.0
  %v3163 = vsub.f32 %v3159, 1.0
  %v3164 = vmul.f32 %v3160, 1.6732632
  %v3165 = vmul.f32 %v3161, 1.6732632
  %v3166 = vmul.f32 %v3162, 1.6732632
  %v3167 = vmul.f32 %v3163, 1.6732632
  %v3168 = vsel %vm3148, %v3140, %v3164
  %v3169 = vsel %vm3149, %v3142, %v3165
  %v3170 = vsel %vm3150, %v3144, %v3166
  %v3171 = vsel %vm3151, %v3146, %v3167
  %v3172 = vmul.f32 %v3168, 1.050701
  %v3173 = vmul.f32 %v3169, 1.050701
  %v3174 = vmul.f32 %v3170, 1.050701
  %v3175 = vmul.f32 %v3171, 1.050701
  %v3176 = vpack.c.bf16 %v3174, %v3172
  %v3177 = vpack.c.bf16 %v3175, %v3173
  %3178 = vmatprep.subr.bf16.mxu0 %v627
  %3179 = vmatpush1.bf16.msra.mxu0 %v626
  %3180 = vmatprep.subr.bf16.mxu0 %v625
  %3181 = vmatpush1.bf16.msra.mxu0 %v624
  %3182 = vmatprep.subr.bf16.mxu0 %v623
  %3183 = vmatpush1.bf16.msra.mxu0 %v622
  %3184 = vmatprep.subr.bf16.mxu0 %v621
  %3185 = vmatpush1.bf16.msra.mxu0 %v620
  %3186 = vmatprep.subr.bf16.mxu0 %v619
  %3187 = vmatpush1.bf16.msra.mxu0 %v618
  %3188 = vmatprep.subr.bf16.mxu0 %v617
  %3189 = vmatpush1.bf16.msra.mxu0 %v616
  %3190 = vmatprep.subr.bf16.mxu0 %v615
  %3191 = vmatpush1.bf16.msra.mxu0 %v614
  %3192 = vmatprep.subr.bf16.mxu0 %v613
  %3193 = vmatpush1.bf16.msra.mxu0 %v612
  %3194 = vmatprep.subr.bf16.mxu0 %v643
  %3195 = vmatpush2.bf16.msra.mxu0 %v642
  %3196 = vmatprep.subr.bf16.mxu0 %v641
  %3197 = vmatpush2.bf16.msra.mxu0 %v640
  %3198 = vmatprep.subr.bf16.mxu0 %v639
  %3199 = vmatpush2.bf16.msra.mxu0 %v638
  %3200 = vmatprep.subr.bf16.mxu0 %v637
  %3201 = vmatpush2.bf16.msra.mxu0 %v636
  %3202 = vmatprep.subr.bf16.mxu0 %v635
  %3203 = vmatpush2.bf16.msra.mxu0 %v634
  %3204 = vmatprep.subr.bf16.mxu0 %v633
  %3205 = vmatpush2.bf16.msra.mxu0 %v632
  %3206 = vmatprep.subr.bf16.mxu0 %v631
  %3207 = vmatpush2.bf16.msra.mxu0 %v630
  %3208 = vmatprep.subr.bf16.mxu0 %v629
  %3209 = vmatpush2.bf16.msra.mxu0 %v628
  %3210 = vmatprep.mubr.bf16.mxu0 %v3177
  %3211 = vmatmul.mubr.bf16.gmra.mxu0 %v3176
  %v3212 = vpop.f32.mrf.mxu0
  %v3213 = vadd.f32 %v509, %v3212
  %v3214 = vpop.f32.mrf.mxu0
  %v3215 = vadd.f32 %v513, %v3214
  %v3216 = vpop.f32.mrf.mxu0
  %v3217 = vadd.f32 %v509, %v3216
  %v3218 = vpop.f32.mrf.mxu0
  %v3219 = vadd.f32 %v513, %v3218
  %3220 = vdwg.mxu0
  %vm3221 = vcmp.gt.f32.partialorder %v3213, 0.0
  %vm3222 = vcmp.gt.f32.partialorder %v3215, 0.0
  %vm3223 = vcmp.gt.f32.partialorder %v3217, 0.0
  %vm3224 = vcmp.gt.f32.partialorder %v3219, 0.0
  %v3225 = vmul.f32 %v3213, 1.442695
  %v3226 = vpow.pop %v3225
  %v3227 = vmul.f32 %v3215, 1.442695
  %v3228 = vpow.pop %v3227
  %v3229 = vmul.f32 %v3217, 1.442695
  %v3230 = vpow.pop %v3229
  %v3231 = vmul.f32 %v3219, 1.442695
  %v3232 = vpow.pop %v3231
  %v3233 = vsub.f32 %v3226, 1.0
  %v3234 = vsub.f32 %v3228, 1.0
  %v3235 = vsub.f32 %v3230, 1.0
  %v3236 = vsub.f32 %v3232, 1.0
  %v3237 = vmul.f32 %v3233, 1.6732632
  %v3238 = vmul.f32 %v3234, 1.6732632
  %v3239 = vmul.f32 %v3235, 1.6732632
  %v3240 = vmul.f32 %v3236, 1.6732632
  %v3241 = vsel %vm3221, %v3213, %v3237
  %v3242 = vsel %vm3222, %v3215, %v3238
  %v3243 = vsel %vm3223, %v3217, %v3239
  %v3244 = vsel %vm3224, %v3219, %v3240
  %v3245 = vmul.f32 %v3241, 1.050701
  %v3246 = vmul.f32 %v3242, 1.050701
  %v3247 = vmul.f32 %v3243, 1.050701
  %v3248 = vmul.f32 %v3244, 1.050701
  %v3249 = vpack.c.bf16 %v3247, %v3245
  %v3250 = vpack.c.bf16 %v3248, %v3246
  %3251 = vmatprep.subr.bf16.mxu0 0
  %3252 = vmatpush1.bf16.msra.mxu0 %v859
  %3253 = vmatprep.subr.bf16.mxu0 0
  %3254 = vmatpush1.bf16.msra.mxu0 %v858
  %3255 = vmatprep.subr.bf16.mxu0 0
  %3256 = vmatpush1.bf16.msra.mxu0 %v857
  %3257 = vmatprep.subr.bf16.mxu0 0
  %3258 = vmatpush1.bf16.msra.mxu0 %v856
  %3259 = vmatprep.subr.bf16.mxu0 0
  %3260 = vmatpush1.bf16.msra.mxu0 %v855
  %3261 = vmatprep.subr.bf16.mxu0 0
  %3262 = vmatpush1.bf16.msra.mxu0 %v854
  %3263 = vmatprep.subr.bf16.mxu0 0
  %3264 = vmatpush1.bf16.msra.mxu0 %v853
  %3265 = vmatprep.subr.bf16.mxu0 0
  %3266 = vmatpush1.bf16.msra.mxu0 %v852
  %3267 = vmatprep.subr.bf16.mxu0 0
  %3268 = vmatpush2.bf16.msra.mxu0 %v867
  %3269 = vmatprep.subr.bf16.mxu0 0
  %3270 = vmatpush2.bf16.msra.mxu0 %v866
  %3271 = vmatprep.subr.bf16.mxu0 0
  %3272 = vmatpush2.bf16.msra.mxu0 %v865
  %3273 = vmatprep.subr.bf16.mxu0 0
  %3274 = vmatpush2.bf16.msra.mxu0 %v864
  %3275 = vmatprep.subr.bf16.mxu0 0
  %3276 = vmatpush2.bf16.msra.mxu0 %v863
  %3277 = vmatprep.subr.bf16.mxu0 0
  %3278 = vmatpush2.bf16.msra.mxu0 %v862
  %3279 = vmatprep.subr.bf16.mxu0 0
  %3280 = vmatpush2.bf16.msra.mxu0 %v861
  %3281 = vmatprep.subr.bf16.mxu0 0
  %3282 = vmatpush2.bf16.msra.mxu0 %v860
  %3283 = vmatprep.mubr.bf16.mxu0 %v3250
  %3284 = vmatmul.mubr.bf16.gmra.mxu0 %v3249
  %v3285 = vpop.f32.mrf.mxu0
  %v3286 = vadd.f32 %v786, %v3285
  %v3287 = vpop.f32.mrf.mxu0
  %v3288 = vpop.f32.mrf.mxu0
  %v3289 = vadd.f32 %v786, %v3288
  %v3290 = vpop.f32.mrf.mxu0
  %3291 = vdwg.mxu0
  %v3294 = vcombine.high %v3286, %v3286
  %v3296 = vunpack.c.l.s4 1966171168
  %v3297 = vunpack.c.0.s8 %v3296
  %v3298 = vlaneseq
  %v3299 = vshrl.u32 %v3298, 7
  %v3300 = vsub.s32 %v3297, %v3299
  %v3301 = vrot.slane %v3286, %v3300
  %v3303 = vunpack.c.l.s4 1966171168
  %v3304 = vunpack.c.0.s8 %v3303
  %v3305 = vlaneseq
  %v3306 = vshrl.u32 %v3305, 7
  %v3307 = vsub.s32 %v3304, %v3306
  %v3308 = vrot.slane %v3294, %v3307
  %v3309 = vcombine.high %v3301, %v3301
  %v3310 = vcombine.high %v3308, %v3308
  %v3312 = vunpack.c.l.s4 1966171168
  %v3313 = vunpack.c.0.s8 %v3312
  %v3314 = vlaneseq
  %v3315 = vshrl.u32 %v3314, 7
  %v3316 = vsub.s32 %v3313, %v3315
  %v3317 = vrot.slane %v3301, %v3316
  %v3319 = vunpack.c.l.s4 1966171168
  %v3320 = vunpack.c.0.s8 %v3319
  %v3321 = vlaneseq
  %v3322 = vshrl.u32 %v3321, 7
  %v3323 = vsub.s32 %v3320, %v3322
  %v3324 = vrot.slane %v3308, %v3323
  %v3326 = vunpack.c.l.s4 1966171168
  %v3327 = vunpack.c.0.s8 %v3326
  %v3328 = vlaneseq
  %v3329 = vshrl.u32 %v3328, 7
  %v3330 = vsub.s32 %v3327, %v3329
  %v3331 = vrot.slane %v3309, %v3330
  %v3333 = vunpack.c.l.s4 1966171168
  %v3334 = vunpack.c.0.s8 %v3333
  %v3335 = vlaneseq
  %v3336 = vshrl.u32 %v3335, 7
  %v3337 = vsub.s32 %v3334, %v3336
  %v3338 = vrot.slane %v3310, %v3337
  %v3339 = vcombine.high %v3317, %v3317
  %v3340 = vcombine.high %v3324, %v3324
  %v3341 = vcombine.high %v3331, %v3331
  %v3342 = vcombine.high %v3338, %v3338
  %v3343 = vcombine.high %v3289, %v3289
  %v3345 = vunpack.c.l.s4 1966171168
  %v3346 = vunpack.c.0.s8 %v3345
  %v3347 = vlaneseq
  %v3348 = vshrl.u32 %v3347, 7
  %v3349 = vsub.s32 %v3346, %v3348
  %v3350 = vrot.slane %v3289, %v3349
  %v3352 = vunpack.c.l.s4 1966171168
  %v3353 = vunpack.c.0.s8 %v3352
  %v3354 = vlaneseq
  %v3355 = vshrl.u32 %v3354, 7
  %v3356 = vsub.s32 %v3353, %v3355
  %v3357 = vrot.slane %v3343, %v3356
  %v3358 = vcombine.high %v3350, %v3350
  %v3359 = vcombine.high %v3357, %v3357
  %v3361 = vunpack.c.l.s4 1966171168
  %v3362 = vunpack.c.0.s8 %v3361
  %v3363 = vlaneseq
  %v3364 = vshrl.u32 %v3363, 7
  %v3365 = vsub.s32 %v3362, %v3364
  %v3366 = vrot.slane %v3350, %v3365
  %v3368 = vunpack.c.l.s4 1966171168
  %v3369 = vunpack.c.0.s8 %v3368
  %v3370 = vlaneseq
  %v3371 = vshrl.u32 %v3370, 7
  %v3372 = vsub.s32 %v3369, %v3371
  %v3373 = vrot.slane %v3357, %v3372
  %v3375 = vunpack.c.l.s4 1966171168
  %v3376 = vunpack.c.0.s8 %v3375
  %v3377 = vlaneseq
  %v3378 = vshrl.u32 %v3377, 7
  %v3379 = vsub.s32 %v3376, %v3378
  %v3380 = vrot.slane %v3358, %v3379
  %v3382 = vunpack.c.l.s4 1966171168
  %v3383 = vunpack.c.0.s8 %v3382
  %v3384 = vlaneseq
  %v3385 = vshrl.u32 %v3384, 7
  %v3386 = vsub.s32 %v3383, %v3385
  %v3387 = vrot.slane %v3359, %v3386
  %v3388 = vcombine.high %v3366, %v3366
  %v3389 = vcombine.high %v3373, %v3373
  %v3390 = vcombine.high %v3380, %v3380
  %v3391 = vcombine.high %v3387, %v3387
  %v3392 = vlaneseq
  %v3393 = vshrl.u32 %v3392, 7
  %v3394 = vsub.s32 0, %v3393
  %v3395 = vrot.slane %v3317, %v3394
  %v3396 = vlaneseq
  %v3397 = vshrl.u32 %v3396, 7
  %v3398 = vsub.s32 0, %v3397
  %v3399 = vrot.slane %v3331, %v3398
  %v3400 = vlaneseq
  %v3401 = vshrl.u32 %v3400, 7
  %v3402 = vsub.s32 0, %v3401
  %v3403 = vrot.slane %v3339, %v3402
  %v3404 = vlaneseq
  %v3405 = vshrl.u32 %v3404, 7
  %v3406 = vsub.s32 0, %v3405
  %v3407 = vrot.slane %v3341, %v3406
  %v3408 = vlaneseq
  %v3409 = vshrl.u32 %v3408, 7
  %v3410 = vsub.s32 0, %v3409
  %v3411 = vrot.slane %v3324, %v3410
  %v3412 = vlaneseq
  %v3413 = vshrl.u32 %v3412, 7
  %v3414 = vsub.s32 0, %v3413
  %v3415 = vrot.slane %v3338, %v3414
  %v3416 = vlaneseq
  %v3417 = vshrl.u32 %v3416, 7
  %v3418 = vsub.s32 0, %v3417
  %v3419 = vrot.slane %v3340, %v3418
  %v3420 = vlaneseq
  %v3421 = vshrl.u32 %v3420, 7
  %v3422 = vsub.s32 0, %v3421
  %v3423 = vrot.slane %v3342, %v3422
  %v3424 = vlaneseq
  %v3425 = vshrl.u32 %v3424, 7
  %v3426 = vsub.s32 0, %v3425
  %v3427 = vrot.slane %v3366, %v3426
  %v3428 = vlaneseq
  %v3429 = vshrl.u32 %v3428, 7
  %v3430 = vsub.s32 0, %v3429
  %v3431 = vrot.slane %v3380, %v3430
  %v3432 = vlaneseq
  %v3433 = vshrl.u32 %v3432, 7
  %v3434 = vsub.s32 0, %v3433
  %v3435 = vrot.slane %v3388, %v3434
  %v3436 = vlaneseq
  %v3437 = vshrl.u32 %v3436, 7
  %v3438 = vsub.s32 0, %v3437
  %v3439 = vrot.slane %v3390, %v3438
  %v3440 = vlaneseq
  %v3441 = vshrl.u32 %v3440, 7
  %v3442 = vsub.s32 0, %v3441
  %v3443 = vrot.slane %v3373, %v3442
  %v3444 = vlaneseq
  %v3445 = vshrl.u32 %v3444, 7
  %v3446 = vsub.s32 0, %v3445
  %v3447 = vrot.slane %v3387, %v3446
  %v3448 = vlaneseq
  %v3449 = vshrl.u32 %v3448, 7
  %v3450 = vsub.s32 0, %v3449
  %v3451 = vrot.slane %v3389, %v3450
  %v3452 = vlaneseq
  %v3453 = vshrl.u32 %v3452, 7
  %v3454 = vsub.s32 0, %v3453
  %v3455 = vrot.slane %v3391, %v3454
  %v3472 = vmul.f32 %v931, %v3395
  %v3473 = vmul.f32 %v935, %v3395
  %v3474 = vmul.f32 %v942, %v3399
  %v3475 = vmul.f32 %v946, %v3399
  %v3476 = vmul.f32 %v953, %v3403
  %v3477 = vmul.f32 %v957, %v3403
  %v3478 = vmul.f32 %v964, %v3407
  %v3479 = vmul.f32 %v968, %v3407
  %v3480 = vmul.f32 %v975, %v3411
  %v3481 = vmul.f32 %v979, %v3411
  %v3482 = vmul.f32 %v986, %v3415
  %v3483 = vmul.f32 %v990, %v3415
  %v3484 = vmul.f32 %v997, %v3419
  %v3485 = vmul.f32 %v1001, %v3419
  %v3486 = vmul.f32 %v1008, %v3423
  %v3487 = vmul.f32 %v1012, %v3423
  %v3488 = vmul.f32 %v1019, %v3427
  %v3489 = vmul.f32 %v1023, %v3427
  %v3490 = vmul.f32 %v1030, %v3431
  %v3491 = vmul.f32 %v1034, %v3431
  %v3492 = vmul.f32 %v1041, %v3435
  %v3493 = vmul.f32 %v1045, %v3435
  %v3494 = vmul.f32 %v1052, %v3439
  %v3495 = vmul.f32 %v1056, %v3439
  %v3496 = vmul.f32 %v1063, %v3443
  %v3497 = vmul.f32 %v1067, %v3443
  %v3498 = vmul.f32 %v1074, %v3447
  %v3499 = vmul.f32 %v1078, %v3447
  %v3500 = vmul.f32 %v1085, %v3451
  %v3501 = vmul.f32 %v1089, %v3451
  %v3502 = vmul.f32 %v1096, %v3455
  %v3503 = vmul.f32 %v1100, %v3455
  %v3504 = vmul.f32 %v1319, %v3395
  %v3505 = vmul.f32 %v1323, %v3395
  %v3506 = vmul.f32 %v1330, %v3399
  %v3507 = vmul.f32 %v1334, %v3399
  %v3508 = vmul.f32 %v1341, %v3403
  %v3509 = vmul.f32 %v1345, %v3403
  %v3510 = vmul.f32 %v1352, %v3407
  %v3511 = vmul.f32 %v1356, %v3407
  %v3512 = vmul.f32 %v1363, %v3411
  %v3513 = vmul.f32 %v1367, %v3411
  %v3514 = vmul.f32 %v1374, %v3415
  %v3515 = vmul.f32 %v1378, %v3415
  %v3516 = vmul.f32 %v1385, %v3419
  %v3517 = vmul.f32 %v1389, %v3419
  %v3518 = vmul.f32 %v1396, %v3423
  %v3519 = vmul.f32 %v1400, %v3423
  %v3520 = vmul.f32 %v1407, %v3427
  %v3521 = vmul.f32 %v1411, %v3427
  %v3522 = vmul.f32 %v1418, %v3431
  %v3523 = vmul.f32 %v1422, %v3431
  %v3524 = vmul.f32 %v1429, %v3435
  %v3525 = vmul.f32 %v1433, %v3435
  %v3526 = vmul.f32 %v1440, %v3439
  %v3527 = vmul.f32 %v1444, %v3439
  %v3528 = vmul.f32 %v1451, %v3443
  %v3529 = vmul.f32 %v1455, %v3443
  %v3530 = vmul.f32 %v1462, %v3447
  %v3531 = vmul.f32 %v1466, %v3447
  %v3532 = vmul.f32 %v1473, %v3451
  %v3533 = vmul.f32 %v1477, %v3451
  %v3534 = vmul.f32 %v1484, %v3455
  %v3535 = vmul.f32 %v1488, %v3455
  %3568 = vrot.lane.b32.xlu0 %v3504, 120
  %v3569 = vpop.permute.xlu0 %3568
  %3570 = vrot.lane.b32.xlu0 %v3505, 120
  %v3571 = vpop.permute.xlu0 %3570
  %3572 = vrot.lane.b32.xlu0 %v3506, 120
  %v3573 = vpop.permute.xlu0 %3572
  %3574 = vrot.lane.b32.xlu0 %v3507, 120
  %v3575 = vpop.permute.xlu0 %3574
  %3576 = vrot.lane.b32.xlu0 %v3508, 120
  %v3577 = vpop.permute.xlu0 %3576
  %3578 = vrot.lane.b32.xlu0 %v3509, 120
  %v3579 = vpop.permute.xlu0 %3578
  %3580 = vrot.lane.b32.xlu0 %v3510, 120
  %v3581 = vpop.permute.xlu0 %3580
  %3582 = vrot.lane.b32.xlu0 %v3511, 120
  %v3583 = vpop.permute.xlu0 %3582
  %3584 = vrot.lane.b32.xlu0 %v3512, 120
  %v3585 = vpop.permute.xlu0 %3584
  %3586 = vrot.lane.b32.xlu0 %v3513, 120
  %v3587 = vpop.permute.xlu0 %3586
  %3588 = vrot.lane.b32.xlu0 %v3514, 120
  %v3589 = vpop.permute.xlu0 %3588
  %3590 = vrot.lane.b32.xlu0 %v3515, 120
  %v3591 = vpop.permute.xlu0 %3590
  %3592 = vrot.lane.b32.xlu0 %v3516, 120
  %v3593 = vpop.permute.xlu0 %3592
  %3594 = vrot.lane.b32.xlu0 %v3517, 120
  %v3595 = vpop.permute.xlu0 %3594
  %3596 = vrot.lane.b32.xlu0 %v3518, 120
  %v3597 = vpop.permute.xlu0 %3596
  %3598 = vrot.lane.b32.xlu0 %v3519, 120
  %v3599 = vpop.permute.xlu0 %3598
  %3600 = vrot.lane.b32.xlu0 %v3520, 120
  %v3601 = vpop.permute.xlu0 %3600
  %3602 = vrot.lane.b32.xlu0 %v3521, 120
  %v3603 = vpop.permute.xlu0 %3602
  %3604 = vrot.lane.b32.xlu0 %v3522, 120
  %v3605 = vpop.permute.xlu0 %3604
  %3606 = vrot.lane.b32.xlu0 %v3523, 120
  %v3607 = vpop.permute.xlu0 %3606
  %3608 = vrot.lane.b32.xlu0 %v3524, 120
  %v3609 = vpop.permute.xlu0 %3608
  %3610 = vrot.lane.b32.xlu0 %v3525, 120
  %v3611 = vpop.permute.xlu0 %3610
  %3612 = vrot.lane.b32.xlu0 %v3526, 120
  %v3613 = vpop.permute.xlu0 %3612
  %3614 = vrot.lane.b32.xlu0 %v3527, 120
  %v3615 = vpop.permute.xlu0 %3614
  %3616 = vrot.lane.b32.xlu0 %v3528, 120
  %v3617 = vpop.permute.xlu0 %3616
  %3618 = vrot.lane.b32.xlu0 %v3529, 120
  %v3619 = vpop.permute.xlu0 %3618
  %3620 = vrot.lane.b32.xlu0 %v3530, 120
  %v3621 = vpop.permute.xlu0 %3620
  %3622 = vrot.lane.b32.xlu0 %v3531, 120
  %v3623 = vpop.permute.xlu0 %3622
  %3624 = vrot.lane.b32.xlu0 %v3532, 120
  %v3625 = vpop.permute.xlu0 %3624
  %3626 = vrot.lane.b32.xlu0 %v3533, 120
  %v3627 = vpop.permute.xlu0 %3626
  %3628 = vrot.lane.b32.xlu0 %v3534, 120
  %v3629 = vpop.permute.xlu0 %3628
  %3630 = vrot.lane.b32.xlu0 %v3535, 120
  %v3631 = vpop.permute.xlu0 %3630
  %v3664 = vadd.f32 %v3472, %v3569
  %v3665 = vadd.f32 %v3473, %v3571
  %v3666 = vadd.f32 %v3474, %v3573
  %v3667 = vadd.f32 %v3475, %v3575
  %v3668 = vadd.f32 %v3476, %v3577
  %v3669 = vadd.f32 %v3477, %v3579
  %v3670 = vadd.f32 %v3478, %v3581
  %v3671 = vadd.f32 %v3479, %v3583
  %v3672 = vadd.f32 %v3480, %v3585
  %v3673 = vadd.f32 %v3481, %v3587
  %v3674 = vadd.f32 %v3482, %v3589
  %v3675 = vadd.f32 %v3483, %v3591
  %v3676 = vadd.f32 %v3484, %v3593
  %v3677 = vadd.f32 %v3485, %v3595
  %v3678 = vadd.f32 %v3486, %v3597
  %v3679 = vadd.f32 %v3487, %v3599
  %v3680 = vadd.f32 %v3488, %v3601
  %v3681 = vadd.f32 %v3489, %v3603
  %v3682 = vadd.f32 %v3490, %v3605
  %v3683 = vadd.f32 %v3491, %v3607
  %v3684 = vadd.f32 %v3492, %v3609
  %v3685 = vadd.f32 %v3493, %v3611
  %v3686 = vadd.f32 %v3494, %v3613
  %v3687 = vadd.f32 %v3495, %v3615
  %v3688 = vadd.f32 %v3496, %v3617
  %v3689 = vadd.f32 %v3497, %v3619
  %v3690 = vadd.f32 %v3498, %v3621
  %v3691 = vadd.f32 %v3499, %v3623
  %v3692 = vadd.f32 %v3500, %v3625
  %v3693 = vadd.f32 %v3501, %v3627
  %v3694 = vadd.f32 %v3502, %v3629
  %v3695 = vadd.f32 %v3503, %v3631
  %v3696 = vmul.f32 %v1687, %v3395
  %v3697 = vmul.f32 %v1691, %v3395
  %v3698 = vmul.f32 %v1698, %v3399
  %v3699 = vmul.f32 %v1702, %v3399
  %v3700 = vmul.f32 %v1709, %v3403
  %v3701 = vmul.f32 %v1713, %v3403
  %v3702 = vmul.f32 %v1720, %v3407
  %v3703 = vmul.f32 %v1724, %v3407
  %v3704 = vmul.f32 %v1731, %v3411
  %v3705 = vmul.f32 %v1735, %v3411
  %v3706 = vmul.f32 %v1742, %v3415
  %v3707 = vmul.f32 %v1746, %v3415
  %v3708 = vmul.f32 %v1753, %v3419
  %v3709 = vmul.f32 %v1757, %v3419
  %v3710 = vmul.f32 %v1764, %v3423
  %v3711 = vmul.f32 %v1768, %v3423
  %v3712 = vmul.f32 %v1775, %v3427
  %v3713 = vmul.f32 %v1779, %v3427
  %v3714 = vmul.f32 %v1786, %v3431
  %v3715 = vmul.f32 %v1790, %v3431
  %v3716 = vmul.f32 %v1797, %v3435
  %v3717 = vmul.f32 %v1801, %v3435
  %v3718 = vmul.f32 %v1808, %v3439
  %v3719 = vmul.f32 %v1812, %v3439
  %v3720 = vmul.f32 %v1819, %v3443
  %v3721 = vmul.f32 %v1823, %v3443
  %v3722 = vmul.f32 %v1830, %v3447
  %v3723 = vmul.f32 %v1834, %v3447
  %v3724 = vmul.f32 %v1841, %v3451
  %v3725 = vmul.f32 %v1845, %v3451
  %v3726 = vmul.f32 %v1852, %v3455
  %v3727 = vmul.f32 %v1856, %v3455
  %3760 = vrot.lane.b32.xlu0 %v3696, 112
  %v3761 = vpop.permute.xlu0 %3760
  %3762 = vrot.lane.b32.xlu0 %v3697, 112
  %v3763 = vpop.permute.xlu0 %3762
  %3764 = vrot.lane.b32.xlu0 %v3698, 112
  %v3765 = vpop.permute.xlu0 %3764
  %3766 = vrot.lane.b32.xlu0 %v3699, 112
  %v3767 = vpop.permute.xlu0 %3766
  %3768 = vrot.lane.b32.xlu0 %v3700, 112
  %v3769 = vpop.permute.xlu0 %3768
  %3770 = vrot.lane.b32.xlu0 %v3701, 112
  %v3771 = vpop.permute.xlu0 %3770
  %3772 = vrot.lane.b32.xlu0 %v3702, 112
  %v3773 = vpop.permute.xlu0 %3772
  %3774 = vrot.lane.b32.xlu0 %v3703, 112
  %v3775 = vpop.permute.xlu0 %3774
  %3776 = vrot.lane.b32.xlu0 %v3704, 112
  %v3777 = vpop.permute.xlu0 %3776
  %3778 = vrot.lane.b32.xlu0 %v3705, 112
  %v3779 = vpop.permute.xlu0 %3778
  %3780 = vrot.lane.b32.xlu0 %v3706, 112
  %v3781 = vpop.permute.xlu0 %3780
  %3782 = vrot.lane.b32.xlu0 %v3707, 112
  %v3783 = vpop.permute.xlu0 %3782
  %3784 = vrot.lane.b32.xlu0 %v3708, 112
  %v3785 = vpop.permute.xlu0 %3784
  %3786 = vrot.lane.b32.xlu0 %v3709, 112
  %v3787 = vpop.permute.xlu0 %3786
  %3788 = vrot.lane.b32.xlu0 %v3710, 112
  %v3789 = vpop.permute.xlu0 %3788
  %3790 = vrot.lane.b32.xlu0 %v3711, 112
  %v3791 = vpop.permute.xlu0 %3790
  %3792 = vrot.lane.b32.xlu0 %v3712, 112
  %v3793 = vpop.permute.xlu0 %3792
  %3794 = vrot.lane.b32.xlu0 %v3713, 112
  %v3795 = vpop.permute.xlu0 %3794
  %3796 = vrot.lane.b32.xlu0 %v3714, 112
  %v3797 = vpop.permute.xlu0 %3796
  %3798 = vrot.lane.b32.xlu0 %v3715, 112
  %v3799 = vpop.permute.xlu0 %3798
  %3800 = vrot.lane.b32.xlu0 %v3716, 112
  %v3801 = vpop.permute.xlu0 %3800
  %3802 = vrot.lane.b32.xlu0 %v3717, 112
  %v3803 = vpop.permute.xlu0 %3802
  %3804 = vrot.lane.b32.xlu0 %v3718, 112
  %v3805 = vpop.permute.xlu0 %3804
  %3806 = vrot.lane.b32.xlu0 %v3719, 112
  %v3807 = vpop.permute.xlu0 %3806
  %3808 = vrot.lane.b32.xlu0 %v3720, 112
  %v3809 = vpop.permute.xlu0 %3808
  %3810 = vrot.lane.b32.xlu0 %v3721, 112
  %v3811 = vpop.permute.xlu0 %3810
  %3812 = vrot.lane.b32.xlu0 %v3722, 112
  %v3813 = vpop.permute.xlu0 %3812
  %3814 = vrot.lane.b32.xlu0 %v3723, 112
  %v3815 = vpop.permute.xlu0 %3814
  %3816 = vrot.lane.b32.xlu0 %v3724, 112
  %v3817 = vpop.permute.xlu0 %3816
  %3818 = vrot.lane.b32.xlu0 %v3725, 112
  %v3819 = vpop.permute.xlu0 %3818
  %3820 = vrot.lane.b32.xlu0 %v3726, 112
  %v3821 = vpop.permute.xlu0 %3820
  %3822 = vrot.lane.b32.xlu0 %v3727, 112
  %v3823 = vpop.permute.xlu0 %3822
  %v3856 = vadd.f32 %v3664, %v3761
  %v3857 = vadd.f32 %v3665, %v3763
  %v3858 = vadd.f32 %v3666, %v3765
  %v3859 = vadd.f32 %v3667, %v3767
  %v3860 = vadd.f32 %v3668, %v3769
  %v3861 = vadd.f32 %v3669, %v3771
  %v3862 = vadd.f32 %v3670, %v3773
  %v3863 = vadd.f32 %v3671, %v3775
  %v3864 = vadd.f32 %v3672, %v3777
  %v3865 = vadd.f32 %v3673, %v3779
  %v3866 = vadd.f32 %v3674, %v3781
  %v3867 = vadd.f32 %v3675, %v3783
  %v3868 = vadd.f32 %v3676, %v3785
  %v3869 = vadd.f32 %v3677, %v3787
  %v3870 = vadd.f32 %v3678, %v3789
  %v3871 = vadd.f32 %v3679, %v3791
  %v3872 = vadd.f32 %v3680, %v3793
  %v3873 = vadd.f32 %v3681, %v3795
  %v3874 = vadd.f32 %v3682, %v3797
  %v3875 = vadd.f32 %v3683, %v3799
  %v3876 = vadd.f32 %v3684, %v3801
  %v3877 = vadd.f32 %v3685, %v3803
  %v3878 = vadd.f32 %v3686, %v3805
  %v3879 = vadd.f32 %v3687, %v3807
  %v3880 = vadd.f32 %v3688, %v3809
  %v3881 = vadd.f32 %v3689, %v3811
  %v3882 = vadd.f32 %v3690, %v3813
  %v3883 = vadd.f32 %v3691, %v3815
  %v3884 = vadd.f32 %v3692, %v3817
  %v3885 = vadd.f32 %v3693, %v3819
  %v3886 = vadd.f32 %v3694, %v3821
  %v3887 = vadd.f32 %v3695, %v3823
  %v3888 = vmul.f32 %v2055, %v3395
  %v3889 = vmul.f32 %v2059, %v3395
  %v3890 = vmul.f32 %v2066, %v3399
  %v3891 = vmul.f32 %v2070, %v3399
  %v3892 = vmul.f32 %v2077, %v3403
  %v3893 = vmul.f32 %v2081, %v3403
  %v3894 = vmul.f32 %v2088, %v3407
  %v3895 = vmul.f32 %v2092, %v3407
  %v3896 = vmul.f32 %v2099, %v3411
  %v3897 = vmul.f32 %v2103, %v3411
  %v3898 = vmul.f32 %v2110, %v3415
  %v3899 = vmul.f32 %v2114, %v3415
  %v3900 = vmul.f32 %v2121, %v3419
  %v3901 = vmul.f32 %v2125, %v3419
  %v3902 = vmul.f32 %v2132, %v3423
  %v3903 = vmul.f32 %v2136, %v3423
  %v3904 = vmul.f32 %v2143, %v3427
  %v3905 = vmul.f32 %v2147, %v3427
  %v3906 = vmul.f32 %v2154, %v3431
  %v3907 = vmul.f32 %v2158, %v3431
  %v3908 = vmul.f32 %v2165, %v3435
  %v3909 = vmul.f32 %v2169, %v3435
  %v3910 = vmul.f32 %v2176, %v3439
  %v3911 = vmul.f32 %v2180, %v3439
  %v3912 = vmul.f32 %v2187, %v3443
  %v3913 = vmul.f32 %v2191, %v3443
  %v3914 = vmul.f32 %v2198, %v3447
  %v3915 = vmul.f32 %v2202, %v3447
  %v3916 = vmul.f32 %v2209, %v3451
  %v3917 = vmul.f32 %v2213, %v3451
  %v3918 = vmul.f32 %v2220, %v3455
  %v3919 = vmul.f32 %v2224, %v3455
  %3952 = vrot.lane.b32.xlu0 %v3888, 104
  %v3953 = vpop.permute.xlu0 %3952
  %3954 = vrot.lane.b32.xlu0 %v3889, 104
  %v3955 = vpop.permute.xlu0 %3954
  %3956 = vrot.lane.b32.xlu0 %v3890, 104
  %v3957 = vpop.permute.xlu0 %3956
  %3958 = vrot.lane.b32.xlu0 %v3891, 104
  %v3959 = vpop.permute.xlu0 %3958
  %3960 = vrot.lane.b32.xlu0 %v3892, 104
  %v3961 = vpop.permute.xlu0 %3960
  %3962 = vrot.lane.b32.xlu0 %v3893, 104
  %v3963 = vpop.permute.xlu0 %3962
  %3964 = vrot.lane.b32.xlu0 %v3894, 104
  %v3965 = vpop.permute.xlu0 %3964
  %3966 = vrot.lane.b32.xlu0 %v3895, 104
  %v3967 = vpop.permute.xlu0 %3966
  %3968 = vrot.lane.b32.xlu0 %v3896, 104
  %v3969 = vpop.permute.xlu0 %3968
  %3970 = vrot.lane.b32.xlu0 %v3897, 104
  %v3971 = vpop.permute.xlu0 %3970
  %3972 = vrot.lane.b32.xlu0 %v3898, 104
  %v3973 = vpop.permute.xlu0 %3972
  %3974 = vrot.lane.b32.xlu0 %v3899, 104
  %v3975 = vpop.permute.xlu0 %3974
  %3976 = vrot.lane.b32.xlu0 %v3900, 104
  %v3977 = vpop.permute.xlu0 %3976
  %3978 = vrot.lane.b32.xlu0 %v3901, 104
  %v3979 = vpop.permute.xlu0 %3978
  %3980 = vrot.lane.b32.xlu0 %v3902, 104
  %v3981 = vpop.permute.xlu0 %3980
  %3982 = vrot.lane.b32.xlu0 %v3903, 104
  %v3983 = vpop.permute.xlu0 %3982
  %3984 = vrot.lane.b32.xlu0 %v3904, 104
  %v3985 = vpop.permute.xlu0 %3984
  %3986 = vrot.lane.b32.xlu0 %v3905, 104
  %v3987 = vpop.permute.xlu0 %3986
  %3988 = vrot.lane.b32.xlu0 %v3906, 104
  %v3989 = vpop.permute.xlu0 %3988
  %3990 = vrot.lane.b32.xlu0 %v3907, 104
  %v3991 = vpop.permute.xlu0 %3990
  %3992 = vrot.lane.b32.xlu0 %v3908, 104
  %v3993 = vpop.permute.xlu0 %3992
  %3994 = vrot.lane.b32.xlu0 %v3909, 104
  %v3995 = vpop.permute.xlu0 %3994
  %3996 = vrot.lane.b32.xlu0 %v3910, 104
  %v3997 = vpop.permute.xlu0 %3996
  %3998 = vrot.lane.b32.xlu0 %v3911, 104
  %v3999 = vpop.permute.xlu0 %3998
  %4000 = vrot.lane.b32.xlu0 %v3912, 104
  %v4001 = vpop.permute.xlu0 %4000
  %4002 = vrot.lane.b32.xlu0 %v3913, 104
  %v4003 = vpop.permute.xlu0 %4002
  %4004 = vrot.lane.b32.xlu0 %v3914, 104
  %v4005 = vpop.permute.xlu0 %4004
  %4006 = vrot.lane.b32.xlu0 %v3915, 104
  %v4007 = vpop.permute.xlu0 %4006
  %4008 = vrot.lane.b32.xlu0 %v3916, 104
  %v4009 = vpop.permute.xlu0 %4008
  %4010 = vrot.lane.b32.xlu0 %v3917, 104
  %v4011 = vpop.permute.xlu0 %4010
  %4012 = vrot.lane.b32.xlu0 %v3918, 104
  %v4013 = vpop.permute.xlu0 %4012
  %4014 = vrot.lane.b32.xlu0 %v3919, 104
  %v4015 = vpop.permute.xlu0 %4014
  %v4048 = vadd.f32 %v3856, %v3953
  %v4049 = vadd.f32 %v3857, %v3955
  %v4050 = vadd.f32 %v3858, %v3957
  %v4051 = vadd.f32 %v3859, %v3959
  %v4052 = vadd.f32 %v3860, %v3961
  %v4053 = vadd.f32 %v3861, %v3963
  %v4054 = vadd.f32 %v3862, %v3965
  %v4055 = vadd.f32 %v3863, %v3967
  %v4056 = vadd.f32 %v3864, %v3969
  %v4057 = vadd.f32 %v3865, %v3971
  %v4058 = vadd.f32 %v3866, %v3973
  %v4059 = vadd.f32 %v3867, %v3975
  %v4060 = vadd.f32 %v3868, %v3977
  %v4061 = vadd.f32 %v3869, %v3979
  %v4062 = vadd.f32 %v3870, %v3981
  %v4063 = vadd.f32 %v3871, %v3983
  %v4064 = vadd.f32 %v3872, %v3985
  %v4065 = vadd.f32 %v3873, %v3987
  %v4066 = vadd.f32 %v3874, %v3989
  %v4067 = vadd.f32 %v3875, %v3991
  %v4068 = vadd.f32 %v3876, %v3993
  %v4069 = vadd.f32 %v3877, %v3995
  %v4070 = vadd.f32 %v3878, %v3997
  %v4071 = vadd.f32 %v3879, %v3999
  %v4072 = vadd.f32 %v3880, %v4001
  %v4073 = vadd.f32 %v3881, %v4003
  %v4074 = vadd.f32 %v3882, %v4005
  %v4075 = vadd.f32 %v3883, %v4007
  %v4076 = vadd.f32 %v3884, %v4009
  %v4077 = vadd.f32 %v3885, %v4011
  %v4078 = vadd.f32 %v3886, %v4013
  %v4079 = vadd.f32 %v3887, %v4015
  %v4080 = vsub.f32 %v4048, %v338
  %v4081 = vsub.f32 %v4049, %v339
  %v4082 = vsub.f32 %v4050, %v340
  %v4083 = vsub.f32 %v4051, %v341
  %v4084 = vsub.f32 %v4052, %v342
  %v4085 = vsub.f32 %v4053, %v343
  %v4086 = vsub.f32 %v4054, %v344
  %v4087 = vsub.f32 %v4055, %v345
  %v4088 = vsub.f32 %v4056, %v346
  %v4089 = vsub.f32 %v4057, %v347
  %v4090 = vsub.f32 %v4058, %v348
  %v4091 = vsub.f32 %v4059, %v349
  %v4092 = vsub.f32 %v4060, %v350
  %v4093 = vsub.f32 %v4061, %v351
  %v4094 = vsub.f32 %v4062, %v352
  %v4095 = vsub.f32 %v4063, %v353
  %v4096 = vsub.f32 %v4064, %v354
  %v4097 = vsub.f32 %v4065, %v355
  %v4098 = vsub.f32 %v4066, %v356
  %v4099 = vsub.f32 %v4067, %v357
  %v4100 = vsub.f32 %v4068, %v358
  %v4101 = vsub.f32 %v4069, %v359
  %v4102 = vsub.f32 %v4070, %v360
  %v4103 = vsub.f32 %v4071, %v361
  %v4104 = vsub.f32 %v4072, %v362
  %v4105 = vsub.f32 %v4073, %v363
  %v4106 = vsub.f32 %v4074, %v364
  %v4107 = vsub.f32 %v4075, %v365
  %v4108 = vsub.f32 %v4076, %v366
  %v4109 = vsub.f32 %v4077, %v367
  %v4110 = vsub.f32 %v4078, %v368
  %v4111 = vsub.f32 %v4079, %v369
  %v4112 = vsel %vm2449, %v4080, -inf
  %v4113 = vsel %vm2449, %v4082, -inf
  %v4114 = vsel %vm2449, %v4084, -inf
  %v4115 = vmax.f32 %v4112, %v4114
  %v4116 = vsel %vm2449, %v4086, -inf
  %v4117 = vmax.f32 %v4113, %v4116
  %v4118 = vsel %vm2449, %v4088, -inf
  %v4119 = vmax.f32 %v4115, %v4118
  %v4120 = vsel %vm2449, %v4090, -inf
  %v4121 = vmax.f32 %v4117, %v4120
  %v4122 = vsel %vm2449, %v4092, -inf
  %v4123 = vmax.f32 %v4119, %v4122
  %v4124 = vsel %vm2449, %v4094, -inf
  %v4125 = vmax.f32 %v4121, %v4124
  %v4126 = vsel %vm2449, %v4096, -inf
  %v4127 = vmax.f32 %v4123, %v4126
  %v4128 = vsel %vm2449, %v4098, -inf
  %v4129 = vmax.f32 %v4125, %v4128
  %v4130 = vsel %vm2449, %v4100, -inf
  %v4131 = vmax.f32 %v4127, %v4130
  %v4132 = vsel %vm2449, %v4102, -inf
  %v4133 = vmax.f32 %v4129, %v4132
  %v4134 = vsel %vm2449, %v4104, -inf
  %v4135 = vmax.f32 %v4131, %v4134
  %v4136 = vsel %vm2449, %v4106, -inf
  %v4137 = vmax.f32 %v4133, %v4136
  %v4138 = vsel %vm2449, %v4108, -inf
  %v4139 = vmax.f32 %v4135, %v4138
  %v4140 = vsel %vm2449, %v4110, -inf
  %v4141 = vmax.f32 %v4137, %v4140
  %v4142 = vmax.f32 %v4139, %v4141
  %v4143 = vsel %vm2449, %v4081, -inf
  %v4144 = vsel %vm2449, %v4083, -inf
  %v4145 = vsel %vm2449, %v4085, -inf
  %v4146 = vmax.f32 %v4143, %v4145
  %v4147 = vsel %vm2449, %v4087, -inf
  %v4148 = vmax.f32 %v4144, %v4147
  %v4149 = vsel %vm2449, %v4089, -inf
  %v4150 = vmax.f32 %v4146, %v4149
  %v4151 = vsel %vm2449, %v4091, -inf
  %v4152 = vmax.f32 %v4148, %v4151
  %v4153 = vsel %vm2449, %v4093, -inf
  %v4154 = vmax.f32 %v4150, %v4153
  %v4155 = vsel %vm2449, %v4095, -inf
  %v4156 = vmax.f32 %v4152, %v4155
  %v4157 = vsel %vm2449, %v4097, -inf
  %v4158 = vmax.f32 %v4154, %v4157
  %v4159 = vsel %vm2449, %v4099, -inf
  %v4160 = vmax.f32 %v4156, %v4159
  %v4161 = vsel %vm2449, %v4101, -inf
  %v4162 = vmax.f32 %v4158, %v4161
  %v4163 = vsel %vm2449, %v4103, -inf
  %v4164 = vmax.f32 %v4160, %v4163
  %v4165 = vsel %vm2449, %v4105, -inf
  %v4166 = vmax.f32 %v4162, %v4165
  %v4167 = vsel %vm2449, %v4107, -inf
  %v4168 = vmax.f32 %v4164, %v4167
  %v4169 = vsel %vm2449, %v4109, -inf
  %v4170 = vmax.f32 %v4166, %v4169
  %v4171 = vsel %vm2449, %v4111, -inf
  %v4172 = vmax.f32 %v4168, %v4171
  %v4173 = vmax.f32 %v4170, %v4172
  %v4174 = vsub.f32 %v4080, %v4142
  %v4175 = vsub.f32 %v4081, %v4173
  %v4176 = vsub.f32 %v4082, %v4142
  %v4177 = vsub.f32 %v4083, %v4173
  %v4178 = vsub.f32 %v4084, %v4142
  %v4179 = vsub.f32 %v4085, %v4173
  %v4180 = vsub.f32 %v4086, %v4142
  %v4181 = vsub.f32 %v4087, %v4173
  %v4182 = vsub.f32 %v4088, %v4142
  %v4183 = vsub.f32 %v4089, %v4173
  %v4184 = vsub.f32 %v4090, %v4142
  %v4185 = vsub.f32 %v4091, %v4173
  %v4186 = vsub.f32 %v4092, %v4142
  %v4187 = vsub.f32 %v4093, %v4173
  %v4188 = vsub.f32 %v4094, %v4142
  %v4189 = vsub.f32 %v4095, %v4173
  %v4190 = vsub.f32 %v4096, %v4142
  %v4191 = vsub.f32 %v4097, %v4173
  %v4192 = vsub.f32 %v4098, %v4142
  %v4193 = vsub.f32 %v4099, %v4173
  %v4194 = vsub.f32 %v4100, %v4142
  %v4195 = vsub.f32 %v4101, %v4173
  %v4196 = vsub.f32 %v4102, %v4142
  %v4197 = vsub.f32 %v4103, %v4173
  %v4198 = vsub.f32 %v4104, %v4142
  %v4199 = vsub.f32 %v4105, %v4173
  %v4200 = vsub.f32 %v4106, %v4142
  %v4201 = vsub.f32 %v4107, %v4173
  %v4202 = vsub.f32 %v4108, %v4142
  %v4203 = vsub.f32 %v4109, %v4173
  %v4204 = vsub.f32 %v4110, %v4142
  %v4205 = vsub.f32 %v4111, %v4173
  %v4206 = vmul.f32 %v4174, 1.442695
  %v4207 = vpow.pop %v4206
  %v4208 = vmul.f32 %v4175, 1.442695
  %v4209 = vpow.pop %v4208
  %v4210 = vmul.f32 %v4176, 1.442695
  %v4211 = vpow.pop %v4210
  %v4212 = vmul.f32 %v4177, 1.442695
  %v4213 = vpow.pop %v4212
  %v4214 = vmul.f32 %v4178, 1.442695
  %v4215 = vpow.pop %v4214
  %v4216 = vmul.f32 %v4179, 1.442695
  %v4217 = vpow.pop %v4216
  %v4218 = vmul.f32 %v4180, 1.442695
  %v4219 = vpow.pop %v4218
  %v4220 = vmul.f32 %v4181, 1.442695
  %v4221 = vpow.pop %v4220
  %v4222 = vmul.f32 %v4182, 1.442695
  %v4223 = vpow.pop %v4222
  %v4224 = vmul.f32 %v4183, 1.442695
  %v4225 = vpow.pop %v4224
  %v4226 = vmul.f32 %v4184, 1.442695
  %v4227 = vpow.pop %v4226
  %v4228 = vmul.f32 %v4185, 1.442695
  %v4229 = vpow.pop %v4228
  %v4230 = vmul.f32 %v4186, 1.442695
  %v4231 = vpow.pop %v4230
  %v4232 = vmul.f32 %v4187, 1.442695
  %v4233 = vpow.pop %v4232
  %v4234 = vmul.f32 %v4188, 1.442695
  %v4235 = vpow.pop %v4234
  %v4236 = vmul.f32 %v4189, 1.442695
  %v4237 = vpow.pop %v4236
  %v4238 = vmul.f32 %v4190, 1.442695
  %v4239 = vpow.pop %v4238
  %v4240 = vmul.f32 %v4191, 1.442695
  %v4241 = vpow.pop %v4240
  %v4242 = vmul.f32 %v4192, 1.442695
  %v4243 = vpow.pop %v4242
  %v4244 = vmul.f32 %v4193, 1.442695
  %v4245 = vpow.pop %v4244
  %v4246 = vmul.f32 %v4194, 1.442695
  %v4247 = vpow.pop %v4246
  %v4248 = vmul.f32 %v4195, 1.442695
  %v4249 = vpow.pop %v4248
  %v4250 = vmul.f32 %v4196, 1.442695
  %v4251 = vpow.pop %v4250
  %v4252 = vmul.f32 %v4197, 1.442695
  %v4253 = vpow.pop %v4252
  %v4254 = vmul.f32 %v4198, 1.442695
  %v4255 = vpow.pop %v4254
  %v4256 = vmul.f32 %v4199, 1.442695
  %v4257 = vpow.pop %v4256
  %v4258 = vmul.f32 %v4200, 1.442695
  %v4259 = vpow.pop %v4258
  %v4260 = vmul.f32 %v4201, 1.442695
  %v4261 = vpow.pop %v4260
  %v4262 = vmul.f32 %v4202, 1.442695
  %v4263 = vpow.pop %v4262
  %v4264 = vmul.f32 %v4203, 1.442695
  %v4265 = vpow.pop %v4264
  %v4266 = vmul.f32 %v4204, 1.442695
  %v4267 = vpow.pop %v4266
  %v4268 = vmul.f32 %v4205, 1.442695
  %v4269 = vpow.pop %v4268
  %v4270 = vsel %vm2449, %v4207, 0.0
  %v4271 = vsel %vm2449, %v4211, 0.0
  %v4272 = vadd.f32 %v4270, %v4271
  %v4273 = vsel %vm2449, %v4215, 0.0
  %v4274 = vadd.f32 %v4272, %v4273
  %v4275 = vsel %vm2449, %v4219, 0.0
  %v4276 = vadd.f32 %v4274, %v4275
  %v4277 = vsel %vm2449, %v4223, 0.0
  %v4278 = vadd.f32 %v4276, %v4277
  %v4279 = vsel %vm2449, %v4227, 0.0
  %v4280 = vadd.f32 %v4278, %v4279
  %v4281 = vsel %vm2449, %v4231, 0.0
  %v4282 = vadd.f32 %v4280, %v4281
  %v4283 = vsel %vm2449, %v4235, 0.0
  %v4284 = vadd.f32 %v4282, %v4283
  %v4285 = vsel %vm2449, %v4239, 0.0
  %v4286 = vadd.f32 %v4284, %v4285
  %v4287 = vsel %vm2449, %v4243, 0.0
  %v4288 = vadd.f32 %v4286, %v4287
  %v4289 = vsel %vm2449, %v4247, 0.0
  %v4290 = vadd.f32 %v4288, %v4289
  %v4291 = vsel %vm2449, %v4251, 0.0
  %v4292 = vadd.f32 %v4290, %v4291
  %v4293 = vsel %vm2449, %v4255, 0.0
  %v4294 = vadd.f32 %v4292, %v4293
  %v4295 = vsel %vm2449, %v4259, 0.0
  %v4296 = vadd.f32 %v4294, %v4295
  %v4297 = vsel %vm2449, %v4263, 0.0
  %v4298 = vadd.f32 %v4296, %v4297
  %v4299 = vsel %vm2449, %v4267, 0.0
  %v4300 = vadd.f32 %v4298, %v4299
  %v4301 = vsel %vm2449, %v4209, 0.0
  %v4302 = vsel %vm2449, %v4213, 0.0
  %v4303 = vadd.f32 %v4301, %v4302
  %v4304 = vsel %vm2449, %v4217, 0.0
  %v4305 = vadd.f32 %v4303, %v4304
  %v4306 = vsel %vm2449, %v4221, 0.0
  %v4307 = vadd.f32 %v4305, %v4306
  %v4308 = vsel %vm2449, %v4225, 0.0
  %v4309 = vadd.f32 %v4307, %v4308
  %v4310 = vsel %vm2449, %v4229, 0.0
  %v4311 = vadd.f32 %v4309, %v4310
  %v4312 = vsel %vm2449, %v4233, 0.0
  %v4313 = vadd.f32 %v4311, %v4312
  %v4314 = vsel %vm2449, %v4237, 0.0
  %v4315 = vadd.f32 %v4313, %v4314
  %v4316 = vsel %vm2449, %v4241, 0.0
  %v4317 = vadd.f32 %v4315, %v4316
  %v4318 = vsel %vm2449, %v4245, 0.0
  %v4319 = vadd.f32 %v4317, %v4318
  %v4320 = vsel %vm2449, %v4249, 0.0
  %v4321 = vadd.f32 %v4319, %v4320
  %v4322 = vsel %vm2449, %v4253, 0.0
  %v4323 = vadd.f32 %v4321, %v4322
  %v4324 = vsel %vm2449, %v4257, 0.0
  %v4325 = vadd.f32 %v4323, %v4324
  %v4326 = vsel %vm2449, %v4261, 0.0
  %v4327 = vadd.f32 %v4325, %v4326
  %v4328 = vsel %vm2449, %v4265, 0.0
  %v4329 = vadd.f32 %v4327, %v4328
  %v4330 = vsel %vm2449, %v4269, 0.0
  %v4331 = vadd.f32 %v4329, %v4330
  %v4332 = vrcp.pop %v4300
  %v4333 = vrcp.pop %v4331
  %v4334 = vmul.f32 %v4207, %v4332
  %v4335 = vmul.f32 %v4209, %v4333
  %v4336 = vmul.f32 %v4211, %v4332
  %v4337 = vmul.f32 %v4213, %v4333
  %v4338 = vmul.f32 %v4215, %v4332
  %v4339 = vmul.f32 %v4217, %v4333
  %v4340 = vmul.f32 %v4219, %v4332
  %v4341 = vmul.f32 %v4221, %v4333
  %v4342 = vmul.f32 %v4223, %v4332
  %v4343 = vmul.f32 %v4225, %v4333
  %v4344 = vmul.f32 %v4227, %v4332
  %v4345 = vmul.f32 %v4229, %v4333
  %v4346 = vmul.f32 %v4231, %v4332
  %v4347 = vmul.f32 %v4233, %v4333
  %v4348 = vmul.f32 %v4235, %v4332
  %v4349 = vmul.f32 %v4237, %v4333
  %v4350 = vmul.f32 %v4239, %v4332
  %v4351 = vmul.f32 %v4241, %v4333
  %v4352 = vmul.f32 %v4243, %v4332
  %v4353 = vmul.f32 %v4245, %v4333
  %v4354 = vmul.f32 %v4247, %v4332
  %v4355 = vmul.f32 %v4249, %v4333
  %v4356 = vmul.f32 %v4251, %v4332
  %v4357 = vmul.f32 %v4253, %v4333
  %v4358 = vmul.f32 %v4255, %v4332
  %v4359 = vmul.f32 %v4257, %v4333
  %v4360 = vmul.f32 %v4259, %v4332
  %v4361 = vmul.f32 %v4261, %v4333
  %v4362 = vmul.f32 %v4263, %v4332
  %v4363 = vmul.f32 %v4265, %v4333
  %v4364 = vmul.f32 %v4267, %v4332
  %v4365 = vmul.f32 %v4269, %v4333
  %4398 = vrot.lane.b32.xlu0 %v4048, 32
  %v4399 = vpop.permute.xlu0 %4398
  %4400 = vrot.lane.b32.xlu0 %v4049, 32
  %v4401 = vpop.permute.xlu0 %4400
  %4402 = vrot.lane.b32.xlu0 %v4050, 32
  %v4403 = vpop.permute.xlu0 %4402
  %4404 = vrot.lane.b32.xlu0 %v4051, 32
  %v4405 = vpop.permute.xlu0 %4404
  %4406 = vrot.lane.b32.xlu0 %v4052, 32
  %v4407 = vpop.permute.xlu0 %4406
  %4408 = vrot.lane.b32.xlu0 %v4053, 32
  %v4409 = vpop.permute.xlu0 %4408
  %4410 = vrot.lane.b32.xlu0 %v4054, 32
  %v4411 = vpop.permute.xlu0 %4410
  %4412 = vrot.lane.b32.xlu0 %v4055, 32
  %v4413 = vpop.permute.xlu0 %4412
  %4414 = vrot.lane.b32.xlu0 %v4056, 32
  %v4415 = vpop.permute.xlu0 %4414
  %4416 = vrot.lane.b32.xlu0 %v4057, 32
  %v4417 = vpop.permute.xlu0 %4416
  %4418 = vrot.lane.b32.xlu0 %v4058, 32
  %v4419 = vpop.permute.xlu0 %4418
  %4420 = vrot.lane.b32.xlu0 %v4059, 32
  %v4421 = vpop.permute.xlu0 %4420
  %4422 = vrot.lane.b32.xlu0 %v4060, 32
  %v4423 = vpop.permute.xlu0 %4422
  %4424 = vrot.lane.b32.xlu0 %v4061, 32
  %v4425 = vpop.permute.xlu0 %4424
  %4426 = vrot.lane.b32.xlu0 %v4062, 32
  %v4427 = vpop.permute.xlu0 %4426
  %4428 = vrot.lane.b32.xlu0 %v4063, 32
  %v4429 = vpop.permute.xlu0 %4428
  %4430 = vrot.lane.b32.xlu0 %v4064, 32
  %v4431 = vpop.permute.xlu0 %4430
  %4432 = vrot.lane.b32.xlu0 %v4065, 32
  %v4433 = vpop.permute.xlu0 %4432
  %4434 = vrot.lane.b32.xlu0 %v4066, 32
  %v4435 = vpop.permute.xlu0 %4434
  %4436 = vrot.lane.b32.xlu0 %v4067, 32
  %v4437 = vpop.permute.xlu0 %4436
  %4438 = vrot.lane.b32.xlu0 %v4068, 32
  %v4439 = vpop.permute.xlu0 %4438
  %4440 = vrot.lane.b32.xlu0 %v4069, 32
  %v4441 = vpop.permute.xlu0 %4440
  %4442 = vrot.lane.b32.xlu0 %v4070, 32
  %v4443 = vpop.permute.xlu0 %4442
  %4444 = vrot.lane.b32.xlu0 %v4071, 32
  %v4445 = vpop.permute.xlu0 %4444
  %4446 = vrot.lane.b32.xlu0 %v4072, 32
  %v4447 = vpop.permute.xlu0 %4446
  %4448 = vrot.lane.b32.xlu0 %v4073, 32
  %v4449 = vpop.permute.xlu0 %4448
  %4450 = vrot.lane.b32.xlu0 %v4074, 32
  %v4451 = vpop.permute.xlu0 %4450
  %4452 = vrot.lane.b32.xlu0 %v4075, 32
  %v4453 = vpop.permute.xlu0 %4452
  %4454 = vrot.lane.b32.xlu0 %v4076, 32
  %v4455 = vpop.permute.xlu0 %4454
  %4456 = vrot.lane.b32.xlu0 %v4077, 32
  %v4457 = vpop.permute.xlu0 %4456
  %4458 = vrot.lane.b32.xlu0 %v4078, 32
  %v4459 = vpop.permute.xlu0 %4458
  %4460 = vrot.lane.b32.xlu0 %v4079, 32
  %v4461 = vpop.permute.xlu0 %4460
  %v4494 = vmul.f32 %v4334, %v4399
  %v4495 = vmul.f32 %v4335, %v4401
  %v4496 = vmul.f32 %v4336, %v4403
  %v4497 = vmul.f32 %v4337, %v4405
  %v4498 = vmul.f32 %v4338, %v4407
  %v4499 = vmul.f32 %v4339, %v4409
  %v4500 = vmul.f32 %v4340, %v4411
  %v4501 = vmul.f32 %v4341, %v4413
  %v4502 = vmul.f32 %v4342, %v4415
  %v4503 = vmul.f32 %v4343, %v4417
  %v4504 = vmul.f32 %v4344, %v4419
  %v4505 = vmul.f32 %v4345, %v4421
  %v4506 = vmul.f32 %v4346, %v4423
  %v4507 = vmul.f32 %v4347, %v4425
  %v4508 = vmul.f32 %v4348, %v4427
  %v4509 = vmul.f32 %v4349, %v4429
  %v4510 = vmul.f32 %v4350, %v4431
  %v4511 = vmul.f32 %v4351, %v4433
  %v4512 = vmul.f32 %v4352, %v4435
  %v4513 = vmul.f32 %v4353, %v4437
  %v4514 = vmul.f32 %v4354, %v4439
  %v4515 = vmul.f32 %v4355, %v4441
  %v4516 = vmul.f32 %v4356, %v4443
  %v4517 = vmul.f32 %v4357, %v4445
  %v4518 = vmul.f32 %v4358, %v4447
  %v4519 = vmul.f32 %v4359, %v4449
  %v4520 = vmul.f32 %v4360, %v4451
  %v4521 = vmul.f32 %v4361, %v4453
  %v4522 = vmul.f32 %v4362, %v4455
  %v4523 = vmul.f32 %v4363, %v4457
  %v4524 = vmul.f32 %v4364, %v4459
  %v4525 = vmul.f32 %v4365, %v4461
  %v4526 = vsel %vm2449, %v4494, 0.0
  %v4527 = vsel %vm2449, %v4496, 0.0
  %v4528 = vadd.f32 %v4526, %v4527
  %v4529 = vsel %vm2449, %v4498, 0.0
  %v4530 = vadd.f32 %v4528, %v4529
  %v4531 = vsel %vm2449, %v4500, 0.0
  %v4532 = vadd.f32 %v4530, %v4531
  %v4533 = vsel %vm2449, %v4502, 0.0
  %v4534 = vadd.f32 %v4532, %v4533
  %v4535 = vsel %vm2449, %v4504, 0.0
  %v4536 = vadd.f32 %v4534, %v4535
  %v4537 = vsel %vm2449, %v4506, 0.0
  %v4538 = vadd.f32 %v4536, %v4537
  %v4539 = vsel %vm2449, %v4508, 0.0
  %v4540 = vadd.f32 %v4538, %v4539
  %v4541 = vsel %vm2449, %v4510, 0.0
  %v4542 = vadd.f32 %v4540, %v4541
  %v4543 = vsel %vm2449, %v4512, 0.0
  %v4544 = vadd.f32 %v4542, %v4543
  %v4545 = vsel %vm2449, %v4514, 0.0
  %v4546 = vadd.f32 %v4544, %v4545
  %v4547 = vsel %vm2449, %v4516, 0.0
  %v4548 = vadd.f32 %v4546, %v4547
  %v4549 = vsel %vm2449, %v4518, 0.0
  %v4550 = vadd.f32 %v4548, %v4549
  %v4551 = vsel %vm2449, %v4520, 0.0
  %v4552 = vadd.f32 %v4550, %v4551
  %v4553 = vsel %vm2449, %v4522, 0.0
  %v4554 = vadd.f32 %v4552, %v4553
  %v4555 = vsel %vm2449, %v4524, 0.0
  %v4556 = vadd.f32 %v4554, %v4555
  %v4557 = vsel %vm2449, %v4495, 0.0
  %v4558 = vsel %vm2449, %v4497, 0.0
  %v4559 = vadd.f32 %v4557, %v4558
  %v4560 = vsel %vm2449, %v4499, 0.0
  %v4561 = vadd.f32 %v4559, %v4560
  %v4562 = vsel %vm2449, %v4501, 0.0
  %v4563 = vadd.f32 %v4561, %v4562
  %v4564 = vsel %vm2449, %v4503, 0.0
  %v4565 = vadd.f32 %v4563, %v4564
  %v4566 = vsel %vm2449, %v4505, 0.0
  %v4567 = vadd.f32 %v4565, %v4566
  %v4568 = vsel %vm2449, %v4507, 0.0
  %v4569 = vadd.f32 %v4567, %v4568
  %v4570 = vsel %vm2449, %v4509, 0.0
  %v4571 = vadd.f32 %v4569, %v4570
  %v4572 = vsel %vm2449, %v4511, 0.0
  %v4573 = vadd.f32 %v4571, %v4572
  %v4574 = vsel %vm2449, %v4513, 0.0
  %v4575 = vadd.f32 %v4573, %v4574
  %v4576 = vsel %vm2449, %v4515, 0.0
  %v4577 = vadd.f32 %v4575, %v4576
  %v4578 = vsel %vm2449, %v4517, 0.0
  %v4579 = vadd.f32 %v4577, %v4578
  %v4580 = vsel %vm2449, %v4519, 0.0
  %v4581 = vadd.f32 %v4579, %v4580
  %v4582 = vsel %vm2449, %v4521, 0.0
  %v4583 = vadd.f32 %v4581, %v4582
  %v4584 = vsel %vm2449, %v4523, 0.0
  %v4585 = vadd.f32 %v4583, %v4584
  %v4586 = vsel %vm2449, %v4525, 0.0
  %v4587 = vadd.f32 %v4585, %v4586
  %v4588 = vpack.c.bf16 %v4587, %v4556
  %4590 = vrot.lane.b32.xlu0 %v4588, 96
  %v4591 = vpop.permute.xlu0 %4590
  %v4593 = vsel %vm2936, %v4591, 0
  %4595 = vmatprep.subr.bf16.mxu0 0
  %4596 = vmatpush1.bf16.msra.mxu0 0
  %4597 = vmatprep.subr.bf16.mxu0 0
  %4598 = vmatpush1.bf16.msra.mxu0 0
  %4599 = vmatprep.subr.bf16.mxu0 0
  %4600 = vmatpush1.bf16.msra.mxu0 0
  %4601 = vmatprep.subr.bf16.mxu0 0
  %4602 = vmatpush1.bf16.msra.mxu0 0
  %4603 = vmatprep.subr.bf16.mxu0 0
  %4604 = vmatpush1.bf16.msra.mxu0 0
  %4605 = vmatprep.subr.bf16.mxu0 0
  %4606 = vmatpush1.bf16.msra.mxu0 0
  %4607 = vmatprep.subr.bf16.mxu0 0
  %4608 = vmatpush1.bf16.msra.mxu0 0
  %4609 = vmatprep.subr.bf16.mxu0 0
  %4610 = vmatpush1.bf16.msra.mxu0 %v2942
  %4611 = vmatprep.subr.bf16.mxu0 0
  %4612 = vmatpush2.bf16.msra.mxu0 0
  %4613 = vmatprep.subr.bf16.mxu0 0
  %4614 = vmatpush2.bf16.msra.mxu0 0
  %4615 = vmatprep.subr.bf16.mxu0 0
  %4616 = vmatpush2.bf16.msra.mxu0 0
  %4617 = vmatprep.subr.bf16.mxu0 0
  %4618 = vmatpush2.bf16.msra.mxu0 0
  %4619 = vmatprep.subr.bf16.mxu0 0
  %4620 = vmatpush2.bf16.msra.mxu0 0
  %4621 = vmatprep.subr.bf16.mxu0 0
  %4622 = vmatpush2.bf16.msra.mxu0 0
  %4623 = vmatprep.subr.bf16.mxu0 0
  %4624 = vmatpush2.bf16.msra.mxu0 0
  %4625 = vmatprep.subr.bf16.mxu0 0
  %4626 = vmatpush2.bf16.msra.mxu0 0
  %4627 = vmatprep.mubr.bf16.mxu0 0
  %4628 = vmatmul.mubr.bf16.gmra.mxu0 %v4593
  %v4629 = vpop.f32.mrf.mxu0
  %v4630 = vadd.f32 %v2931, %v4629
  %v4631 = vpop.f32.mrf.mxu0
  %v4632 = vpop.f32.mrf.mxu0
  %v4633 = vadd.f32 %v2931, %v4632
  %v4634 = vpop.f32.mrf.mxu0
  %4635 = vdwg.mxu0
  %4636 = vmatprep.subr.bf16.mxu0 0
  %4637 = vmatpush1.bf16.msra.mxu0 0
  %4638 = vmatprep.subr.bf16.mxu0 0
  %4639 = vmatpush1.bf16.msra.mxu0 0
  %4640 = vmatprep.subr.bf16.mxu0 0
  %4641 = vmatpush1.bf16.msra.mxu0 0
  %4642 = vmatprep.subr.bf16.mxu0 0
  %4643 = vmatpush1.bf16.msra.mxu0 0
  %4644 = vmatprep.subr.bf16.mxu0 0
  %4645 = vmatpush1.bf16.msra.mxu0 0
  %4646 = vmatprep.subr.bf16.mxu0 0
  %4647 = vmatpush1.bf16.msra.mxu0 0
  %4648 = vmatprep.subr.bf16.mxu0 0
  %4649 = vmatpush1.bf16.msra.mxu0 0
  %4650 = vmatprep.subr.bf16.mxu0 0
  %4651 = vmatpush1.bf16.msra.mxu0 %v2995
  %4652 = vmatprep.subr.bf16.mxu0 0
  %4653 = vmatpush2.bf16.msra.mxu0 0
  %4654 = vmatprep.subr.bf16.mxu0 0
  %4655 = vmatpush2.bf16.msra.mxu0 0
  %4656 = vmatprep.subr.bf16.mxu0 0
  %4657 = vmatpush2.bf16.msra.mxu0 0
  %4658 = vmatprep.subr.bf16.mxu0 0
  %4659 = vmatpush2.bf16.msra.mxu0 0
  %4660 = vmatprep.subr.bf16.mxu0 0
  %4661 = vmatpush2.bf16.msra.mxu0 0
  %4662 = vmatprep.subr.bf16.mxu0 0
  %4663 = vmatpush2.bf16.msra.mxu0 0
  %4664 = vmatprep.subr.bf16.mxu0 0
  %4665 = vmatpush2.bf16.msra.mxu0 0
  %4666 = vmatprep.subr.bf16.mxu0 0
  %4667 = vmatpush2.bf16.msra.mxu0 0
  %4668 = vmatprep.mubr.bf16.mxu0 0
  %4669 = vmatmul.mubr.bf16.gmra.mxu0 %v3103
  %v4670 = vpop.f32.mrf.mxu0
  %v4671 = vadd.f32 %v2989, %v4670
  %v4672 = vpop.f32.mrf.mxu0
  %v4673 = vpop.f32.mrf.mxu0
  %v4674 = vadd.f32 %v2989, %v4673
  %v4675 = vpop.f32.mrf.mxu0
  %4676 = vdwg.mxu0
  %v4677 = vadd.f32 %v4630, %v4671
  %v4678 = vadd.f32 %v4633, %v4674
  %v4679 = vxor.u32 %v4677, 2147483648
  %v4680 = vxor.u32 %v4678, 2147483648
  %v4681 = vmul.f32 %v4679, 1.442695
  %v4682 = vpow.pop %v4681
  %v4683 = vmul.f32 %v4680, 1.442695
  %v4684 = vpow.pop %v4683
  %v4685 = vadd.f32 %v4682, 1.0
  %v4686 = vadd.f32 %v4684, 1.0
  %v4687 = vrcp.pop %v4685
  %v4688 = vmul.f32 1.0, %v4687
  %v4689 = vrcp.pop %v4686
  %v4690 = vmul.f32 1.0, %v4689
  %4693 = vrot.lane.b32.xlu0 %v4671, 96
  %v4694 = vpop.permute.xlu0 %4693
  %4695 = vrot.lane.b32.xlu0 %v4674, 96
  %v4696 = vpop.permute.xlu0 %4695
  %v4699 = vmul.f32 %v4688, %v4694
  %v4700 = vmul.f32 %v4690, %v4696
  %4703 = vrot.lane.b32.xlu0 %v4699, 32
  %v4704 = vpop.permute.xlu0 %4703
  %4705 = vrot.lane.b32.xlu0 %v4700, 32
  %v4706 = vpop.permute.xlu0 %4705
  %v4709 = vadd.f32 %v4630, %v4704
  %v4710 = vadd.f32 %v4633, %v4706
  %v4711 = vtanh.pop %v4709
  %v4712 = vtanh.pop %v4710
  %v4713 = vsub.f32 1.0, %v4688
  %v4714 = vsub.f32 1.0, %v4690
  %4717 = vrot.lane.b32.xlu0 %v4711, 112
  %v4718 = vpop.permute.xlu0 %4717
  %4719 = vrot.lane.b32.xlu0 %v4712, 112
  %v4720 = vpop.permute.xlu0 %4719
  %v4723 = vmul.f32 %v4713, %v4718
  %v4724 = vmul.f32 %v4714, %v4720
  %v4725 = vmul.f32 %v4688, %v3096
  %v4726 = vmul.f32 %v4690, %v3097
  %v4727 = vadd.f32 %v4723, %v4725
  %v4728 = vadd.f32 %v4724, %v4726
  %v4729 = vpack.c.bf16 %v4728, %v4727
  %v4730 = vld [vmem:[%s29] sm:$0xf]
  %v4731 = vld [vmem:[%s29 + $0x4] sm:$0xf]
  %v4732 = vld [vmem:[%s31] sm:$0xf]
  %v4733 = vld [vmem:[%s31 + $0x4] sm:$0xf]
  %v4736 = vunpack.c.l.b16 %v4732
  %v4737 = vunpack.c.l.b16 %v4733
  %v4738 = vpack.c.b16 %v4737, %v4736
  %4740 = vmatprep.subr.bf16.mxu0 0
  %4741 = vmatpush1.bf16.msra.mxu0 0
  %4742 = vmatprep.subr.bf16.mxu0 0
  %4743 = vmatpush1.bf16.msra.mxu0 0
  %4744 = vmatprep.subr.bf16.mxu0 0
  %4745 = vmatpush1.bf16.msra.mxu0 0
  %4746 = vmatprep.subr.bf16.mxu0 0
  %4747 = vmatpush1.bf16.msra.mxu0 0
  %4748 = vmatprep.subr.bf16.mxu0 0
  %4749 = vmatpush1.bf16.msra.mxu0 0
  %4750 = vmatprep.subr.bf16.mxu0 0
  %4751 = vmatpush1.bf16.msra.mxu0 0
  %4752 = vmatprep.subr.bf16.mxu0 0
  %4753 = vmatpush1.bf16.msra.mxu0 0
  %4754 = vmatprep.subr.bf16.mxu0 0
  %4755 = vmatpush1.bf16.msra.mxu0 %v4738
  %4756 = vmatprep.subr.bf16.mxu0 0
  %4757 = vmatpush2.bf16.msra.mxu0 0
  %4758 = vmatprep.subr.bf16.mxu0 0
  %4759 = vmatpush2.bf16.msra.mxu0 0
  %4760 = vmatprep.subr.bf16.mxu0 0
  %4761 = vmatpush2.bf16.msra.mxu0 0
  %4762 = vmatprep.subr.bf16.mxu0 0
  %4763 = vmatpush2.bf16.msra.mxu0 0
  %4764 = vmatprep.subr.bf16.mxu0 0
  %4765 = vmatpush2.bf16.msra.mxu0 0
  %4766 = vmatprep.subr.bf16.mxu0 0
  %4767 = vmatpush2.bf16.msra.mxu0 0
  %4768 = vmatprep.subr.bf16.mxu0 0
  %4769 = vmatpush2.bf16.msra.mxu0 0
  %4770 = vmatprep.subr.bf16.mxu0 0
  %4771 = vmatpush2.bf16.msra.mxu0 0
  %4772 = vmatprep.mubr.bf16.mxu0 0
  %4773 = vmatmul.mubr.bf16.gmra.mxu0 %v397
  %v4774 = vpop.f32.mrf.mxu0
  %v4775 = vadd.f32 0.0, %v4774
  %v4776 = vpop.f32.mrf.mxu0
  %v4777 = vpop.f32.mrf.mxu0
  %v4778 = vadd.f32 0.0, %v4777
  %v4779 = vpop.f32.mrf.mxu0
  %4780 = vdwg.mxu0
  %4782 = vrot.lane.b32.xlu0 %v4729, 112
  %v4783 = vpop.permute.xlu0 %4782
  %v4786 = vunpack.c.l.b16 %v4730
  %v4787 = vunpack.c.l.b16 %v4731
  %v4788 = vpack.c.b16 %v4787, %v4786
  %v4791 = vsel %vm395, %v4783, 0
  %4793 = vmatprep.subr.bf16.mxu0 0
  %4794 = vmatpush1.bf16.msra.mxu0 0
  %4795 = vmatprep.subr.bf16.mxu0 0
  %4796 = vmatpush1.bf16.msra.mxu0 0
  %4797 = vmatprep.subr.bf16.mxu0 0
  %4798 = vmatpush1.bf16.msra.mxu0 0
  %4799 = vmatprep.subr.bf16.mxu0 0
  %4800 = vmatpush1.bf16.msra.mxu0 0
  %4801 = vmatprep.subr.bf16.mxu0 0
  %4802 = vmatpush1.bf16.msra.mxu0 0
  %4803 = vmatprep.subr.bf16.mxu0 0
  %4804 = vmatpush1.bf16.msra.mxu0 0
  %4805 = vmatprep.subr.bf16.mxu0 0
  %4806 = vmatpush1.bf16.msra.mxu0 0
  %4807 = vmatprep.subr.bf16.mxu0 0
  %4808 = vmatpush1.bf16.msra.mxu0 %v4788
  %4809 = vmatprep.subr.bf16.mxu0 0
  %4810 = vmatpush2.bf16.msra.mxu0 0
  %4811 = vmatprep.subr.bf16.mxu0 0
  %4812 = vmatpush2.bf16.msra.mxu0 0
  %4813 = vmatprep.subr.bf16.mxu0 0
  %4814 = vmatpush2.bf16.msra.mxu0 0
  %4815 = vmatprep.subr.bf16.mxu0 0
  %4816 = vmatpush2.bf16.msra.mxu0 0
  %4817 = vmatprep.subr.bf16.mxu0 0
  %4818 = vmatpush2.bf16.msra.mxu0 0
  %4819 = vmatprep.subr.bf16.mxu0 0
  %4820 = vmatpush2.bf16.msra.mxu0 0
  %4821 = vmatprep.subr.bf16.mxu0 0
  %4822 = vmatpush2.bf16.msra.mxu0 0
  %4823 = vmatprep.subr.bf16.mxu0 0
  %4824 = vmatpush2.bf16.msra.mxu0 0
  %4825 = vmatprep.mubr.bf16.mxu0 0
  %4826 = vmatmul.mubr.bf16.gmra.mxu0 %v4791
  %v4827 = vpop.f32.mrf.mxu0
  %v4828 = vadd.f32 %v4775, %v4827
  %v4829 = vpop.f32.mrf.mxu0
  %v4830 = vpop.f32.mrf.mxu0
  %v4831 = vadd.f32 %v4778, %v4830
  %v4832 = vpop.f32.mrf.mxu0
  %4833 = vdwg.mxu0
  %v4834 = vld [vmem:[%s33] sm:$0x1]
  %v4836 = vlaneseq
  %v4837 = vshrl.u32 %v4836, 7
  %v4838 = vsub.s32 0, %v4837
  %v4839 = vrot.slane %v4834, %v4838
  %v4841 = vadd.f32 %v4828, %v4839
  %v4842 = vadd.f32 %v4831, %v4839
  %vm4843 = vcmp.gt.f32.partialorder %v4841, 0.0
  %vm4844 = vcmp.gt.f32.partialorder %v4842, 0.0
  %v4845 = vmul.f32 %v4841, 1.442695
  %v4846 = vpow.pop %v4845
  %v4847 = vmul.f32 %v4842, 1.442695
  %v4848 = vpow.pop %v4847
  %v4849 = vsub.f32 %v4846, 1.0
  %v4850 = vsub.f32 %v4848, 1.0
  %v4851 = vmul.f32 %v4849, 1.6732632
  %v4852 = vmul.f32 %v4850, 1.6732632
  %v4853 = vsel %vm4843, %v4841, %v4851
  %v4854 = vsel %vm4844, %v4842, %v4852
  %v4855 = vmul.f32 %v4853, 1.050701
  %v4856 = vmul.f32 %v4854, 1.050701
  %v4857 = vpack.c.bf16 %v4856, %v4855
  %v4858 = vld [vmem:[%s35] sm:$0xf]
  %v4859 = vld [vmem:[%s35 + $0x4] sm:$0xf]
  %v4860 = vld [vmem:[%s35 + $0x8] sm:$0xf]
  %v4861 = vld [vmem:[%s35 + $0xc] sm:$0xf]
  %v4862 = vld [vmem:[%s37] sm:$0x1]
  %v4864 = vlaneseq
  %v4865 = vshrl.u32 %v4864, 7
  %v4866 = vsub.s32 0, %v4865
  %v4867 = vrot.slane %v4862, %v4866
  %v4873 = vunpack.c.l.b16 %v4858
  %v4874 = vunpack.c.l.b16 %v4859
  %v4875 = vunpack.c.l.b16 %v4860
  %v4876 = vunpack.c.l.b16 %v4861
  %v4877 = vpack.c.b16 %v4874, %v4873
  %v4878 = vpack.c.b16 %v4876, %v4875
  %vm4881 = vcmask 261120
  %v4883 = vsel %vm4881, %v4857, 0
  %4885 = vmatprep.subr.bf16.mxu0 0
  %4886 = vmatpush1.bf16.msra.mxu0 0
  %4887 = vmatprep.subr.bf16.mxu0 0
  %4888 = vmatpush1.bf16.msra.mxu0 0
  %4889 = vmatprep.subr.bf16.mxu0 0
  %4890 = vmatpush1.bf16.msra.mxu0 0
  %4891 = vmatprep.subr.bf16.mxu0 0
  %4892 = vmatpush1.bf16.msra.mxu0 0
  %4893 = vmatprep.subr.bf16.mxu0 0
  %4894 = vmatpush1.bf16.msra.mxu0 0
  %4895 = vmatprep.subr.bf16.mxu0 0
  %4896 = vmatpush1.bf16.msra.mxu0 0
  %4897 = vmatprep.subr.bf16.mxu0 0
  %4898 = vmatpush1.bf16.msra.mxu0 %v4878
  %4899 = vmatprep.subr.bf16.mxu0 0
  %4900 = vmatpush1.bf16.msra.mxu0 %v4877
  %4901 = vmatprep.subr.bf16.mxu0 0
  %4902 = vmatpush2.bf16.msra.mxu0 0
  %4903 = vmatprep.subr.bf16.mxu0 0
  %4904 = vmatpush2.bf16.msra.mxu0 0
  %4905 = vmatprep.subr.bf16.mxu0 0
  %4906 = vmatpush2.bf16.msra.mxu0 0
  %4907 = vmatprep.subr.bf16.mxu0 0
  %4908 = vmatpush2.bf16.msra.mxu0 0
  %4909 = vmatprep.subr.bf16.mxu0 0
  %4910 = vmatpush2.bf16.msra.mxu0 0
  %4911 = vmatprep.subr.bf16.mxu0 0
  %4912 = vmatpush2.bf16.msra.mxu0 0
  %4913 = vmatprep.subr.bf16.mxu0 0
  %4914 = vmatpush2.bf16.msra.mxu0 0
  %4915 = vmatprep.subr.bf16.mxu0 0
  %4916 = vmatpush2.bf16.msra.mxu0 0
  %4917 = vmatprep.mubr.bf16.mxu0 0
  %4918 = vmatmul.mubr.bf16.gmra.mxu0 %v4883
  %v4919 = vpop.f32.mrf.mxu0
  %v4920 = vadd.f32 %v4867, %v4919
  %v4921 = vpop.f32.mrf.mxu0
  %v4922 = vpop.f32.mrf.mxu0
  %v4923 = vadd.f32 %v4867, %v4922
  %v4924 = vpop.f32.mrf.mxu0
  %4925 = vdwg.mxu0
  %vm4926 = vcmp.gt.f32.partialorder %v4920, 0.0
  %vm4927 = vcmp.gt.f32.partialorder %v4923, 0.0
  %v4928 = vmul.f32 %v4920, 1.442695
  %v4929 = vpow.pop %v4928
  %v4930 = vmul.f32 %v4923, 1.442695
  %v4931 = vpow.pop %v4930
  %v4932 = vsub.f32 %v4929, 1.0
  %v4933 = vsub.f32 %v4931, 1.0
  %v4934 = vmul.f32 %v4932, 1.6732632
  %v4935 = vmul.f32 %v4933, 1.6732632
  %v4936 = vsel %vm4926, %v4920, %v4934
  %v4937 = vsel %vm4927, %v4923, %v4935
  %v4938 = vmul.f32 %v4936, 1.050701
  %v4939 = vmul.f32 %v4937, 1.050701
  %v4940 = vpack.c.bf16 %v4939, %v4938
  %v4941 = vld [vmem:[%s39] sm:$0xf]
  %v4942 = vld [vmem:[%s39 + $0x4] sm:$0xf]
  %v4943 = vld [vmem:[%s39 + $0x8] sm:$0xf]
  %v4944 = vld [vmem:[%s39 + $0xc] sm:$0xf]
  %v4945 = vld [vmem:[%s41] sm:$0x1]
  %v4947 = vlaneseq
  %v4948 = vshrl.u32 %v4947, 7
  %v4949 = vsub.s32 0, %v4948
  %v4950 = vrot.slane %v4945, %v4949
  %v4956 = vunpack.c.l.b16 %v4941
  %v4957 = vunpack.c.l.b16 %v4942
  %v4958 = vunpack.c.l.b16 %v4943
  %v4959 = vunpack.c.l.b16 %v4944
  %v4960 = vpack.c.b16 %v4957, %v4956
  %v4961 = vpack.c.b16 %v4959, %v4958
  %v4965 = vsel %vm4881, %v4940, 0
  %4967 = vmatprep.subr.bf16.mxu0 0
  %4968 = vmatpush1.bf16.msra.mxu0 0
  %4969 = vmatprep.subr.bf16.mxu0 0
  %4970 = vmatpush1.bf16.msra.mxu0 0
  %4971 = vmatprep.subr.bf16.mxu0 0
  %4972 = vmatpush1.bf16.msra.mxu0 0
  %4973 = vmatprep.subr.bf16.mxu0 0
  %4974 = vmatpush1.bf16.msra.mxu0 0
  %4975 = vmatprep.subr.bf16.mxu0 0
  %4976 = vmatpush1.bf16.msra.mxu0 0
  %4977 = vmatprep.subr.bf16.mxu0 0
  %4978 = vmatpush1.bf16.msra.mxu0 0
  %4979 = vmatprep.subr.bf16.mxu0 0
  %4980 = vmatpush1.bf16.msra.mxu0 %v4961
  %4981 = vmatprep.subr.bf16.mxu0 0
  %4982 = vmatpush1.bf16.msra.mxu0 %v4960
  %4983 = vmatprep.subr.bf16.mxu0 0
  %4984 = vmatpush2.bf16.msra.mxu0 0
  %4985 = vmatprep.subr.bf16.mxu0 0
  %4986 = vmatpush2.bf16.msra.mxu0 0
  %4987 = vmatprep.subr.bf16.mxu0 0
  %4988 = vmatpush2.bf16.msra.mxu0 0
  %4989 = vmatprep.subr.bf16.mxu0 0
  %4990 = vmatpush2.bf16.msra.mxu0 0
  %4991 = vmatprep.subr.bf16.mxu0 0
  %4992 = vmatpush2.bf16.msra.mxu0 0
  %4993 = vmatprep.subr.bf16.mxu0 0
  %4994 = vmatpush2.bf16.msra.mxu0 0
  %4995 = vmatprep.subr.bf16.mxu0 0
  %4996 = vmatpush2.bf16.msra.mxu0 0
  %4997 = vmatprep.subr.bf16.mxu0 0
  %4998 = vmatpush2.bf16.msra.mxu0 0
  %4999 = vmatprep.mubr.bf16.mxu0 0
  %5000 = vmatmul.mubr.bf16.gmra.mxu0 %v4965
  %v5001 = vpop.f32.mrf.mxu0
  %v5002 = vadd.f32 %v4950, %v5001
  %v5003 = vpop.f32.mrf.mxu0
  %v5004 = vpop.f32.mrf.mxu0
  %v5005 = vadd.f32 %v4950, %v5004
  %v5006 = vpop.f32.mrf.mxu0
  %5007 = vdwg.mxu0
  %v5008 = vld [vmem:[%s43] sm:$0xf]
  %v5009 = vld [vmem:[%s43 + $0x4] sm:$0xf]
  %v5010 = vld [vmem:[%s45] sm:$0x1]
  %v5012 = vlaneseq
  %v5013 = vshrl.u32 %v5012, 7
  %v5014 = vsub.s32 0, %v5013
  %v5015 = vrot.slane %v5010, %v5014
  %v5019 = vunpack.c.l.b16 %v5008
  %v5020 = vunpack.c.l.b16 %v5009
  %v5021 = vpack.c.b16 %v5020, %v5019
  %5023 = vmatprep.subr.bf16.mxu0 0
  %5024 = vmatpush1.bf16.msra.mxu0 0
  %5025 = vmatprep.subr.bf16.mxu0 0
  %5026 = vmatpush1.bf16.msra.mxu0 0
  %5027 = vmatprep.subr.bf16.mxu0 0
  %5028 = vmatpush1.bf16.msra.mxu0 0
  %5029 = vmatprep.subr.bf16.mxu0 0
  %5030 = vmatpush1.bf16.msra.mxu0 0
  %5031 = vmatprep.subr.bf16.mxu0 0
  %5032 = vmatpush1.bf16.msra.mxu0 0
  %5033 = vmatprep.subr.bf16.mxu0 0
  %5034 = vmatpush1.bf16.msra.mxu0 0
  %5035 = vmatprep.subr.bf16.mxu0 0
  %5036 = vmatpush1.bf16.msra.mxu0 0
  %5037 = vmatprep.subr.bf16.mxu0 0
  %5038 = vmatpush1.bf16.msra.mxu0 %v5021
  %5039 = vmatprep.subr.bf16.mxu0 0
  %5040 = vmatpush2.bf16.msra.mxu0 0
  %5041 = vmatprep.subr.bf16.mxu0 0
  %5042 = vmatpush2.bf16.msra.mxu0 0
  %5043 = vmatprep.subr.bf16.mxu0 0
  %5044 = vmatpush2.bf16.msra.mxu0 0
  %5045 = vmatprep.subr.bf16.mxu0 0
  %5046 = vmatpush2.bf16.msra.mxu0 0
  %5047 = vmatprep.subr.bf16.mxu0 0
  %5048 = vmatpush2.bf16.msra.mxu0 0
  %5049 = vmatprep.subr.bf16.mxu0 0
  %5050 = vmatpush2.bf16.msra.mxu0 0
  %5051 = vmatprep.subr.bf16.mxu0 0
  %5052 = vmatpush2.bf16.msra.mxu0 0
  %5053 = vmatprep.subr.bf16.mxu0 0
  %5054 = vmatpush2.bf16.msra.mxu0 0
  %5055 = vmatprep.mubr.bf16.mxu0 0
  %5056 = vmatmul.mubr.bf16.gmra.mxu0 %v4791
  %v5057 = vpop.f32.mrf.mxu0
  %v5058 = vadd.f32 %v5015, %v5057
  %v5059 = vpop.f32.mrf.mxu0
  %v5060 = vpop.f32.mrf.mxu0
  %v5061 = vadd.f32 %v5015, %v5060
  %v5062 = vpop.f32.mrf.mxu0
  %5063 = vdwg.mxu0
  %vm5064 = vcmp.gt.f32.partialorder %v5058, 0.0
  %vm5065 = vcmp.gt.f32.partialorder %v5061, 0.0
  %v5066 = vmul.f32 %v5058, 1.442695
  %v5067 = vpow.pop %v5066
  %v5068 = vmul.f32 %v5061, 1.442695
  %v5069 = vpow.pop %v5068
  %v5070 = vsub.f32 %v5067, 1.0
  %v5071 = vsub.f32 %v5069, 1.0
  %v5072 = vmul.f32 %v5070, 1.6732632
  %v5073 = vmul.f32 %v5071, 1.6732632
  %v5074 = vsel %vm5064, %v5058, %v5072
  %v5075 = vsel %vm5065, %v5061, %v5073
  %v5076 = vmul.f32 %v5074, 1.050701
  %v5077 = vmul.f32 %v5075, 1.050701
  %v5078 = vpack.c.bf16 %v5077, %v5076
  %v5079 = vld [vmem:[%s47] sm:$0xf]
  %v5080 = vld [vmem:[%s47 + $0x4] sm:$0xf]
  %v5081 = vld [vmem:[%s47 + $0x8] sm:$0xf]
  %v5082 = vld [vmem:[%s47 + $0xc] sm:$0xf]
  %v5083 = vld [vmem:[%s49] sm:$0x1]
  %v5085 = vlaneseq
  %v5086 = vshrl.u32 %v5085, 7
  %v5087 = vsub.s32 0, %v5086
  %v5088 = vrot.slane %v5083, %v5087
  %v5094 = vunpack.c.l.b16 %v5079
  %v5095 = vunpack.c.l.b16 %v5080
  %v5096 = vunpack.c.l.b16 %v5081
  %v5097 = vunpack.c.l.b16 %v5082
  %v5098 = vpack.c.b16 %v5095, %v5094
  %v5099 = vpack.c.b16 %v5097, %v5096
  %v5103 = vsel %vm4881, %v5078, 0
  %5105 = vmatprep.subr.bf16.mxu0 0
  %5106 = vmatpush1.bf16.msra.mxu0 0
  %5107 = vmatprep.subr.bf16.mxu0 0
  %5108 = vmatpush1.bf16.msra.mxu0 0
  %5109 = vmatprep.subr.bf16.mxu0 0
  %5110 = vmatpush1.bf16.msra.mxu0 0
  %5111 = vmatprep.subr.bf16.mxu0 0
  %5112 = vmatpush1.bf16.msra.mxu0 0
  %5113 = vmatprep.subr.bf16.mxu0 0
  %5114 = vmatpush1.bf16.msra.mxu0 0
  %5115 = vmatprep.subr.bf16.mxu0 0
  %5116 = vmatpush1.bf16.msra.mxu0 0
  %5117 = vmatprep.subr.bf16.mxu0 0
  %5118 = vmatpush1.bf16.msra.mxu0 %v5099
  %5119 = vmatprep.subr.bf16.mxu0 0
  %5120 = vmatpush1.bf16.msra.mxu0 %v5098
  %5121 = vmatprep.subr.bf16.mxu0 0
  %5122 = vmatpush2.bf16.msra.mxu0 0
  %5123 = vmatprep.subr.bf16.mxu0 0
  %5124 = vmatpush2.bf16.msra.mxu0 0
  %5125 = vmatprep.subr.bf16.mxu0 0
  %5126 = vmatpush2.bf16.msra.mxu0 0
  %5127 = vmatprep.subr.bf16.mxu0 0
  %5128 = vmatpush2.bf16.msra.mxu0 0
  %5129 = vmatprep.subr.bf16.mxu0 0
  %5130 = vmatpush2.bf16.msra.mxu0 0
  %5131 = vmatprep.subr.bf16.mxu0 0
  %5132 = vmatpush2.bf16.msra.mxu0 0
  %5133 = vmatprep.subr.bf16.mxu0 0
  %5134 = vmatpush2.bf16.msra.mxu0 0
  %5135 = vmatprep.subr.bf16.mxu0 0
  %5136 = vmatpush2.bf16.msra.mxu0 0
  %5137 = vmatprep.mubr.bf16.mxu0 0
  %5138 = vmatmul.mubr.bf16.gmra.mxu0 %v5103
  %v5139 = vpop.f32.mrf.mxu0
  %v5140 = vadd.f32 %v5088, %v5139
  %v5141 = vpop.f32.mrf.mxu0
  %v5142 = vpop.f32.mrf.mxu0
  %v5143 = vadd.f32 %v5088, %v5142
  %v5144 = vpop.f32.mrf.mxu0
  %5145 = vdwg.mxu0
  %vm5146 = vcmp.gt.f32.partialorder %v5140, 0.0
  %vm5147 = vcmp.gt.f32.partialorder %v5143, 0.0
  %v5148 = vmul.f32 %v5140, 1.442695
  %v5149 = vpow.pop %v5148
  %v5150 = vmul.f32 %v5143, 1.442695
  %v5151 = vpow.pop %v5150
  %v5152 = vsub.f32 %v5149, 1.0
  %v5153 = vsub.f32 %v5151, 1.0
  %v5154 = vmul.f32 %v5152, 1.6732632
  %v5155 = vmul.f32 %v5153, 1.6732632
  %v5156 = vsel %vm5146, %v5140, %v5154
  %v5157 = vsel %vm5147, %v5143, %v5155
  %v5158 = vmul.f32 %v5156, 1.050701
  %v5159 = vmul.f32 %v5157, 1.050701
  %v5160 = vpack.c.bf16 %v5159, %v5158
  %v5161 = vld [vmem:[%s51] sm:$0xf]
  %v5162 = vld [vmem:[%s51 + $0x4] sm:$0xf]
  %v5163 = vld [vmem:[%s51 + $0x8] sm:$0xf]
  %v5164 = vld [vmem:[%s51 + $0xc] sm:$0xf]
  %v5165 = vld [vmem:[%s53] sm:$0x1]
  %v5167 = vlaneseq
  %v5168 = vshrl.u32 %v5167, 7
  %v5169 = vsub.s32 0, %v5168
  %v5170 = vrot.slane %v5165, %v5169
  %v5176 = vunpack.c.l.b16 %v5161
  %v5177 = vunpack.c.l.b16 %v5162
  %v5178 = vunpack.c.l.b16 %v5163
  %v5179 = vunpack.c.l.b16 %v5164
  %v5180 = vpack.c.b16 %v5177, %v5176
  %v5181 = vpack.c.b16 %v5179, %v5178
  %v5185 = vsel %vm4881, %v5160, 0
  %5187 = vmatprep.subr.bf16.mxu0 0
  %5188 = vmatpush1.bf16.msra.mxu0 0
  %5189 = vmatprep.subr.bf16.mxu0 0
  %5190 = vmatpush1.bf16.msra.mxu0 0
  %5191 = vmatprep.subr.bf16.mxu0 0
  %5192 = vmatpush1.bf16.msra.mxu0 0
  %5193 = vmatprep.subr.bf16.mxu0 0
  %5194 = vmatpush1.bf16.msra.mxu0 0
  %5195 = vmatprep.subr.bf16.mxu0 0
  %5196 = vmatpush1.bf16.msra.mxu0 0
  %5197 = vmatprep.subr.bf16.mxu0 0
  %5198 = vmatpush1.bf16.msra.mxu0 0
  %5199 = vmatprep.subr.bf16.mxu0 0
  %5200 = vmatpush1.bf16.msra.mxu0 %v5181
  %5201 = vmatprep.subr.bf16.mxu0 0
  %5202 = vmatpush1.bf16.msra.mxu0 %v5180
  %5203 = vmatprep.subr.bf16.mxu0 0
  %5204 = vmatpush2.bf16.msra.mxu0 0
  %5205 = vmatprep.subr.bf16.mxu0 0
  %5206 = vmatpush2.bf16.msra.mxu0 0
  %5207 = vmatprep.subr.bf16.mxu0 0
  %5208 = vmatpush2.bf16.msra.mxu0 0
  %5209 = vmatprep.subr.bf16.mxu0 0
  %5210 = vmatpush2.bf16.msra.mxu0 0
  %5211 = vmatprep.subr.bf16.mxu0 0
  %5212 = vmatpush2.bf16.msra.mxu0 0
  %5213 = vmatprep.subr.bf16.mxu0 0
  %5214 = vmatpush2.bf16.msra.mxu0 0
  %5215 = vmatprep.subr.bf16.mxu0 0
  %5216 = vmatpush2.bf16.msra.mxu0 0
  %5217 = vmatprep.subr.bf16.mxu0 0
  %5218 = vmatpush2.bf16.msra.mxu0 0
  %5219 = vmatprep.mubr.bf16.mxu0 0
  %5220 = vmatmul.mubr.bf16.gmra.mxu0 %v5185
  %v5221 = vpop.f32.mrf.mxu0
  %v5222 = vadd.f32 %v5170, %v5221
  %v5223 = vpop.f32.mrf.mxu0
  %v5224 = vpop.f32.mrf.mxu0
  %v5225 = vadd.f32 %v5170, %v5224
  %v5226 = vpop.f32.mrf.mxu0
  %5227 = vdwg.mxu0
  %v5228 = vxor.u32 %v5002, 2147483648
  %v5229 = vxor.u32 %v5005, 2147483648
  %v5230 = vmul.f32 %v5228, 1.442695
  %v5231 = vpow.pop %v5230
  %v5232 = vmul.f32 %v5229, 1.442695
  %v5233 = vpow.pop %v5232
  %v5234 = vadd.f32 %v5231, 1.0
  %v5235 = vadd.f32 %v5233, 1.0
  %v5236 = vrcp.pop %v5234
  %v5237 = vmul.f32 1.0, %v5236
  %v5238 = vrcp.pop %v5235
  %v5239 = vmul.f32 1.0, %v5238
  %v5240 = vmul.f32 %v5237, %v5222
  %v5241 = vmul.f32 %v5239, %v5225
  %v5242 = vpack.c.bf16 %v5241, %v5240
  %v5244 = vsel %vm395, %v154, 0
  %5246 = vmatprep.subr.bf16.mxu0 0
  %5247 = vmatpush1.bf16.msra.mxu0 0
  %5248 = vmatprep.subr.bf16.mxu0 0
  %5249 = vmatpush1.bf16.msra.mxu0 0
  %5250 = vmatprep.subr.bf16.mxu0 0
  %5251 = vmatpush1.bf16.msra.mxu0 0
  %5252 = vmatprep.subr.bf16.mxu0 0
  %5253 = vmatpush1.bf16.msra.mxu0 0
  %5254 = vmatprep.subr.bf16.mxu0 0
  %5255 = vmatpush1.bf16.msra.mxu0 0
  %5256 = vmatprep.subr.bf16.mxu0 0
  %5257 = vmatpush1.bf16.msra.mxu0 0
  %5258 = vmatprep.subr.bf16.mxu0 0
  %5259 = vmatpush1.bf16.msra.mxu0 0
  %5260 = vmatprep.subr.bf16.mxu0 0
  %5261 = vmatpush1.bf16.msra.mxu0 %v5242
  %5262 = vmatprep.subr.bf16.mxu0 0
  %5263 = vmatpush2.bf16.msra.mxu0 0
  %5264 = vmatprep.subr.bf16.mxu0 0
  %5265 = vmatpush2.bf16.msra.mxu0 0
  %5266 = vmatprep.subr.bf16.mxu0 0
  %5267 = vmatpush2.bf16.msra.mxu0 0
  %5268 = vmatprep.subr.bf16.mxu0 0
  %5269 = vmatpush2.bf16.msra.mxu0 0
  %5270 = vmatprep.subr.bf16.mxu0 0
  %5271 = vmatpush2.bf16.msra.mxu0 0
  %5272 = vmatprep.subr.bf16.mxu0 0
  %5273 = vmatpush2.bf16.msra.mxu0 0
  %5274 = vmatprep.subr.bf16.mxu0 0
  %5275 = vmatpush2.bf16.msra.mxu0 0
  %5276 = vmatprep.subr.bf16.mxu0 0
  %5277 = vmatpush2.bf16.msra.mxu0 0
  %5278 = vmatprep.mubr.bf16.mxu0 0
  %5279 = vmatmul.mubr.bf16.gmra.mxu0 %v5244
  %v5280 = vpop.f32.mrf.mxu0
  %v5281 = vadd.f32 0.0, %v5280
  %v5282 = vpop.f32.mrf.mxu0
  %v5283 = vpop.f32.mrf.mxu0
  %v5284 = vpop.f32.mrf.mxu0
  %5285 = vdwg.mxu0
  %v5286 = vpack.c.bf16 %v5281, %v5281
  %v5287 = vld [vmem:[%s55] sm:$0xf]
  %v5288 = vld [vmem:[%s55 + $0x4] sm:$0xf]
  %v5289 = vld [vmem:[%s57] sm:$0x1]
  %v5291 = vlaneseq
  %v5292 = vshrl.u32 %v5291, 7
  %v5293 = vsub.s32 0, %v5292
  %v5294 = vrot.slane %v5289, %v5293
  %v5298 = vunpack.c.l.b16 %v5287
  %v5299 = vunpack.c.l.b16 %v5288
  %v5300 = vpack.c.b16 %v5299, %v5298
  %v5303 = vsel %vm395, %v5286, 0
  %5305 = vmatprep.subr.bf16.mxu0 0
  %5306 = vmatpush1.bf16.msra.mxu0 0
  %5307 = vmatprep.subr.bf16.mxu0 0
  %5308 = vmatpush1.bf16.msra.mxu0 0
  %5309 = vmatprep.subr.bf16.mxu0 0
  %5310 = vmatpush1.bf16.msra.mxu0 0
  %5311 = vmatprep.subr.bf16.mxu0 0
  %5312 = vmatpush1.bf16.msra.mxu0 0
  %5313 = vmatprep.subr.bf16.mxu0 0
  %5314 = vmatpush1.bf16.msra.mxu0 0
  %5315 = vmatprep.subr.bf16.mxu0 0
  %5316 = vmatpush1.bf16.msra.mxu0 0
  %5317 = vmatprep.subr.bf16.mxu0 0
  %5318 = vmatpush1.bf16.msra.mxu0 0
  %5319 = vmatprep.subr.bf16.mxu0 0
  %5320 = vmatpush1.bf16.msra.mxu0 %v5300
  %5321 = vmatprep.subr.bf16.mxu0 0
  %5322 = vmatpush2.bf16.msra.mxu0 0
  %5323 = vmatprep.subr.bf16.mxu0 0
  %5324 = vmatpush2.bf16.msra.mxu0 0
  %5325 = vmatprep.subr.bf16.mxu0 0
  %5326 = vmatpush2.bf16.msra.mxu0 0
  %5327 = vmatprep.subr.bf16.mxu0 0
  %5328 = vmatpush2.bf16.msra.mxu0 0
  %5329 = vmatprep.subr.bf16.mxu0 0
  %5330 = vmatpush2.bf16.msra.mxu0 0
  %5331 = vmatprep.subr.bf16.mxu0 0
  %5332 = vmatpush2.bf16.msra.mxu0 0
  %5333 = vmatprep.subr.bf16.mxu0 0
  %5334 = vmatpush2.bf16.msra.mxu0 0
  %5335 = vmatprep.subr.bf16.mxu0 0
  %5336 = vmatpush2.bf16.msra.mxu0 0
  %5337 = vmatprep.mubr.bf16.mxu0 0
  %5338 = vmatmul.mubr.bf16.gmra.mxu0 %v5303
  %v5339 = vpop.f32.mrf.mxu0
  %v5340 = vadd.f32 %v5294, %v5339
  %v5341 = vpop.f32.mrf.mxu0
  %v5342 = vpop.f32.mrf.mxu0
  %v5343 = vpop.f32.mrf.mxu0
  %5344 = vdwg.mxu0
  %vm5345 = vcmp.gt.f32.partialorder %v5340, 0.0
  %v5346 = vmul.f32 %v5340, 1.442695
  %v5347 = vpow.pop %v5346
  %v5348 = vsub.f32 %v5347, 1.0
  %v5349 = vmul.f32 %v5348, 1.6732632
  %v5350 = vsel %vm5345, %v5340, %v5349
  %v5351 = vmul.f32 %v5350, 1.050701
  %v5352 = vpack.c.bf16 %v5351, %v5351
  %v5353 = vld [vmem:[%s59] sm:$0xf]
  %v5354 = vld [vmem:[%s59 + $0x4] sm:$0xf]
  %v5355 = vld [vmem:[%s59 + $0x8] sm:$0xf]
  %v5356 = vld [vmem:[%s59 + $0xc] sm:$0xf]
  %v5357 = vld [vmem:[%s61] sm:$0x1]
  %v5359 = vlaneseq
  %v5360 = vshrl.u32 %v5359, 7
  %v5361 = vsub.s32 0, %v5360
  %v5362 = vrot.slane %v5357, %v5361
  %v5368 = vunpack.c.l.b16 %v5353
  %v5369 = vunpack.c.l.b16 %v5354
  %v5370 = vunpack.c.l.b16 %v5355
  %v5371 = vunpack.c.l.b16 %v5356
  %v5372 = vpack.c.b16 %v5369, %v5368
  %v5373 = vpack.c.b16 %v5371, %v5370
  %v5377 = vsel %vm4881, %v5352, 0
  %5379 = vmatprep.subr.bf16.mxu0 0
  %5380 = vmatpush1.bf16.msra.mxu0 0
  %5381 = vmatprep.subr.bf16.mxu0 0
  %5382 = vmatpush1.bf16.msra.mxu0 0
  %5383 = vmatprep.subr.bf16.mxu0 0
  %5384 = vmatpush1.bf16.msra.mxu0 0
  %5385 = vmatprep.subr.bf16.mxu0 0
  %5386 = vmatpush1.bf16.msra.mxu0 0
  %5387 = vmatprep.subr.bf16.mxu0 0
  %5388 = vmatpush1.bf16.msra.mxu0 0
  %5389 = vmatprep.subr.bf16.mxu0 0
  %5390 = vmatpush1.bf16.msra.mxu0 0
  %5391 = vmatprep.subr.bf16.mxu0 0
  %5392 = vmatpush1.bf16.msra.mxu0 %v5373
  %5393 = vmatprep.subr.bf16.mxu0 0
  %5394 = vmatpush1.bf16.msra.mxu0 %v5372
  %5395 = vmatprep.subr.bf16.mxu0 0
  %5396 = vmatpush2.bf16.msra.mxu0 0
  %5397 = vmatprep.subr.bf16.mxu0 0
  %5398 = vmatpush2.bf16.msra.mxu0 0
  %5399 = vmatprep.subr.bf16.mxu0 0
  %5400 = vmatpush2.bf16.msra.mxu0 0
  %5401 = vmatprep.subr.bf16.mxu0 0
  %5402 = vmatpush2.bf16.msra.mxu0 0
  %5403 = vmatprep.subr.bf16.mxu0 0
  %5404 = vmatpush2.bf16.msra.mxu0 0
  %5405 = vmatprep.subr.bf16.mxu0 0
  %5406 = vmatpush2.bf16.msra.mxu0 0
  %5407 = vmatprep.subr.bf16.mxu0 0
  %5408 = vmatpush2.bf16.msra.mxu0 0
  %5409 = vmatprep.subr.bf16.mxu0 0
  %5410 = vmatpush2.bf16.msra.mxu0 0
  %5411 = vmatprep.mubr.bf16.mxu0 0
  %5412 = vmatmul.mubr.bf16.gmra.mxu0 %v5377
  %v5413 = vpop.f32.mrf.mxu0
  %v5414 = vadd.f32 %v5362, %v5413
  %v5415 = vpop.f32.mrf.mxu0
  %v5416 = vpop.f32.mrf.mxu0
  %v5417 = vpop.f32.mrf.mxu0
  %5418 = vdwg.mxu0
  %vm5419 = vcmp.gt.f32.partialorder %v5414, 0.0
  %v5420 = vmul.f32 %v5414, 1.442695
  %v5421 = vpow.pop %v5420
  %v5422 = vsub.f32 %v5421, 1.0
  %v5423 = vmul.f32 %v5422, 1.6732632
  %v5424 = vsel %vm5419, %v5414, %v5423
  %v5425 = vmul.f32 %v5424, 1.050701
  %v5426 = vpack.c.bf16 %v5425, %v5425
  %v5427 = vld [vmem:[%s63] sm:$0xf]
  %v5428 = vld [vmem:[%s63 + $0x4] sm:$0xf]
  %v5429 = vld [vmem:[%s63 + $0x8] sm:$0xf]
  %v5430 = vld [vmem:[%s63 + $0xc] sm:$0xf]
  %v5431 = vld [vmem:[#allocation2] sm:$0x1]
  %v5433 = vlaneseq
  %v5434 = vshrl.u32 %v5433, 7
  %v5435 = vsub.s32 0, %v5434
  %v5436 = vrot.slane %v5431, %v5435
  %v5442 = vunpack.c.l.b16 %v5427
  %v5443 = vunpack.c.l.b16 %v5428
  %v5444 = vunpack.c.l.b16 %v5429
  %v5445 = vunpack.c.l.b16 %v5430
  %v5446 = vpack.c.b16 %v5443, %v5442
  %v5447 = vpack.c.b16 %v5445, %v5444
  %v5451 = vsel %vm4881, %v5426, 0
  %5453 = vmatprep.subr.bf16.mxu0 0
  %5454 = vmatpush1.bf16.msra.mxu0 0
  %5455 = vmatprep.subr.bf16.mxu0 0
  %5456 = vmatpush1.bf16.msra.mxu0 0
  %5457 = vmatprep.subr.bf16.mxu0 0
  %5458 = vmatpush1.bf16.msra.mxu0 0
  %5459 = vmatprep.subr.bf16.mxu0 0
  %5460 = vmatpush1.bf16.msra.mxu0 0
  %5461 = vmatprep.subr.bf16.mxu0 0
  %5462 = vmatpush1.bf16.msra.mxu0 0
  %5463 = vmatprep.subr.bf16.mxu0 0
  %5464 = vmatpush1.bf16.msra.mxu0 0
  %5465 = vmatprep.subr.bf16.mxu0 0
  %5466 = vmatpush1.bf16.msra.mxu0 %v5447
  %5467 = vmatprep.subr.bf16.mxu0 0
  %5468 = vmatpush1.bf16.msra.mxu0 %v5446
  %5469 = vmatprep.subr.bf16.mxu0 0
  %5470 = vmatpush2.bf16.msra.mxu0 0
  %5471 = vmatprep.subr.bf16.mxu0 0
  %5472 = vmatpush2.bf16.msra.mxu0 0
  %5473 = vmatprep.subr.bf16.mxu0 0
  %5474 = vmatpush2.bf16.msra.mxu0 0
  %5475 = vmatprep.subr.bf16.mxu0 0
  %5476 = vmatpush2.bf16.msra.mxu0 0
  %5477 = vmatprep.subr.bf16.mxu0 0
  %5478 = vmatpush2.bf16.msra.mxu0 0
  %5479 = vmatprep.subr.bf16.mxu0 0
  %5480 = vmatpush2.bf16.msra.mxu0 0
  %5481 = vmatprep.subr.bf16.mxu0 0
  %5482 = vmatpush2.bf16.msra.mxu0 0
  %5483 = vmatprep.subr.bf16.mxu0 0
  %5484 = vmatpush2.bf16.msra.mxu0 0
  %5485 = vmatprep.mubr.bf16.mxu0 0
  %5486 = vmatmul.mubr.bf16.gmra.mxu0 %v5451
  %v5487 = vpop.f32.mrf.mxu0
  %v5488 = vadd.f32 %v5436, %v5487
  %v5489 = vpop.f32.mrf.mxu0
  %v5490 = vpop.f32.mrf.mxu0
  %v5491 = vpop.f32.mrf.mxu0
  %5492 = vdwg.mxu0
  %vm5493 = vcmask 1024
  %5494 = vst.msk [vmem:[%s67] sm:$0x3] %vm5493, %v5488
  // Predicated region
  $region134: #{mdam_forward.1} parent=0 // pred_check
    _
  $region135: #{mdam_forward.1} parent=0 // pred_check_branch
    %5496 = sbr.rel (0) target = $region137
  $region136: #{mdam_forward.1} parent=0 // pred_region
    _
  $region137: #{mdam_forward.1} parent=0 // pred_fallthru
    _
  // Predicated region
  $region138: #{mdam_forward.1} parent=0 // pred_check
    _
  $region139: #{mdam_forward.1} parent=0 // pred_check_branch
    %5498 = sbr.rel (0) target = $region141
  $region140: #{mdam_forward.1} parent=0 // pred_region
    _
  $region141: #{mdam_forward.1} parent=0 // pred_fallthru
    _

</llo_original>
